<compile_context>
chip_gen: v7x
topology: tpu7x:2x2x1
jax: 0.10.0
libtpu: 0.0.40
codegen_flags: <defaults>
</compile_context>

<pallas_src>
import functools

import numpy as np
import jax
import jax.numpy as jnp
from jax.experimental import pallas as pl
from jax.experimental.pallas import tpu as pltpu

ACT_DTYPE = jnp.bfloat16
_VMEM = pltpu.MemorySpace.VMEM
_COMPILER_PARAMS = pltpu.CompilerParams(vmem_limit_bytes=32 * 1024 * 1024)


def _round_up(x, m):
    return (x + m - 1) // m * m


def _whole(n):
    return [pl.BlockSpec(memory_space=_VMEM) for _ in range(n)]


def _interior_mask(B, H, W, pad, lanes):
    """(1, lanes) f32 trace-time constant: 1.0 on interior columns of the padded layout."""
    Hp, Wp = H + 2 * pad, W + 2 * pad
    m = np.zeros((1, B, Hp, Wp), np.float32)
    m[:, :, pad:pad + H, pad:pad + W] = 1.0
    m = m.reshape(1, B * Hp * Wp)
    if lanes > m.shape[1]:
        m = np.pad(m, ((0, 0), (0, lanes - m.shape[1])))
    return jnp.asarray(m)


# ---------------------------------------------------------------------------
# In-kernel im2col: stack the kh*kw lane-shifted tap slices along the contraction
# (sublane) axis and issue ONE MXU matmul with K = kh*kw*Cin.
# ---------------------------------------------------------------------------
def _tap_dot(x, w, offsets, lout):
    parts = [x[:, off:off + lout] for off in offsets]
    stacked = jnp.concatenate(parts, axis=0) if len(parts) > 1 else parts[0]
    return jnp.dot(w, stacked.astype(ACT_DTYPE), preferred_element_type=jnp.float32)


# ---------------------------------------------------------------------------
# Stand-alone stride-1 conv on a flattened, spatially pre-padded planar input.
#   x_ref : (Cin,  Lq) bf16   (zero tail up to Lq)
#   w_ref : (Cout, kh*kw*Cin) bf16
#   b_ref : (Cout, 1)  f32
#   o_ref : (Cout, Lq) bf16   valid conv bases in [0, lout); tail zeroed
# ---------------------------------------------------------------------------
def _conv_kernel(x_ref, w_ref, b_ref, o_ref, *, offsets, lout, post_relu):
    acc = _tap_dot(x_ref[...], w_ref[...], offsets, lout) + b_ref[...]
    if post_relu:
        acc = jnp.maximum(acc, 0.0)          # ReLU in the f32 epilogue
    o_ref[:, :lout] = acc.astype(o_ref.dtype)
    tail = o_ref.shape[1] - lout
    if tail:
        o_ref[:, lout:] = jnp.zeros((o_ref.shape[0], tail), o_ref.dtype)


def conv_planar(x_pad, w_cat, bias_col, kh, kw, post_relu=False):
    """x_pad: (Cin, B, Hp, Wp) already padded for a VALID kh x kw stride-1 conv.
    Returns (Cout, B, Hp-kh+1, Wp-kw+1)."""
    cin, B, Hp, Wp = x_pad.shape
    cout = w_cat.shape[0]
    Ho, Wo = Hp - kh + 1, Wp - kw + 1
    L = B * Hp * Wp
    Lq = _round_up(L, 128)
    lout = L - ((kh - 1) * Wp + (kw - 1))
    offsets = tuple(di * Wp + dj for di in range(kh) for dj in range(kw))
    xf = x_pad.reshape(cin, L).astype(ACT_DTYPE)
    if Lq > L:
        xf = jnp.pad(xf, ((0, 0), (0, Lq - L)))
    kern = functools.partial(_conv_kernel, offsets=offsets, lout=lout, post_relu=post_relu)
    flops = 2 * cout * int(w_cat.shape[1]) * lout
    bytes_acc = 2 * (cin * Lq + int(w_cat.size) + cout * Lq) + 4 * cout
    out = pl.pallas_call(
        kern,
        out_shape=jax.ShapeDtypeStruct((cout, Lq), ACT_DTYPE),
        in_specs=_whole(3),
        out_specs=pl.BlockSpec(memory_space=_VMEM),
        compiler_params=_COMPILER_PARAMS,
        cost_estimate=pl.CostEstimate(flops=flops, transcendentals=0,
                                      bytes_accessed=bytes_acc),
    )(xf, w_cat, bias_col)
    return out[:, :L].reshape(cout, B, Hp, Wp)[:, :, :Ho, :Wo]


# ---------------------------------------------------------------------------
# Residual stack body, shared by the fused encoder/decoder kernels.
# s_ref holds the activation in the zero-padded planar layout; each layer does
# x + Conv1x1(ReLU(Conv3x3(ReLU(x)))) and re-emits the interior with ONE masked
# lane-dense store.  The LAST layer's result is returned un-stored (the caller
# decides whether it needs the padded layout again).
# ---------------------------------------------------------------------------
def _residual_layers(s_ref, w3s_ref, w1s_ref, mask_w, offsets, ctr, lout, nrl):
    res = None
    for l in range(nrl):
        x = s_ref[...]
        xr = jnp.maximum(x, 0)
        t1 = jnp.maximum(_tap_dot(xr, w3s_ref[l], offsets, lout), 0.0).astype(ACT_DTYPE)
        t2 = jnp.dot(w1s_ref[l], t1, preferred_element_type=jnp.float32)
        res = x[:, ctr:ctr + lout].astype(jnp.float32) + t2
        if l + 1 < nrl:
            s_ref[:, ctr:ctr + lout] = (res * mask_w).astype(s_ref.dtype)
    return res


# ---------------------------------------------------------------------------
# Fused: encoder conv_3 -> residual stack (+trailing ReLU) -> pre-VQ 1x1 -> VQ
# ---------------------------------------------------------------------------
def _enc_vq_kernel(h_ref, mask_ref, wc3_ref, bc3_ref, w3s_ref, w1s_ref,
                   wpre_ref, bpre_ref, emb_ref, embt_ref,
                   q_ref, loss_ref, perp_ref, s_ref,
                   *, Wp, lout, nrl, n_valid, beta):
    offsets = tuple(di * Wp + dj for di in range(3) for dj in range(3))
    ctr = Wp + 1
    mask_w = mask_ref[:, ctr:ctr + lout]                            # (1, lout) f32

    # encoder conv_3 (3x3, pad=1, no activation) -> padded-layout scratch
    acc = _tap_dot(h_ref[...], wc3_ref[...], offsets, lout) + bc3_ref[...]
    s_ref[...] = jnp.zeros_like(s_ref)       # zero padding ring written exactly once
    s_ref[:, ctr:ctr + lout] = (acc * mask_w).astype(s_ref.dtype)

    # residual stack; trailing stack ReLU applied in f32 (never stored)
    res = _residual_layers(s_ref, w3s_ref, w1s_ref, mask_w, offsets, ctr, lout, nrl)
    hfin = jnp.maximum(res, 0.0)

    # pre-VQ 1x1 conv fused here
    z = jnp.dot(wpre_ref[...], hfin.astype(ACT_DTYPE),
                preferred_element_type=jnp.float32) + bpre_ref[...]  # (D, lout)

    # vector quantizer (interior columns selected via mask)
    emb = emb_ref[...]                                               # (Ne, D) f32
    embt = embt_ref[...]                                             # (D, Ne) f32
    ne = emb.shape[0]
    d = z.shape[0]
    z2 = jnp.sum(z * z, axis=0, keepdims=True)                       # (1, lout)
    e2 = jnp.sum(emb * emb, axis=1, keepdims=True)                   # (Ne, 1)
    ez = jnp.dot(emb, z, preferred_element_type=jnp.float32)         # (Ne, lout)
    dist = z2 + e2 - 2.0 * ez

    dmin = jnp.min(dist, axis=0, keepdims=True)
    rows = jax.lax.broadcasted_iota(jnp.int32, dist.shape, 0)
    idx = jnp.min(jnp.where(dist <= dmin, rows, ne), axis=0, keepdims=True)
    enc = (rows == idx).astype(jnp.float32)                          # one-hot (Ne, lout)
    qwin = jnp.dot(embt, enc, preferred_element_type=jnp.float32)    # (D, lout)

    diff2 = (qwin - z) * (qwin - z) * mask_w
    mse = jnp.sum(jnp.sum(diff2, axis=1, keepdims=True),
                  axis=0, keepdims=True) / (n_valid * d)
    loss_ref[...] = (1.0 + beta) * mse        # q_latent_loss + beta * e_latent_loss

    avg = jnp.sum(enc * mask_w, axis=1, keepdims=True) / n_valid     # (Ne, 1)
    ent = jnp.sum(avg * jnp.log(avg + 1e-10), axis=0, keepdims=True)
    perp_ref[...] = jnp.exp(-ent)

    # quantized latent re-emitted in the zero-padded layout (f32 for the decoder)
    q_ref[...] = jnp.zeros_like(q_ref)
    q_ref[:, ctr:ctr + lout] = (qwin * mask_w).astype(q_ref.dtype)
    # TODO(synk): straight-through estimator / stop_gradient loss split only affect the
    # backward pass; forward values are identical (forward-only kernel).


# ---------------------------------------------------------------------------
# Fused: decoder conv_1 -> residual stack (+trailing ReLU) -> conv_trans_1 (+ReLU),
# conv_trans_1 expressed as a 3x3 stride-1 conv producing 4 sub-pixel phase groups.
# ---------------------------------------------------------------------------
def _dec_kernel(q_ref, mask_ref, wd1_ref, bd1_ref, w3s_ref, w1s_ref,
                wt1_ref, bt1_ref, y_ref, s_ref, *, Wp, lout, nrl):
    offsets = tuple(di * Wp + dj for di in range(3) for dj in range(3))
    ctr = Wp + 1
    mask_w = mask_ref[:, ctr:ctr + lout]

    acc = _tap_dot(q_ref[...], wd1_ref[...], offsets, lout) + bd1_ref[...]
    s_ref[...] = jnp.zeros_like(s_ref)
    s_ref[:, ctr:ctr + lout] = (acc * mask_w).astype(s_ref.dtype)

    res = _residual_layers(s_ref, w3s_ref, w1s_ref, mask_w, offsets, ctr, lout, nrl)
    # trailing stack ReLU in f32, re-emit padded layout (dec_t1's 3x3 conv needs it)
    s_ref[:, ctr:ctr + lout] = (jnp.maximum(res, 0.0) * mask_w).astype(s_ref.dtype)

    y = jnp.maximum(_tap_dot(s_ref[...], wt1_ref[...], offsets, lout) + bt1_ref[...], 0.0)
    y_ref[:, :lout] = y.astype(y_ref.dtype)
    tail = y_ref.shape[1] - lout
    if tail:
        y_ref[:, lout:] = jnp.zeros((y_ref.shape[0], tail), y_ref.dtype)


# ---------------------------------------------------------------------------
# Wrappers for the fused latent-resolution kernels
# ---------------------------------------------------------------------------
def latent_encode_vq(h, params, beta):
    """h: (nh, B, H, W) dense planar features after enc conv_2 + ReLU."""
    nh, B, H, W = h.shape
    Hp, Wp = H + 2, W + 2
    L = B * Hp * Wp
    Lq = _round_up(L, 128)
    lout = L - (2 * Wp + 2)
    hp = jnp.pad(h, ((0, 0), (0, 0), (1, 1), (1, 1))).reshape(nh, L).astype(ACT_DTYPE)
    if Lq > L:
        hp = jnp.pad(hp, ((0, 0), (0, Lq - L)))
    mask = _interior_mask(B, H, W, 1, Lq)

    wc3, bc3 = params["enc_c3"]
    w3s, w1s = params["enc_res"]
    wpre, bpre = params["prevq"]
    ed = wpre.shape[0]
    nrl = w3s.shape[0]
    kern = functools.partial(_enc_vq_kernel, Wp=Wp, lout=lout, nrl=nrl,
                             n_valid=float(B * H * W), beta=beta)
    quant, loss, perp = pl.pallas_call(
        kern,
        out_shape=(jax.ShapeDtypeStruct((ed, Lq), jnp.float32),
                   jax.ShapeDtypeStruct((1, 1), jnp.float32),
                   jax.ShapeDtypeStruct((1, 1), jnp.float32)),
        in_specs=_whole(10),
        out_specs=tuple(_whole(3)),
        scratch_shapes=[pltpu.VMEM((nh, Lq), ACT_DTYPE)],
        compiler_params=_COMPILER_PARAMS,
    )(hp, mask, wc3, bc3, w3s, w1s, wpre, bpre, params["emb"], params["emb_t"])
    geom = (B, H, W, Hp, Wp, L, Lq)
    return quant, loss[0, 0], perp[0, 0], geom


def latent_decode(quant, params, geom):
    """quant: (ed, Lq) f32 padded planar latent.  Returns the 4-phase sub-pixel
    output of conv_trans_1 (already ReLU'd): (4*(nh//2), B, H, W)."""
    B, H, W, Hp, Wp, L, Lq = geom
    lout = L - (2 * Wp + 2)
    mask = _interior_mask(B, H, W, 1, Lq)
    wd1, bd1 = params["dec_c1"]
    w3s, w1s = params["dec_res"]
    wt1, bt1 = params["dec_t1"]
    nh = wd1.shape[0]
    cph = wt1.shape[0]
    nrl = w3s.shape[0]
    kern = functools.partial(_dec_kernel, Wp=Wp, lout=lout, nrl=nrl)
    y = pl.pallas_call(
        kern,
        out_shape=jax.ShapeDtypeStruct((cph, Lq), ACT_DTYPE),
        in_specs=_whole(8),
        out_specs=pl.BlockSpec(memory_space=_VMEM),
        scratch_shapes=[pltpu.VMEM((nh, Lq), ACT_DTYPE)],
        compiler_params=_COMPILER_PARAMS,
    )(quant, mask, wd1, bd1, w3s, w1s, wt1, bt1)
    return y[:, :L].reshape(cph, B, Hp, Wp)[:, :, :H, :W]


# ---------------------------------------------------------------------------
# Small XLA layout helpers (space<->depth for the stride-2 convs / transposed convs)
# ---------------------------------------------------------------------------
def space_to_depth2(x, pad):
    """(C,B,H,W) -> spatial pad by `pad`, factor-2 space-to-depth -> (4C, B, H', W')."""
    if pad:
        x = jnp.pad(x, ((0, 0), (0, 0), (pad, pad), (pad, pad)))
    C, B, Hp, Wp = x.shape
    x = x.reshape(C, B, Hp // 2, 2, Wp // 2, 2)
    x = jnp.transpose(x, (0, 3, 5, 1, 2, 4))              # (C, rh, rw, B, H', W')
    return x.reshape(C * 4, B, Hp // 2, Wp // 2)


def depth_to_space2(y):
    """4-phase-grouped (4C, B, H, W) -> (C, B, 2H, 2W) sub-pixel interleave."""
    c4, B, H, W = y.shape
    c = c4 // 4
    y = y.reshape(2, 2, c, B, H, W)
    return jnp.transpose(y, (2, 3, 4, 0, 5, 1)).reshape(c, B, 2 * H, 2 * W)


# ---------------------------------------------------------------------------
# Parameters: PyTorch-layout synthetic init + ONE-TIME rearrangement into
# kernel-ready tap-concatenated (Cout, kh*kw*Cin) bf16 tensors.
# ---------------------------------------------------------------------------
def init_params(key, num_hiddens, num_residual_layers, num_residual_hiddens,
                num_embeddings, embedding_dim):
    nh, nrl, nrh, ne, ed = (num_hiddens, num_residual_layers,
                            num_residual_hiddens, num_embeddings, embedding_dim)
    keys = list(jax.random.split(key, 64))
    ki = iter(keys)

    def w(shape, scale=0.1):
        return (scale * jax.random.normal(next(ki), shape)).astype(jnp.float32)

    def res_layers():
        return [(w((nrh, nh, 3, 3)), w((nh, nrh, 1, 1))) for _ in range(nrl)]

    p = {}
    p["enc_c1_w"] = w((nh // 2, 3, 4, 4)); p["enc_c1_b"] = w((nh // 2,))
    p["enc_c2_w"] = w((nh, nh // 2, 4, 4)); p["enc_c2_b"] = w((nh,))
    p["enc_c3_w"] = w((nh, nh, 3, 3)); p["enc_c3_b"] = w((nh,))
    p["enc_res"] = res_layers()
    p["prevq_w"] = w((ed, nh, 1, 1)); p["prevq_b"] = w((ed,))
    p["emb"] = jax.random.uniform(next(ki), (ne, ed), jnp.float32,
                                  minval=-1.0 / ne, maxval=1.0 / ne)
    p["dec_c1_w"] = w((nh, ed, 3, 3)); p["dec_c1_b"] = w((nh,))
    p["dec_res"] = res_layers()
    p["dec_t1_w"] = w((nh, nh // 2, 4, 4)); p["dec_t1_b"] = w((nh // 2,))   # ConvT (I,O,k,k)
    p["dec_t2_w"] = w((nh // 2, 3, 4, 4)); p["dec_t2_b"] = w((3,))          # ConvT (I,O,k,k)
    return p


def prepare_params(p):
    """One-time rearrangement of PyTorch-layout weights into kernel-ready tensors."""
    def concat_w(w):                     # (O, C, kh, kw) -> (O, kh*kw*C) bf16 (tap-major)
        O, C, kh, kw = w.shape
        return jnp.transpose(w, (0, 2, 3, 1)).reshape(O, kh * kw * C).astype(ACT_DTYPE)

    def bias_col(b):
        return jnp.asarray(b, jnp.float32).reshape(-1, 1)

    def s2d_w(w):                        # 4x4/s2 conv -> 2x2/s1 conv over s2d input
        O, C, _, _ = w.shape
        wr = w.reshape(O, C, 2, 2, 2, 2)                      # (o, c, di, rh, dj, rw)
        return jnp.transpose(wr, (0, 1, 3, 5, 2, 4)).reshape(O, C * 4, 2, 2)

    def convT_w(wt):                     # ConvT (I,O,4,4)/s2/p1 -> (4O, I, 3, 3) phase conv
        I, O = wt.shape[0], wt.shape[1]
        w_eq = jnp.zeros((2, 2, O, I, 3, 3), jnp.float32)
        for rh in range(2):
            for rw in range(2):
                for a in range(2):
                    dy, ky = a + rh, 3 - rh - 2 * a
                    for c in range(2):
                        dx, kx = c + rw, 3 - rw - 2 * c
                        w_eq = w_eq.at[rh, rw, :, :, dy, dx].set(wt[:, :, ky, kx].T)
        return w_eq.reshape(4 * O, I, 3, 3)

    def res_prep(layers):
        w3s = jnp.stack([concat_w(w3) for (w3, _) in layers])                # (nrl, nrh, 9*nh)
        w1s = jnp.stack([w1[:, :, 0, 0].astype(ACT_DTYPE) for (_, w1) in layers])  # (nrl, nh, nrh)
        return w3s, w1s

    q = {}
    w1p = jnp.pad(p["enc_c1_w"], ((0, 0), (0, 1), (0, 0), (0, 0)))   # 3 -> 4 input channels
    q["enc_c1"] = (concat_w(s2d_w(w1p)), bias_col(p["enc_c1_b"]))
    q["enc_c2"] = (concat_w(s2d_w(p["enc_c2_w"])), bias_col(p["enc_c2_b"]))
    q["enc_c3"] = (concat_w(p["enc_c3_w"]), bias_col(p["enc_c3_b"]))
    q["enc_res"] = res_prep(p["enc_res"])
    q["prevq"] = (p["prevq_w"][:, :, 0, 0].astype(ACT_DTYPE), bias_col(p["prevq_b"]))
    q["emb"] = p["emb"].astype(jnp.float32)
    q["emb_t"] = jnp.transpose(p["emb"]).astype(jnp.float32)
    q["dec_c1"] = (concat_w(p["dec_c1_w"]), bias_col(p["dec_c1_b"]))
    q["dec_res"] = res_prep(p["dec_res"])
    q["dec_t1"] = (concat_w(convT_w(p["dec_t1_w"])), bias_col(jnp.tile(p["dec_t1_b"], 4)))
    q["dec_t2"] = (concat_w(convT_w(p["dec_t2_w"])), bias_col(jnp.tile(p["dec_t2_b"], 4)))
    return q


# ---------------------------------------------------------------------------
# Full forward pass
# ---------------------------------------------------------------------------
def vqvae_forward(params, x_nchw, commitment_cost):
    q = params
    x = jnp.transpose(x_nchw, (1, 0, 2, 3)).astype(ACT_DTYPE)    # NCHW -> planar (C,B,H,W)
    x = jnp.pad(x, ((0, 1), (0, 0), (0, 0), (0, 0)))             # channel pad 3 -> 4

    # --- Encoder (strided 4x4/s2 convs as 2x2/s1 convs over space-to-depth inputs) ---
    h = conv_planar(space_to_depth2(x, pad=1), *q["enc_c1"], kh=2, kw=2, post_relu=True)
    h = conv_planar(space_to_depth2(h, pad=1), *q["enc_c2"], kh=2, kw=2, post_relu=True)

    # --- enc conv_3 + residual stack + pre-VQ 1x1 + VectorQuantizer: one fused kernel ---
    quant, loss, perplexity, geom = latent_encode_vq(h, q, commitment_cost)

    # --- dec conv_1 + residual stack + conv_trans_1 (+ReLU): one fused kernel ---
    y = latent_decode(quant, q, geom)                 # (4*(nh//2), B, H, W) phase groups

    # --- conv_trans_2: depth-to-space, 3x3 phase conv, depth-to-space ---
    h2 = depth_to_space2(y)                           # (nh//2, B, 2H, 2W)
    h2 = jnp.pad(h2, ((0, 0), (0, 0), (1, 1), (1, 1)))
    xr = depth_to_space2(conv_planar(h2, *q["dec_t2"], kh=3, kw=3))   # (3, B, 4H, 4W)

    x_recon = jnp.transpose(xr, (1, 0, 2, 3)).astype(jnp.float32)     # planar -> NCHW
    return loss, x_recon, perplexity


if __name__ == "__main__":
    num_hiddens = 32
    num_residual_layers = 2
    num_residual_hiddens = 8
    num_embeddings = 16
    embedding_dim = 8
    commitment_cost = 0.25

    key = jax.random.PRNGKey(0)
    kp, kx = jax.random.split(key)
    params_pt = init_params(kp, num_hiddens, num_residual_layers,
                            num_residual_hiddens, num_embeddings, embedding_dim)
    params = prepare_params(params_pt)                 # one-time weight rearrangement
    x = jax.random.normal(kx, (2, 3, 32, 32), dtype=jnp.float32)      # NCHW like PyTorch

    fwd = jax.jit(functools.partial(vqvae_forward, commitment_cost=commitment_cost))
    loss, x_recon, perplexity = fwd(params, x)
    jax.block_until_ready((loss, x_recon, perplexity))

    assert x_recon.shape == (2, 3, 32, 32), x_recon.shape
    assert loss.shape == () and perplexity.shape == ()
    print("KERNEL_OK")
</pallas_src>

<mosaic_0001>
module attributes {stable_mosaic.version = 11 : i64} {
  func.func @_conv_kernel(%arg0: memref<16x640xbf16, #tpu.memory_space<vmem>>, %arg1: memref<16x64xbf16, #tpu.memory_space<vmem>>, %arg2: memref<16x1xf32, #tpu.memory_space<vmem>>, %arg3: memref<16x640xbf16, #tpu.memory_space<vmem>>) attributes {dimension_semantics = [], scalar_prefetch = 0 : i64, scratch_operands = 0 : i64, tpu.core_type = #tpu.core_type<tc>} {
    %c0 = arith.constant 0 : index
    %c0_0 = arith.constant 0 : index
    %0 = vector.load %arg0[%c0, %c0_0] : memref<16x640xbf16, #tpu.memory_space<vmem>>, vector<16x640xbf16>
    %c0_1 = arith.constant 0 : index
    %c0_2 = arith.constant 0 : index
    %1 = vector.load %arg1[%c0_1, %c0_2] : memref<16x64xbf16, #tpu.memory_space<vmem>>, vector<16x64xbf16>
    %2 = vector.extract_strided_slice %0 {offsets = [0, 0], sizes = [16, 560], strides = [1, 1]} : vector<16x640xbf16> to vector<16x560xbf16>
    %3 = vector.extract_strided_slice %0 {offsets = [0, 1], sizes = [16, 560], strides = [1, 1]} : vector<16x640xbf16> to vector<16x560xbf16>
    %4 = vector.extract_strided_slice %0 {offsets = [0, 17], sizes = [16, 560], strides = [1, 1]} : vector<16x640xbf16> to vector<16x560xbf16>
    %5 = vector.extract_strided_slice %0 {offsets = [0, 18], sizes = [16, 560], strides = [1, 1]} : vector<16x640xbf16> to vector<16x560xbf16>
    %6 = tpu.concatenate %2, %3, %4, %5 in 0 : vector<16x560xbf16>, vector<16x560xbf16>, vector<16x560xbf16>, vector<16x560xbf16> -> vector<64x560xbf16>
    %cst = arith.constant dense<0.000000e+00> : vector<16x560xf32>
    %7 = tpu.matmul %1, %6, %cst {dimension_numbers = #tpu.dot_dimension_numbers<[1], [0], [0], [1], [0, 0, 1, 1], [], []>} : vector<16x64xbf16>, vector<64x560xbf16>, vector<16x560xf32> -> vector<16x560xf32>
    %c0_3 = arith.constant 0 : index
    %c0_4 = arith.constant 0 : index
    %8 = vector.load %arg2[%c0_3, %c0_4] : memref<16x1xf32, #tpu.memory_space<vmem>>, vector<16x1xf32>
    %9 = vector.broadcast %8 : vector<16x1xf32> to vector<16x560xf32>
    %10 = arith.addf %7, %9 : vector<16x560xf32>
    %cst_5 = arith.constant 0.000000e+00 : f32
    %11 = vector.broadcast %cst_5 : f32 to vector<16x560xf32>
    %12 = arith.maximumf %10, %11 : vector<16x560xf32>
    %13 = arith.truncf %12 : vector<16x560xf32> to vector<16x560xbf16>
    %c0_6 = arith.constant 0 : index
    %c0_7 = arith.constant 0 : index
    %14 = vector.load %arg3[%c0_6, %c0_7] : memref<16x640xbf16, #tpu.memory_space<vmem>>, vector<16x560xbf16>
    tpu.vector_store %arg3[%c0_6, %c0_7], %13 {strides = array<i32>} : memref<16x640xbf16, #tpu.memory_space<vmem>>, vector<16x560xbf16>,
    %cst_8 = arith.constant 0.000000e+00 : bf16
    %15 = vector.broadcast %cst_8 : bf16 to vector<16x80xbf16>
    %c0_9 = arith.constant 0 : index
    %c560 = arith.constant 560 : index
    %16 = vector.load %arg3[%c0_9, %c560] : memref<16x640xbf16, #tpu.memory_space<vmem>>, vector<16x80xbf16>
    tpu.vector_store %arg3[%c0_9, %c560], %15 {strides = array<i32>} : memref<16x640xbf16, #tpu.memory_space<vmem>>, vector<16x80xbf16>,
    return
  }
}

module attributes {stable_mosaic.version = 11 : i64} {
  func.func @_conv_kernel(%arg0: memref<64x256xbf16, #tpu.memory_space<vmem>>, %arg1: memref<32x256xbf16, #tpu.memory_space<vmem>>, %arg2: memref<32x1xf32, #tpu.memory_space<vmem>>, %arg3: memref<32x256xbf16, #tpu.memory_space<vmem>>) attributes {dimension_semantics = [], scalar_prefetch = 0 : i64, scratch_operands = 0 : i64, tpu.core_type = #tpu.core_type<tc>} {
    %c0 = arith.constant 0 : index
    %c0_0 = arith.constant 0 : index
    %0 = vector.load %arg0[%c0, %c0_0] : memref<64x256xbf16, #tpu.memory_space<vmem>>, vector<64x256xbf16>
    %c0_1 = arith.constant 0 : index
    %c0_2 = arith.constant 0 : index
    %1 = vector.load %arg1[%c0_1, %c0_2] : memref<32x256xbf16, #tpu.memory_space<vmem>>, vector<32x256xbf16>
    %2 = vector.extract_strided_slice %0 {offsets = [0, 0], sizes = [64, 152], strides = [1, 1]} : vector<64x256xbf16> to vector<64x152xbf16>
    %3 = vector.extract_strided_slice %0 {offsets = [0, 1], sizes = [64, 152], strides = [1, 1]} : vector<64x256xbf16> to vector<64x152xbf16>
    %4 = vector.extract_strided_slice %0 {offsets = [0, 9], sizes = [64, 152], strides = [1, 1]} : vector<64x256xbf16> to vector<64x152xbf16>
    %5 = vector.extract_strided_slice %0 {offsets = [0, 10], sizes = [64, 152], strides = [1, 1]} : vector<64x256xbf16> to vector<64x152xbf16>
    %6 = tpu.concatenate %2, %3, %4, %5 in 0 : vector<64x152xbf16>, vector<64x152xbf16>, vector<64x152xbf16>, vector<64x152xbf16> -> vector<256x152xbf16>
    %cst = arith.constant dense<0.000000e+00> : vector<32x152xf32>
    %7 = tpu.matmul %1, %6, %cst {dimension_numbers = #tpu.dot_dimension_numbers<[1], [0], [0], [1], [0, 0, 1, 1], [], []>} : vector<32x256xbf16>, vector<256x152xbf16>, vector<32x152xf32> -> vector<32x152xf32>
    %c0_3 = arith.constant 0 : index
    %c0_4 = arith.constant 0 : index
    %8 = vector.load %arg2[%c0_3, %c0_4] : memref<32x1xf32, #tpu.memory_space<vmem>>, vector<32x1xf32>
    %9 = vector.broadcast %8 : vector<32x1xf32> to vector<32x152xf32>
    %10 = arith.addf %7, %9 : vector<32x152xf32>
    %cst_5 = arith.constant 0.000000e+00 : f32
    %11 = vector.broadcast %cst_5 : f32 to vector<32x152xf32>
    %12 = arith.maximumf %10, %11 : vector<32x152xf32>
    %13 = arith.truncf %12 : vector<32x152xf32> to vector<32x152xbf16>
    %c0_6 = arith.constant 0 : index
    %c0_7 = arith.constant 0 : index
    %14 = vector.load %arg3[%c0_6, %c0_7] : memref<32x256xbf16, #tpu.memory_space<vmem>>, vector<32x152xbf16>
    tpu.vector_store %arg3[%c0_6, %c0_7], %13 {strides = array<i32>} : memref<32x256xbf16, #tpu.memory_space<vmem>>, vector<32x152xbf16>,
    %cst_8 = arith.constant 0.000000e+00 : bf16
    %15 = vector.broadcast %cst_8 : bf16 to vector<32x104xbf16>
    %c0_9 = arith.constant 0 : index
    %c152 = arith.constant 152 : index
    %16 = vector.load %arg3[%c0_9, %c152] : memref<32x256xbf16, #tpu.memory_space<vmem>>, vector<32x104xbf16>
    tpu.vector_store %arg3[%c0_9, %c152], %15 {strides = array<i32>} : memref<32x256xbf16, #tpu.memory_space<vmem>>, vector<32x104xbf16>,
    return
  }
}

module attributes {stable_mosaic.version = 11 : i64} {
  func.func @_enc_vq_kernel(%arg0: memref<32x256xbf16, #tpu.memory_space<vmem>>, %arg1: memref<1x256xf32, #tpu.memory_space<vmem>>, %arg2: memref<32x288xbf16, #tpu.memory_space<vmem>>, %arg3: memref<32x1xf32, #tpu.memory_space<vmem>>, %arg4: memref<2x8x288xbf16, #tpu.memory_space<vmem>>, %arg5: memref<2x32x8xbf16, #tpu.memory_space<vmem>>, %arg6: memref<8x32xbf16, #tpu.memory_space<vmem>>, %arg7: memref<8x1xf32, #tpu.memory_space<vmem>>, %arg8: memref<16x8xf32, #tpu.memory_space<vmem>>, %arg9: memref<8x16xf32, #tpu.memory_space<vmem>>, %arg10: memref<8x256xf32, #tpu.memory_space<vmem>>, %arg11: memref<1x1xf32, #tpu.memory_space<vmem>>, %arg12: memref<1x1xf32, #tpu.memory_space<vmem>>, %arg13: memref<32x256xbf16, #tpu.memory_space<vmem>>) attributes {dimension_semantics = [], scalar_prefetch = 0 : i64, scratch_operands = 1 : i64, tpu.core_type = #tpu.core_type<tc>} {
    %c0 = arith.constant 0 : index
    %c11 = arith.constant 11 : index
    %0 = vector.load %arg1[%c0, %c11] : memref<1x256xf32, #tpu.memory_space<vmem>>, vector<1x178xf32>
    %c0_0 = arith.constant 0 : index
    %c0_1 = arith.constant 0 : index
    %1 = vector.load %arg0[%c0_0, %c0_1] : memref<32x256xbf16, #tpu.memory_space<vmem>>, vector<32x256xbf16>
    %c0_2 = arith.constant 0 : index
    %c0_3 = arith.constant 0 : index
    %2 = vector.load %arg2[%c0_2, %c0_3] : memref<32x288xbf16, #tpu.memory_space<vmem>>, vector<32x288xbf16>
    %3 = vector.extract_strided_slice %1 {offsets = [0, 0], sizes = [32, 178], strides = [1, 1]} : vector<32x256xbf16> to vector<32x178xbf16>
    %4 = vector.extract_strided_slice %1 {offsets = [0, 1], sizes = [32, 178], strides = [1, 1]} : vector<32x256xbf16> to vector<32x178xbf16>
    %5 = vector.extract_strided_slice %1 {offsets = [0, 2], sizes = [32, 178], strides = [1, 1]} : vector<32x256xbf16> to vector<32x178xbf16>
    %6 = vector.extract_strided_slice %1 {offsets = [0, 10], sizes = [32, 178], strides = [1, 1]} : vector<32x256xbf16> to vector<32x178xbf16>
    %7 = vector.extract_strided_slice %1 {offsets = [0, 11], sizes = [32, 178], strides = [1, 1]} : vector<32x256xbf16> to vector<32x178xbf16>
    %8 = vector.extract_strided_slice %1 {offsets = [0, 12], sizes = [32, 178], strides = [1, 1]} : vector<32x256xbf16> to vector<32x178xbf16>
    %9 = vector.extract_strided_slice %1 {offsets = [0, 20], sizes = [32, 178], strides = [1, 1]} : vector<32x256xbf16> to vector<32x178xbf16>
    %10 = vector.extract_strided_slice %1 {offsets = [0, 21], sizes = [32, 178], strides = [1, 1]} : vector<32x256xbf16> to vector<32x178xbf16>
    %11 = vector.extract_strided_slice %1 {offsets = [0, 22], sizes = [32, 178], strides = [1, 1]} : vector<32x256xbf16> to vector<32x178xbf16>
    %12 = tpu.concatenate %3, %4, %5, %6, %7, %8, %9, %10, %11 in 0 : vector<32x178xbf16>, vector<32x178xbf16>, vector<32x178xbf16>, vector<32x178xbf16>, vector<32x178xbf16>, vector<32x178xbf16>, vector<32x178xbf16>, vector<32x178xbf16>, vector<32x178xbf16> -> vector<288x178xbf16>
    %cst = arith.constant dense<0.000000e+00> : vector<32x178xf32>
    %13 = tpu.matmul %2, %12, %cst {dimension_numbers = #tpu.dot_dimension_numbers<[1], [0], [0], [1], [0, 0, 1, 1], [], []>} : vector<32x288xbf16>, vector<288x178xbf16>, vector<32x178xf32> -> vector<32x178xf32>
    %c0_4 = arith.constant 0 : index
    %c0_5 = arith.constant 0 : index
    %14 = vector.load %arg3[%c0_4, %c0_5] : memref<32x1xf32, #tpu.memory_space<vmem>>, vector<32x1xf32>
    %15 = vector.broadcast %14 : vector<32x1xf32> to vector<32x178xf32>
    %16 = arith.addf %13, %15 : vector<32x178xf32>
    %cst_6 = arith.constant 0.000000e+00 : bf16
    %17 = vector.broadcast %cst_6 : bf16 to vector<32x256xbf16>
    %c0_7 = arith.constant 0 : index
    %c0_8 = arith.constant 0 : index
    %18 = vector.load %arg13[%c0_7, %c0_8] : memref<32x256xbf16, #tpu.memory_space<vmem>>, vector<32x256xbf16>
    tpu.vector_store %arg13[%c0_7, %c0_8], %17 {strides = array<i32>} : memref<32x256xbf16, #tpu.memory_space<vmem>>, vector<32x256xbf16>,
    %19 = vector.broadcast %0 : vector<1x178xf32> to vector<32x178xf32>
    %20 = arith.mulf %16, %19 : vector<32x178xf32>
    %21 = arith.truncf %20 : vector<32x178xf32> to vector<32x178xbf16>
    %c0_9 = arith.constant 0 : index
    %c11_10 = arith.constant 11 : index
    %22 = vector.load %arg13[%c0_9, %c11_10] : memref<32x256xbf16, #tpu.memory_space<vmem>>, vector<32x178xbf16>
    tpu.vector_store %arg13[%c0_9, %c11_10], %21 {strides = array<i32>} : memref<32x256xbf16, #tpu.memory_space<vmem>>, vector<32x178xbf16>,
    %c0_11 = arith.constant 0 : index
    %c0_12 = arith.constant 0 : index
    %23 = vector.load %arg13[%c0_11, %c0_12] : memref<32x256xbf16, #tpu.memory_space<vmem>>, vector<32x256xbf16>
    %cst_13 = arith.constant 0.000000e+00 : bf16
    %24 = vector.broadcast %cst_13 : bf16 to vector<32x256xbf16>
    %25 = arith.maximumf %23, %24 : vector<32x256xbf16>
    %c0_14 = arith.constant 0 : index
    %c0_15 = arith.constant 0 : index
    %c0_16 = arith.constant 0 : index
    %26 = vector.load %arg4[%c0_14, %c0_15, %c0_16] : memref<2x8x288xbf16, #tpu.memory_space<vmem>>, vector<1x8x288xbf16>
    %27 = vector.shape_cast %26 : vector<1x8x288xbf16> to vector<8x288xbf16>
    %28 = vector.extract_strided_slice %25 {offsets = [0, 0], sizes = [32, 178], strides = [1, 1]} : vector<32x256xbf16> to vector<32x178xbf16>
    %29 = vector.extract_strided_slice %25 {offsets = [0, 1], sizes = [32, 178], strides = [1, 1]} : vector<32x256xbf16> to vector<32x178xbf16>
    %30 = vector.extract_strided_slice %25 {offsets = [0, 2], sizes = [32, 178], strides = [1, 1]} : vector<32x256xbf16> to vector<32x178xbf16>
    %31 = vector.extract_strided_slice %25 {offsets = [0, 10], sizes = [32, 178], strides = [1, 1]} : vector<32x256xbf16> to vector<32x178xbf16>
    %32 = vector.extract_strided_slice %25 {offsets = [0, 11], sizes = [32, 178], strides = [1, 1]} : vector<32x256xbf16> to vector<32x178xbf16>
    %33 = vector.extract_strided_slice %25 {offsets = [0, 12], sizes = [32, 178], strides = [1, 1]} : vector<32x256xbf16> to vector<32x178xbf16>
    %34 = vector.extract_strided_slice %25 {offsets = [0, 20], sizes = [32, 178], strides = [1, 1]} : vector<32x256xbf16> to vector<32x178xbf16>
    %35 = vector.extract_strided_slice %25 {offsets = [0, 21], sizes = [32, 178], strides = [1, 1]} : vector<32x256xbf16> to vector<32x178xbf16>
    %36 = vector.extract_strided_slice %25 {offsets = [0, 22], sizes = [32, 178], strides = [1, 1]} : vector<32x256xbf16> to vector<32x178xbf16>
    %37 = tpu.concatenate %28, %29, %30, %31, %32, %33, %34, %35, %36 in 0 : vector<32x178xbf16>, vector<32x178xbf16>, vector<32x178xbf16>, vector<32x178xbf16>, vector<32x178xbf16>, vector<32x178xbf16>, vector<32x178xbf16>, vector<32x178xbf16>, vector<32x178xbf16> -> vector<288x178xbf16>
    %cst_17 = arith.constant dense<0.000000e+00> : vector<8x178xf32>
    %38 = tpu.matmul %27, %37, %cst_17 {dimension_numbers = #tpu.dot_dimension_numbers<[1], [0], [0], [1], [0, 0, 1, 1], [], []>} : vector<8x288xbf16>, vector<288x178xbf16>, vector<8x178xf32> -> vector<8x178xf32>
    %cst_18 = arith.constant 0.000000e+00 : f32
    %39 = vector.broadcast %cst_18 : f32 to vector<8x178xf32>
    %40 = arith.maximumf %38, %39 : vector<8x178xf32>
    %41 = arith.truncf %40 : vector<8x178xf32> to vector<8x178xbf16>
    %c0_19 = arith.constant 0 : index
    %c0_20 = arith.constant 0 : index
    %c0_21 = arith.constant 0 : index
    %42 = vector.load %arg5[%c0_19, %c0_20, %c0_21] : memref<2x32x8xbf16, #tpu.memory_space<vmem>>, vector<1x32x8xbf16>
    %43 = vector.shape_cast %42 : vector<1x32x8xbf16> to vector<32x8xbf16>
    %cst_22 = arith.constant dense<0.000000e+00> : vector<32x178xf32>
    %44 = tpu.matmul %43, %41, %cst_22 {dimension_numbers = #tpu.dot_dimension_numbers<[1], [0], [0], [1], [0, 0, 1, 1], [], []>} : vector<32x8xbf16>, vector<8x178xbf16>, vector<32x178xf32> -> vector<32x178xf32>
    %45 = vector.extract_strided_slice %23 {offsets = [0, 11], sizes = [32, 178], strides = [1, 1]} : vector<32x256xbf16> to vector<32x178xbf16>
    %46 = arith.extf %45 : vector<32x178xbf16> to vector<32x178xf32>
    %47 = arith.addf %46, %44 : vector<32x178xf32>
    %48 = vector.broadcast %0 : vector<1x178xf32> to vector<32x178xf32>
    %49 = arith.mulf %47, %48 : vector<32x178xf32>
    %50 = arith.truncf %49 : vector<32x178xf32> to vector<32x178xbf16>
    %c0_23 = arith.constant 0 : index
    %c11_24 = arith.constant 11 : index
    %51 = vector.load %arg13[%c0_23, %c11_24] : memref<32x256xbf16, #tpu.memory_space<vmem>>, vector<32x178xbf16>
    tpu.vector_store %arg13[%c0_23, %c11_24], %50 {strides = array<i32>} : memref<32x256xbf16, #tpu.memory_space<vmem>>, vector<32x178xbf16>,
    %c0_25 = arith.constant 0 : index
    %c0_26 = arith.constant 0 : index
    %52 = vector.load %arg13[%c0_25, %c0_26] : memref<32x256xbf16, #tpu.memory_space<vmem>>, vector<32x256xbf16>
    %cst_27 = arith.constant 0.000000e+00 : bf16
    %53 = vector.broadcast %cst_27 : bf16 to vector<32x256xbf16>
    %54 = arith.maximumf %52, %53 : vector<32x256xbf16>
    %c1 = arith.constant 1 : index
    %c0_28 = arith.constant 0 : index
    %c0_29 = arith.constant 0 : index
    %55 = vector.load %arg4[%c1, %c0_28, %c0_29] : memref<2x8x288xbf16, #tpu.memory_space<vmem>>, vector<1x8x288xbf16>
    %56 = vector.shape_cast %55 : vector<1x8x288xbf16> to vector<8x288xbf16>
    %57 = vector.extract_strided_slice %54 {offsets = [0, 0], sizes = [32, 178], strides = [1, 1]} : vector<32x256xbf16> to vector<32x178xbf16>
    %58 = vector.extract_strided_slice %54 {offsets = [0, 1], sizes = [32, 178], strides = [1, 1]} : vector<32x256xbf16> to vector<32x178xbf16>
    %59 = vector.extract_strided_slice %54 {offsets = [0, 2], sizes = [32, 178], strides = [1, 1]} : vector<32x256xbf16> to vector<32x178xbf16>
    %60 = vector.extract_strided_slice %54 {offsets = [0, 10], sizes = [32, 178], strides = [1, 1]} : vector<32x256xbf16> to vector<32x178xbf16>
    %61 = vector.extract_strided_slice %54 {offsets = [0, 11], sizes = [32, 178], strides = [1, 1]} : vector<32x256xbf16> to vector<32x178xbf16>
    %62 = vector.extract_strided_slice %54 {offsets = [0, 12], sizes = [32, 178], strides = [1, 1]} : vector<32x256xbf16> to vector<32x178xbf16>
    %63 = vector.extract_strided_slice %54 {offsets = [0, 20], sizes = [32, 178], strides = [1, 1]} : vector<32x256xbf16> to vector<32x178xbf16>
    %64 = vector.extract_strided_slice %54 {offsets = [0, 21], sizes = [32, 178], strides = [1, 1]} : vector<32x256xbf16> to vector<32x178xbf16>
    %65 = vector.extract_strided_slice %54 {offsets = [0, 22], sizes = [32, 178], strides = [1, 1]} : vector<32x256xbf16> to vector<32x178xbf16>
    %66 = tpu.concatenate %57, %58, %59, %60, %61, %62, %63, %64, %65 in 0 : vector<32x178xbf16>, vector<32x178xbf16>, vector<32x178xbf16>, vector<32x178xbf16>, vector<32x178xbf16>, vector<32x178xbf16>, vector<32x178xbf16>, vector<32x178xbf16>, vector<32x178xbf16> -> vector<288x178xbf16>
    %cst_30 = arith.constant dense<0.000000e+00> : vector<8x178xf32>
    %67 = tpu.matmul %56, %66, %cst_30 {dimension_numbers = #tpu.dot_dimension_numbers<[1], [0], [0], [1], [0, 0, 1, 1], [], []>} : vector<8x288xbf16>, vector<288x178xbf16>, vector<8x178xf32> -> vector<8x178xf32>
    %cst_31 = arith.constant 0.000000e+00 : f32
    %68 = vector.broadcast %cst_31 : f32 to vector<8x178xf32>
    %69 = arith.maximumf %67, %68 : vector<8x178xf32>
    %70 = arith.truncf %69 : vector<8x178xf32> to vector<8x178xbf16>
    %c1_32 = arith.constant 1 : index
    %c0_33 = arith.constant 0 : index
    %c0_34 = arith.constant 0 : index
    %71 = vector.load %arg5[%c1_32, %c0_33, %c0_34] : memref<2x32x8xbf16, #tpu.memory_space<vmem>>, vector<1x32x8xbf16>
    %72 = vector.shape_cast %71 : vector<1x32x8xbf16> to vector<32x8xbf16>
    %cst_35 = arith.constant dense<0.000000e+00> : vector<32x178xf32>
    %73 = tpu.matmul %72, %70, %cst_35 {dimension_numbers = #tpu.dot_dimension_numbers<[1], [0], [0], [1], [0, 0, 1, 1], [], []>} : vector<32x8xbf16>, vector<8x178xbf16>, vector<32x178xf32> -> vector<32x178xf32>
    %74 = vector.extract_strided_slice %52 {offsets = [0, 11], sizes = [32, 178], strides = [1, 1]} : vector<32x256xbf16> to vector<32x178xbf16>
    %75 = arith.extf %74 : vector<32x178xbf16> to vector<32x178xf32>
    %76 = arith.addf %75, %73 : vector<32x178xf32>
    %cst_36 = arith.constant 0.000000e+00 : f32
    %77 = vector.broadcast %cst_36 : f32 to vector<32x178xf32>
    %78 = arith.maximumf %76, %77 : vector<32x178xf32>
    %c0_37 = arith.constant 0 : index
    %c0_38 = arith.constant 0 : index
    %79 = vector.load %arg6[%c0_37, %c0_38] : memref<8x32xbf16, #tpu.memory_space<vmem>>, vector<8x32xbf16>
    %80 = arith.truncf %78 : vector<32x178xf32> to vector<32x178xbf16>
    %cst_39 = arith.constant dense<0.000000e+00> : vector<8x178xf32>
    %81 = tpu.matmul %79, %80, %cst_39 {dimension_numbers = #tpu.dot_dimension_numbers<[1], [0], [0], [1], [0, 0, 1, 1], [], []>} : vector<8x32xbf16>, vector<32x178xbf16>, vector<8x178xf32> -> vector<8x178xf32>
    %c0_40 = arith.constant 0 : index
    %c0_41 = arith.constant 0 : index
    %82 = vector.load %arg7[%c0_40, %c0_41] : memref<8x1xf32, #tpu.memory_space<vmem>>, vector<8x1xf32>
    %83 = vector.broadcast %82 : vector<8x1xf32> to vector<8x178xf32>
    %84 = arith.addf %81, %83 : vector<8x178xf32>
    %c0_42 = arith.constant 0 : index
    %c0_43 = arith.constant 0 : index
    %85 = vector.load %arg8[%c0_42, %c0_43] : memref<16x8xf32, #tpu.memory_space<vmem>>, vector<16x8xf32>
    %c0_44 = arith.constant 0 : index
    %c0_45 = arith.constant 0 : index
    %86 = vector.load %arg9[%c0_44, %c0_45] : memref<8x16xf32, #tpu.memory_space<vmem>>, vector<8x16xf32>
    %87 = arith.mulf %84, %84 : vector<8x178xf32>
    %cst_46 = arith.constant dense<0.000000e+00> : vector<178xf32>
    %88 = vector.multi_reduction <add>, %87, %cst_46 [0] : vector<8x178xf32> to vector<178xf32>
    %89 = vector.shape_cast %88 : vector<178xf32> to vector<1x178xf32>
    %90 = arith.mulf %85, %85 : vector<16x8xf32>
    %cst_47 = arith.constant dense<0.000000e+00> : vector<16xf32>
    %91 = vector.multi_reduction <add>, %90, %cst_47 [1] : vector<16x8xf32> to vector<16xf32>
    %92 = vector.shape_cast %91 : vector<16xf32> to vector<16x1xf32>
    %cst_48 = arith.constant dense<0.000000e+00> : vector<16x178xf32>
    %93 = tpu.matmul %85, %84, %cst_48 {dimension_numbers = #tpu.dot_dimension_numbers<[1], [0], [0], [1], [0, 0, 1, 1], [], []>} : vector<16x8xf32>, vector<8x178xf32>, vector<16x178xf32> -> vector<16x178xf32>
    %94 = vector.broadcast %89 : vector<1x178xf32> to vector<16x178xf32>
    %95 = vector.broadcast %92 : vector<16x1xf32> to vector<16x178xf32>
    %96 = arith.addf %94, %95 : vector<16x178xf32>
    %cst_49 = arith.constant 2.000000e+00 : f32
    %97 = vector.broadcast %cst_49 : f32 to vector<16x178xf32>
    %98 = arith.mulf %97, %93 : vector<16x178xf32>
    %99 = arith.subf %96, %98 : vector<16x178xf32>
    %cst_50 = arith.constant dense<0x7F800000> : vector<178xf32>
    %100 = vector.multi_reduction <minimumf>, %99, %cst_50 [0] : vector<16x178xf32> to vector<178xf32>
    %101 = vector.shape_cast %100 : vector<178xf32> to vector<1x178xf32>
    %102 = tpu.iota {dimensions = array<i32: 0>} : vector<16x178xi32>
    %103 = vector.broadcast %101 : vector<1x178xf32> to vector<16x178xf32>
    %104 = arith.cmpf ole, %99, %103 : vector<16x178xf32>
    %c16_i32 = arith.constant 16 : i32
    %105 = vector.broadcast %c16_i32 : i32 to vector<16x178xi32>
    %106 = arith.select %104, %102, %105 : vector<16x178xi1>, vector<16x178xi32>
    %cst_51 = arith.constant dense<2147483647> : vector<178xi32>
    %107 = vector.multi_reduction <minsi>, %106, %cst_51 [0] : vector<16x178xi32> to vector<178xi32>
    %108 = vector.shape_cast %107 : vector<178xi32> to vector<1x178xi32>
    %109 = vector.broadcast %108 : vector<1x178xi32> to vector<16x178xi32>
    %110 = arith.cmpi eq, %102, %109 : vector<16x178xi32>
    %111 = arith.extui %110 : vector<16x178xi1> to vector<16x178xi32>
    %112 = arith.sitofp %111 : vector<16x178xi32> to vector<16x178xf32>
    %cst_52 = arith.constant dense<0.000000e+00> : vector<8x178xf32>
    %113 = tpu.matmul %86, %112, %cst_52 {dimension_numbers = #tpu.dot_dimension_numbers<[1], [0], [0], [1], [0, 0, 1, 1], [], []>} : vector<8x16xf32>, vector<16x178xf32>, vector<8x178xf32> -> vector<8x178xf32>
    %114 = arith.subf %113, %84 : vector<8x178xf32>
    %115 = arith.subf %113, %84 : vector<8x178xf32>
    %116 = arith.mulf %114, %115 : vector<8x178xf32>
    %117 = vector.broadcast %0 : vector<1x178xf32> to vector<8x178xf32>
    %118 = arith.mulf %116, %117 : vector<8x178xf32>
    %cst_53 = arith.constant dense<0.000000e+00> : vector<8xf32>
    %119 = vector.multi_reduction <add>, %118, %cst_53 [1] : vector<8x178xf32> to vector<8xf32>
    %120 = vector.shape_cast %119 : vector<8xf32> to vector<8x1xf32>
    %cst_54 = arith.constant dense<0.000000e+00> : vector<1xf32>
    %121 = vector.multi_reduction <add>, %120, %cst_54 [0] : vector<8x1xf32> to vector<1xf32>
    %122 = vector.shape_cast %121 : vector<1xf32> to vector<1x1xf32>
    %cst_55 = arith.constant 1.024000e+03 : f32
    %123 = vector.broadcast %cst_55 : f32 to vector<1x1xf32>
    %124 = arith.divf %122, %123 : vector<1x1xf32>
    %cst_56 = arith.constant 1.250000e+00 : f32
    %125 = vector.broadcast %cst_56 : f32 to vector<1x1xf32>
    %126 = arith.mulf %125, %124 : vector<1x1xf32>
    %c0_57 = arith.constant 0 : index
    %c0_58 = arith.constant 0 : index
    %127 = vector.load %arg11[%c0_57, %c0_58] : memref<1x1xf32, #tpu.memory_space<vmem>>, vector<1x1xf32>
    tpu.vector_store %arg11[%c0_57, %c0_58], %126 {strides = array<i32>} : memref<1x1xf32, #tpu.memory_space<vmem>>, vector<1x1xf32>,
    %128 = vector.broadcast %0 : vector<1x178xf32> to vector<16x178xf32>
    %129 = arith.mulf %112, %128 : vector<16x178xf32>
    %cst_59 = arith.constant dense<0.000000e+00> : vector<16xf32>
    %130 = vector.multi_reduction <add>, %129, %cst_59 [1] : vector<16x178xf32> to vector<16xf32>
    %131 = vector.shape_cast %130 : vector<16xf32> to vector<16x1xf32>
    %cst_60 = arith.constant 1.280000e+02 : f32
    %132 = vector.broadcast %cst_60 : f32 to vector<16x1xf32>
    %133 = arith.divf %131, %132 : vector<16x1xf32>
    %cst_61 = arith.constant 1.000000e-10 : f32
    %134 = vector.broadcast %cst_61 : f32 to vector<16x1xf32>
    %135 = arith.addf %133, %134 : vector<16x1xf32>
    %136 = math.log %135 : vector<16x1xf32>
    %137 = arith.mulf %133, %136 : vector<16x1xf32>
    %cst_62 = arith.constant dense<0.000000e+00> : vector<1xf32>
    %138 = vector.multi_reduction <add>, %137, %cst_62 [0] : vector<16x1xf32> to vector<1xf32>
    %139 = vector.shape_cast %138 : vector<1xf32> to vector<1x1xf32>
    %cst_63 = arith.constant 0.000000e+00 : f32
    %140 = vector.broadcast %cst_63 : f32 to vector<1x1xf32>
    %141 = arith.subf %140, %139 : vector<1x1xf32>
    %142 = math.exp %141 : vector<1x1xf32>
    %c0_64 = arith.constant 0 : index
    %c0_65 = arith.constant 0 : index
    %143 = vector.load %arg12[%c0_64, %c0_65] : memref<1x1xf32, #tpu.memory_space<vmem>>, vector<1x1xf32>
    tpu.vector_store %arg12[%c0_64, %c0_65], %142 {strides = array<i32>} : memref<1x1xf32, #tpu.memory_space<vmem>>, vector<1x1xf32>,
    %cst_66 = arith.constant 0.000000e+00 : f32
    %144 = vector.broadcast %cst_66 : f32 to vector<8x256xf32>
    %c0_67 = arith.constant 0 : index
    %c0_68 = arith.constant 0 : index
    %145 = vector.load %arg10[%c0_67, %c0_68] : memref<8x256xf32, #tpu.memory_space<vmem>>, vector<8x256xf32>
    tpu.vector_store %arg10[%c0_67, %c0_68], %144 {strides = array<i32>} : memref<8x256xf32, #tpu.memory_space<vmem>>, vector<8x256xf32>,
    %146 = vector.broadcast %0 : vector<1x178xf32> to vector<8x178xf32>
    %147 = arith.mulf %113, %146 : vector<8x178xf32>
    %c0_69 = arith.constant 0 : index
    %c11_70 = arith.constant 11 : index
    %148 = vector.load %arg10[%c0_69, %c11_70] : memref<8x256xf32, #tpu.memory_space<vmem>>, vector<8x178xf32>
    tpu.vector_store %arg10[%c0_69, %c11_70], %147 {strides = array<i32>} : memref<8x256xf32, #tpu.memory_space<vmem>>, vector<8x178xf32>,
    return
  }
}

module attributes {stable_mosaic.version = 11 : i64} {
  func.func @_dec_kernel(%arg0: memref<8x256xf32, #tpu.memory_space<vmem>>, %arg1: memref<1x256xf32, #tpu.memory_space<vmem>>, %arg2: memref<32x72xbf16, #tpu.memory_space<vmem>>, %arg3: memref<32x1xf32, #tpu.memory_space<vmem>>, %arg4: memref<2x8x288xbf16, #tpu.memory_space<vmem>>, %arg5: memref<2x32x8xbf16, #tpu.memory_space<vmem>>, %arg6: memref<64x288xbf16, #tpu.memory_space<vmem>>, %arg7: memref<64x1xf32, #tpu.memory_space<vmem>>, %arg8: memref<64x256xbf16, #tpu.memory_space<vmem>>, %arg9: memref<32x256xbf16, #tpu.memory_space<vmem>>) attributes {dimension_semantics = [], scalar_prefetch = 0 : i64, scratch_operands = 1 : i64, tpu.core_type = #tpu.core_type<tc>} {
    %c0 = arith.constant 0 : index
    %c11 = arith.constant 11 : index
    %0 = vector.load %arg1[%c0, %c11] : memref<1x256xf32, #tpu.memory_space<vmem>>, vector<1x178xf32>
    %c0_0 = arith.constant 0 : index
    %c0_1 = arith.constant 0 : index
    %1 = vector.load %arg0[%c0_0, %c0_1] : memref<8x256xf32, #tpu.memory_space<vmem>>, vector<8x256xf32>
    %c0_2 = arith.constant 0 : index
    %c0_3 = arith.constant 0 : index
    %2 = vector.load %arg2[%c0_2, %c0_3] : memref<32x72xbf16, #tpu.memory_space<vmem>>, vector<32x72xbf16>
    %3 = vector.extract_strided_slice %1 {offsets = [0, 0], sizes = [8, 178], strides = [1, 1]} : vector<8x256xf32> to vector<8x178xf32>
    %4 = vector.extract_strided_slice %1 {offsets = [0, 1], sizes = [8, 178], strides = [1, 1]} : vector<8x256xf32> to vector<8x178xf32>
    %5 = vector.extract_strided_slice %1 {offsets = [0, 2], sizes = [8, 178], strides = [1, 1]} : vector<8x256xf32> to vector<8x178xf32>
    %6 = vector.extract_strided_slice %1 {offsets = [0, 10], sizes = [8, 178], strides = [1, 1]} : vector<8x256xf32> to vector<8x178xf32>
    %7 = vector.extract_strided_slice %1 {offsets = [0, 11], sizes = [8, 178], strides = [1, 1]} : vector<8x256xf32> to vector<8x178xf32>
    %8 = vector.extract_strided_slice %1 {offsets = [0, 12], sizes = [8, 178], strides = [1, 1]} : vector<8x256xf32> to vector<8x178xf32>
    %9 = vector.extract_strided_slice %1 {offsets = [0, 20], sizes = [8, 178], strides = [1, 1]} : vector<8x256xf32> to vector<8x178xf32>
    %10 = vector.extract_strided_slice %1 {offsets = [0, 21], sizes = [8, 178], strides = [1, 1]} : vector<8x256xf32> to vector<8x178xf32>
    %11 = vector.extract_strided_slice %1 {offsets = [0, 22], sizes = [8, 178], strides = [1, 1]} : vector<8x256xf32> to vector<8x178xf32>
    %12 = tpu.concatenate %3, %4, %5, %6, %7, %8, %9, %10, %11 in 0 : vector<8x178xf32>, vector<8x178xf32>, vector<8x178xf32>, vector<8x178xf32>, vector<8x178xf32>, vector<8x178xf32>, vector<8x178xf32>, vector<8x178xf32>, vector<8x178xf32> -> vector<72x178xf32>
    %13 = arith.truncf %12 : vector<72x178xf32> to vector<72x178xbf16>
    %cst = arith.constant dense<0.000000e+00> : vector<32x178xf32>
    %14 = tpu.matmul %2, %13, %cst {dimension_numbers = #tpu.dot_dimension_numbers<[1], [0], [0], [1], [0, 0, 1, 1], [], []>} : vector<32x72xbf16>, vector<72x178xbf16>, vector<32x178xf32> -> vector<32x178xf32>
    %c0_4 = arith.constant 0 : index
    %c0_5 = arith.constant 0 : index
    %15 = vector.load %arg3[%c0_4, %c0_5] : memref<32x1xf32, #tpu.memory_space<vmem>>, vector<32x1xf32>
    %16 = vector.broadcast %15 : vector<32x1xf32> to vector<32x178xf32>
    %17 = arith.addf %14, %16 : vector<32x178xf32>
    %cst_6 = arith.constant 0.000000e+00 : bf16
    %18 = vector.broadcast %cst_6 : bf16 to vector<32x256xbf16>
    %c0_7 = arith.constant 0 : index
    %c0_8 = arith.constant 0 : index
    %19 = vector.load %arg9[%c0_7, %c0_8] : memref<32x256xbf16, #tpu.memory_space<vmem>>, vector<32x256xbf16>
    tpu.vector_store %arg9[%c0_7, %c0_8], %18 {strides = array<i32>} : memref<32x256xbf16, #tpu.memory_space<vmem>>, vector<32x256xbf16>,
    %20 = vector.broadcast %0 : vector<1x178xf32> to vector<32x178xf32>
    %21 = arith.mulf %17, %20 : vector<32x178xf32>
    %22 = arith.truncf %21 : vector<32x178xf32> to vector<32x178xbf16>
    %c0_9 = arith.constant 0 : index
    %c11_10 = arith.constant 11 : index
    %23 = vector.load %arg9[%c0_9, %c11_10] : memref<32x256xbf16, #tpu.memory_space<vmem>>, vector<32x178xbf16>
    tpu.vector_store %arg9[%c0_9, %c11_10], %22 {strides = array<i32>} : memref<32x256xbf16, #tpu.memory_space<vmem>>, vector<32x178xbf16>,
    %c0_11 = arith.constant 0 : index
    %c0_12 = arith.constant 0 : index
    %24 = vector.load %arg9[%c0_11, %c0_12] : memref<32x256xbf16, #tpu.memory_space<vmem>>, vector<32x256xbf16>
    %cst_13 = arith.constant 0.000000e+00 : bf16
    %25 = vector.broadcast %cst_13 : bf16 to vector<32x256xbf16>
    %26 = arith.maximumf %24, %25 : vector<32x256xbf16>
    %c0_14 = arith.constant 0 : index
    %c0_15 = arith.constant 0 : index
    %c0_16 = arith.constant 0 : index
    %27 = vector.load %arg4[%c0_14, %c0_15, %c0_16] : memref<2x8x288xbf16, #tpu.memory_space<vmem>>, vector<1x8x288xbf16>
    %28 = vector.shape_cast %27 : vector<1x8x288xbf16> to vector<8x288xbf16>
    %29 = vector.extract_strided_slice %26 {offsets = [0, 0], sizes = [32, 178], strides = [1, 1]} : vector<32x256xbf16> to vector<32x178xbf16>
    %30 = vector.extract_strided_slice %26 {offsets = [0, 1], sizes = [32, 178], strides = [1, 1]} : vector<32x256xbf16> to vector<32x178xbf16>
    %31 = vector.extract_strided_slice %26 {offsets = [0, 2], sizes = [32, 178], strides = [1, 1]} : vector<32x256xbf16> to vector<32x178xbf16>
    %32 = vector.extract_strided_slice %26 {offsets = [0, 10], sizes = [32, 178], strides = [1, 1]} : vector<32x256xbf16> to vector<32x178xbf16>
    %33 = vector.extract_strided_slice %26 {offsets = [0, 11], sizes = [32, 178], strides = [1, 1]} : vector<32x256xbf16> to vector<32x178xbf16>
    %34 = vector.extract_strided_slice %26 {offsets = [0, 12], sizes = [32, 178], strides = [1, 1]} : vector<32x256xbf16> to vector<32x178xbf16>
    %35 = vector.extract_strided_slice %26 {offsets = [0, 20], sizes = [32, 178], strides = [1, 1]} : vector<32x256xbf16> to vector<32x178xbf16>
    %36 = vector.extract_strided_slice %26 {offsets = [0, 21], sizes = [32, 178], strides = [1, 1]} : vector<32x256xbf16> to vector<32x178xbf16>
    %37 = vector.extract_strided_slice %26 {offsets = [0, 22], sizes = [32, 178], strides = [1, 1]} : vector<32x256xbf16> to vector<32x178xbf16>
    %38 = tpu.concatenate %29, %30, %31, %32, %33, %34, %35, %36, %37 in 0 : vector<32x178xbf16>, vector<32x178xbf16>, vector<32x178xbf16>, vector<32x178xbf16>, vector<32x178xbf16>, vector<32x178xbf16>, vector<32x178xbf16>, vector<32x178xbf16>, vector<32x178xbf16> -> vector<288x178xbf16>
    %cst_17 = arith.constant dense<0.000000e+00> : vector<8x178xf32>
    %39 = tpu.matmul %28, %38, %cst_17 {dimension_numbers = #tpu.dot_dimension_numbers<[1], [0], [0], [1], [0, 0, 1, 1], [], []>} : vector<8x288xbf16>, vector<288x178xbf16>, vector<8x178xf32> -> vector<8x178xf32>
    %cst_18 = arith.constant 0.000000e+00 : f32
    %40 = vector.broadcast %cst_18 : f32 to vector<8x178xf32>
    %41 = arith.maximumf %39, %40 : vector<8x178xf32>
    %42 = arith.truncf %41 : vector<8x178xf32> to vector<8x178xbf16>
    %c0_19 = arith.constant 0 : index
    %c0_20 = arith.constant 0 : index
    %c0_21 = arith.constant 0 : index
    %43 = vector.load %arg5[%c0_19, %c0_20, %c0_21] : memref<2x32x8xbf16, #tpu.memory_space<vmem>>, vector<1x32x8xbf16>
    %44 = vector.shape_cast %43 : vector<1x32x8xbf16> to vector<32x8xbf16>
    %cst_22 = arith.constant dense<0.000000e+00> : vector<32x178xf32>
    %45 = tpu.matmul %44, %42, %cst_22 {dimension_numbers = #tpu.dot_dimension_numbers<[1], [0], [0], [1], [0, 0, 1, 1], [], []>} : vector<32x8xbf16>, vector<8x178xbf16>, vector<32x178xf32> -> vector<32x178xf32>
    %46 = vector.extract_strided_slice %24 {offsets = [0, 11], sizes = [32, 178], strides = [1, 1]} : vector<32x256xbf16> to vector<32x178xbf16>
    %47 = arith.extf %46 : vector<32x178xbf16> to vector<32x178xf32>
    %48 = arith.addf %47, %45 : vector<32x178xf32>
    %49 = vector.broadcast %0 : vector<1x178xf32> to vector<32x178xf32>
    %50 = arith.mulf %48, %49 : vector<32x178xf32>
    %51 = arith.truncf %50 : vector<32x178xf32> to vector<32x178xbf16>
    %c0_23 = arith.constant 0 : index
    %c11_24 = arith.constant 11 : index
    %52 = vector.load %arg9[%c0_23, %c11_24] : memref<32x256xbf16, #tpu.memory_space<vmem>>, vector<32x178xbf16>
    tpu.vector_store %arg9[%c0_23, %c11_24], %51 {strides = array<i32>} : memref<32x256xbf16, #tpu.memory_space<vmem>>, vector<32x178xbf16>,
    %c0_25 = arith.constant 0 : index
    %c0_26 = arith.constant 0 : index
    %53 = vector.load %arg9[%c0_25, %c0_26] : memref<32x256xbf16, #tpu.memory_space<vmem>>, vector<32x256xbf16>
    %cst_27 = arith.constant 0.000000e+00 : bf16
    %54 = vector.broadcast %cst_27 : bf16 to vector<32x256xbf16>
    %55 = arith.maximumf %53, %54 : vector<32x256xbf16>
    %c1 = arith.constant 1 : index
    %c0_28 = arith.constant 0 : index
    %c0_29 = arith.constant 0 : index
    %56 = vector.load %arg4[%c1, %c0_28, %c0_29] : memref<2x8x288xbf16, #tpu.memory_space<vmem>>, vector<1x8x288xbf16>
    %57 = vector.shape_cast %56 : vector<1x8x288xbf16> to vector<8x288xbf16>
    %58 = vector.extract_strided_slice %55 {offsets = [0, 0], sizes = [32, 178], strides = [1, 1]} : vector<32x256xbf16> to vector<32x178xbf16>
    %59 = vector.extract_strided_slice %55 {offsets = [0, 1], sizes = [32, 178], strides = [1, 1]} : vector<32x256xbf16> to vector<32x178xbf16>
    %60 = vector.extract_strided_slice %55 {offsets = [0, 2], sizes = [32, 178], strides = [1, 1]} : vector<32x256xbf16> to vector<32x178xbf16>
    %61 = vector.extract_strided_slice %55 {offsets = [0, 10], sizes = [32, 178], strides = [1, 1]} : vector<32x256xbf16> to vector<32x178xbf16>
    %62 = vector.extract_strided_slice %55 {offsets = [0, 11], sizes = [32, 178], strides = [1, 1]} : vector<32x256xbf16> to vector<32x178xbf16>
    %63 = vector.extract_strided_slice %55 {offsets = [0, 12], sizes = [32, 178], strides = [1, 1]} : vector<32x256xbf16> to vector<32x178xbf16>
    %64 = vector.extract_strided_slice %55 {offsets = [0, 20], sizes = [32, 178], strides = [1, 1]} : vector<32x256xbf16> to vector<32x178xbf16>
    %65 = vector.extract_strided_slice %55 {offsets = [0, 21], sizes = [32, 178], strides = [1, 1]} : vector<32x256xbf16> to vector<32x178xbf16>
    %66 = vector.extract_strided_slice %55 {offsets = [0, 22], sizes = [32, 178], strides = [1, 1]} : vector<32x256xbf16> to vector<32x178xbf16>
    %67 = tpu.concatenate %58, %59, %60, %61, %62, %63, %64, %65, %66 in 0 : vector<32x178xbf16>, vector<32x178xbf16>, vector<32x178xbf16>, vector<32x178xbf16>, vector<32x178xbf16>, vector<32x178xbf16>, vector<32x178xbf16>, vector<32x178xbf16>, vector<32x178xbf16> -> vector<288x178xbf16>
    %cst_30 = arith.constant dense<0.000000e+00> : vector<8x178xf32>
    %68 = tpu.matmul %57, %67, %cst_30 {dimension_numbers = #tpu.dot_dimension_numbers<[1], [0], [0], [1], [0, 0, 1, 1], [], []>} : vector<8x288xbf16>, vector<288x178xbf16>, vector<8x178xf32> -> vector<8x178xf32>
    %cst_31 = arith.constant 0.000000e+00 : f32
    %69 = vector.broadcast %cst_31 : f32 to vector<8x178xf32>
    %70 = arith.maximumf %68, %69 : vector<8x178xf32>
    %71 = arith.truncf %70 : vector<8x178xf32> to vector<8x178xbf16>
    %c1_32 = arith.constant 1 : index
    %c0_33 = arith.constant 0 : index
    %c0_34 = arith.constant 0 : index
    %72 = vector.load %arg5[%c1_32, %c0_33, %c0_34] : memref<2x32x8xbf16, #tpu.memory_space<vmem>>, vector<1x32x8xbf16>
    %73 = vector.shape_cast %72 : vector<1x32x8xbf16> to vector<32x8xbf16>
    %cst_35 = arith.constant dense<0.000000e+00> : vector<32x178xf32>
    %74 = tpu.matmul %73, %71, %cst_35 {dimension_numbers = #tpu.dot_dimension_numbers<[1], [0], [0], [1], [0, 0, 1, 1], [], []>} : vector<32x8xbf16>, vector<8x178xbf16>, vector<32x178xf32> -> vector<32x178xf32>
    %75 = vector.extract_strided_slice %53 {offsets = [0, 11], sizes = [32, 178], strides = [1, 1]} : vector<32x256xbf16> to vector<32x178xbf16>
    %76 = arith.extf %75 : vector<32x178xbf16> to vector<32x178xf32>
    %77 = arith.addf %76, %74 : vector<32x178xf32>
    %cst_36 = arith.constant 0.000000e+00 : f32
    %78 = vector.broadcast %cst_36 : f32 to vector<32x178xf32>
    %79 = arith.maximumf %77, %78 : vector<32x178xf32>
    %80 = vector.broadcast %0 : vector<1x178xf32> to vector<32x178xf32>
    %81 = arith.mulf %79, %80 : vector<32x178xf32>
    %82 = arith.truncf %81 : vector<32x178xf32> to vector<32x178xbf16>
    %c0_37 = arith.constant 0 : index
    %c11_38 = arith.constant 11 : index
    %83 = vector.load %arg9[%c0_37, %c11_38] : memref<32x256xbf16, #tpu.memory_space<vmem>>, vector<32x178xbf16>
    tpu.vector_store %arg9[%c0_37, %c11_38], %82 {strides = array<i32>} : memref<32x256xbf16, #tpu.memory_space<vmem>>, vector<32x178xbf16>,
    %c0_39 = arith.constant 0 : index
    %c0_40 = arith.constant 0 : index
    %84 = vector.load %arg9[%c0_39, %c0_40] : memref<32x256xbf16, #tpu.memory_space<vmem>>, vector<32x256xbf16>
    %c0_41 = arith.constant 0 : index
    %c0_42 = arith.constant 0 : index
    %85 = vector.load %arg6[%c0_41, %c0_42] : memref<64x288xbf16, #tpu.memory_space<vmem>>, vector<64x288xbf16>
    %86 = vector.extract_strided_slice %84 {offsets = [0, 0], sizes = [32, 178], strides = [1, 1]} : vector<32x256xbf16> to vector<32x178xbf16>
    %87 = vector.extract_strided_slice %84 {offsets = [0, 1], sizes = [32, 178], strides = [1, 1]} : vector<32x256xbf16> to vector<32x178xbf16>
    %88 = vector.extract_strided_slice %84 {offsets = [0, 2], sizes = [32, 178], strides = [1, 1]} : vector<32x256xbf16> to vector<32x178xbf16>
    %89 = vector.extract_strided_slice %84 {offsets = [0, 10], sizes = [32, 178], strides = [1, 1]} : vector<32x256xbf16> to vector<32x178xbf16>
    %90 = vector.extract_strided_slice %84 {offsets = [0, 11], sizes = [32, 178], strides = [1, 1]} : vector<32x256xbf16> to vector<32x178xbf16>
    %91 = vector.extract_strided_slice %84 {offsets = [0, 12], sizes = [32, 178], strides = [1, 1]} : vector<32x256xbf16> to vector<32x178xbf16>
    %92 = vector.extract_strided_slice %84 {offsets = [0, 20], sizes = [32, 178], strides = [1, 1]} : vector<32x256xbf16> to vector<32x178xbf16>
    %93 = vector.extract_strided_slice %84 {offsets = [0, 21], sizes = [32, 178], strides = [1, 1]} : vector<32x256xbf16> to vector<32x178xbf16>
    %94 = vector.extract_strided_slice %84 {offsets = [0, 22], sizes = [32, 178], strides = [1, 1]} : vector<32x256xbf16> to vector<32x178xbf16>
    %95 = tpu.concatenate %86, %87, %88, %89, %90, %91, %92, %93, %94 in 0 : vector<32x178xbf16>, vector<32x178xbf16>, vector<32x178xbf16>, vector<32x178xbf16>, vector<32x178xbf16>, vector<32x178xbf16>, vector<32x178xbf16>, vector<32x178xbf16>, vector<32x178xbf16> -> vector<288x178xbf16>
    %cst_43 = arith.constant dense<0.000000e+00> : vector<64x178xf32>
    %96 = tpu.matmul %85, %95, %cst_43 {dimension_numbers = #tpu.dot_dimension_numbers<[1], [0], [0], [1], [0, 0, 1, 1], [], []>} : vector<64x288xbf16>, vector<288x178xbf16>, vector<64x178xf32> -> vector<64x178xf32>
    %c0_44 = arith.constant 0 : index
    %c0_45 = arith.constant 0 : index
    %97 = vector.load %arg7[%c0_44, %c0_45] : memref<64x1xf32, #tpu.memory_space<vmem>>, vector<64x1xf32>
    %98 = vector.broadcast %97 : vector<64x1xf32> to vector<64x178xf32>
    %99 = arith.addf %96, %98 : vector<64x178xf32>
    %cst_46 = arith.constant 0.000000e+00 : f32
    %100 = vector.broadcast %cst_46 : f32 to vector<64x178xf32>
    %101 = arith.maximumf %99, %100 : vector<64x178xf32>
    %102 = arith.truncf %101 : vector<64x178xf32> to vector<64x178xbf16>
    %c0_47 = arith.constant 0 : index
    %c0_48 = arith.constant 0 : index
    %103 = vector.load %arg8[%c0_47, %c0_48] : memref<64x256xbf16, #tpu.memory_space<vmem>>, vector<64x178xbf16>
    tpu.vector_store %arg8[%c0_47, %c0_48], %102 {strides = array<i32>} : memref<64x256xbf16, #tpu.memory_space<vmem>>, vector<64x178xbf16>,
    %cst_49 = arith.constant 0.000000e+00 : bf16
    %104 = vector.broadcast %cst_49 : bf16 to vector<64x78xbf16>
    %c0_50 = arith.constant 0 : index
    %c178 = arith.constant 178 : index
    %105 = vector.load %arg8[%c0_50, %c178] : memref<64x256xbf16, #tpu.memory_space<vmem>>, vector<64x78xbf16>
    tpu.vector_store %arg8[%c0_50, %c178], %104 {strides = array<i32>} : memref<64x256xbf16, #tpu.memory_space<vmem>>, vector<64x78xbf16>,
    return
  }
}

module attributes {stable_mosaic.version = 11 : i64} {
  func.func @_conv_kernel(%arg0: memref<16x768xbf16, #tpu.memory_space<vmem>>, %arg1: memref<12x144xbf16, #tpu.memory_space<vmem>>, %arg2: memref<12x1xf32, #tpu.memory_space<vmem>>, %arg3: memref<12x768xbf16, #tpu.memory_space<vmem>>) attributes {dimension_semantics = [], scalar_prefetch = 0 : i64, scratch_operands = 0 : i64, tpu.core_type = #tpu.core_type<tc>} {
    %c0 = arith.constant 0 : index
    %c0_0 = arith.constant 0 : index
    %0 = vector.load %arg0[%c0, %c0_0] : memref<16x768xbf16, #tpu.memory_space<vmem>>, vector<16x768xbf16>
    %c0_1 = arith.constant 0 : index
    %c0_2 = arith.constant 0 : index
    %1 = vector.load %arg1[%c0_1, %c0_2] : memref<12x144xbf16, #tpu.memory_space<vmem>>, vector<12x144xbf16>
    %2 = vector.extract_strided_slice %0 {offsets = [0, 0], sizes = [16, 610], strides = [1, 1]} : vector<16x768xbf16> to vector<16x610xbf16>
    %3 = vector.extract_strided_slice %0 {offsets = [0, 1], sizes = [16, 610], strides = [1, 1]} : vector<16x768xbf16> to vector<16x610xbf16>
    %4 = vector.extract_strided_slice %0 {offsets = [0, 2], sizes = [16, 610], strides = [1, 1]} : vector<16x768xbf16> to vector<16x610xbf16>
    %5 = vector.extract_strided_slice %0 {offsets = [0, 18], sizes = [16, 610], strides = [1, 1]} : vector<16x768xbf16> to vector<16x610xbf16>
    %6 = vector.extract_strided_slice %0 {offsets = [0, 19], sizes = [16, 610], strides = [1, 1]} : vector<16x768xbf16> to vector<16x610xbf16>
    %7 = vector.extract_strided_slice %0 {offsets = [0, 20], sizes = [16, 610], strides = [1, 1]} : vector<16x768xbf16> to vector<16x610xbf16>
    %8 = vector.extract_strided_slice %0 {offsets = [0, 36], sizes = [16, 610], strides = [1, 1]} : vector<16x768xbf16> to vector<16x610xbf16>
    %9 = vector.extract_strided_slice %0 {offsets = [0, 37], sizes = [16, 610], strides = [1, 1]} : vector<16x768xbf16> to vector<16x610xbf16>
    %10 = vector.extract_strided_slice %0 {offsets = [0, 38], sizes = [16, 610], strides = [1, 1]} : vector<16x768xbf16> to vector<16x610xbf16>
    %11 = tpu.concatenate %2, %3, %4, %5, %6, %7, %8, %9, %10 in 0 : vector<16x610xbf16>, vector<16x610xbf16>, vector<16x610xbf16>, vector<16x610xbf16>, vector<16x610xbf16>, vector<16x610xbf16>, vector<16x610xbf16>, vector<16x610xbf16>, vector<16x610xbf16> -> vector<144x610xbf16>
    %cst = arith.constant dense<0.000000e+00> : vector<12x610xf32>
    %12 = tpu.matmul %1, %11, %cst {dimension_numbers = #tpu.dot_dimension_numbers<[1], [0], [0], [1], [0, 0, 1, 1], [], []>} : vector<12x144xbf16>, vector<144x610xbf16>, vector<12x610xf32> -> vector<12x610xf32>
    %c0_3 = arith.constant 0 : index
    %c0_4 = arith.constant 0 : index
    %13 = vector.load %arg2[%c0_3, %c0_4] : memref<12x1xf32, #tpu.memory_space<vmem>>, vector<12x1xf32>
    %14 = vector.broadcast %13 : vector<12x1xf32> to vector<12x610xf32>
    %15 = arith.addf %12, %14 : vector<12x610xf32>
    %16 = arith.truncf %15 : vector<12x610xf32> to vector<12x610xbf16>
    %c0_5 = arith.constant 0 : index
    %c0_6 = arith.constant 0 : index
    %17 = vector.load %arg3[%c0_5, %c0_6] : memref<12x768xbf16, #tpu.memory_space<vmem>>, vector<12x610xbf16>
    tpu.vector_store %arg3[%c0_5, %c0_6], %16 {strides = array<i32>} : memref<12x768xbf16, #tpu.memory_space<vmem>>, vector<12x610xbf16>,
    %cst_7 = arith.constant 0.000000e+00 : bf16
    %18 = vector.broadcast %cst_7 : bf16 to vector<12x158xbf16>
    %c0_8 = arith.constant 0 : index
    %c610 = arith.constant 610 : index
    %19 = vector.load %arg3[%c0_8, %c610] : memref<12x768xbf16, #tpu.memory_space<vmem>>, vector<12x158xbf16>
    tpu.vector_store %arg3[%c0_8, %c610], %18 {strides = array<i32>} : memref<12x768xbf16, #tpu.memory_space<vmem>>, vector<12x158xbf16>,
    return
  }
}

</mosaic_0001>

<llo_original>
// kernel: vqvae_forward.5
$region0: #{vqvae_forward.5}
  #allocation0 [shape = 'u32[]', space=smem, size = 0x4, offset = 0x4, fixed_abs, tag = 'smem constant byte address 0x4 - core index']
  #allocation1 [shape = 'u32[144,128]{1,0:T(1,128)}', space=vmem, size = 0x12000, scoped, tag = 'internal scratch']
  %s0 = inlined_call_operand.vmem [shape: bf16[16,640], index: 0, kind: input, shape index: {}]
  %s1 = inlined_call_operand.vmem [shape: bf16[16,64], index: 1, kind: input, shape index: {}]
  %s2 = inlined_call_operand.vmem [shape: f32[16,1], index: 2, kind: input, shape index: {}]
  %s3 = inlined_call_operand.vmem [shape: bf16[16,640], index: 3, kind: output, shape index: {}]
  %s4 = sld [smem:[#allocation0]]
  $region22: #{vqvae_forward.5} parent=0
    _
  %s6 = ssub.s32 1, %s4
  %s7 = scalar_select 0, %s6, %s4
  // Predicated region
  $region2: #{vqvae_forward.5} parent=0 // pred_check
    _
  $region3: #{vqvae_forward.5} parent=0 // pred_check_branch
    %9 = sbr.rel (0) target = $region5
  $region4: #{vqvae_forward.5} parent=0 // pred_region
    _
  $region5: #{vqvae_forward.5} parent=0 // pred_fallthru
    _
  // Predicated region
  $region6: #{vqvae_forward.5} parent=0 // pred_check
    _
  $region7: #{vqvae_forward.5} parent=0 // pred_check_branch
    %11 = sbr.rel (0) target = $region9
  $region8: #{vqvae_forward.5} parent=0 // pred_region
    _
  $region9: #{vqvae_forward.5} parent=0 // pred_fallthru
    _
  // Predicated region
  $region10: #{vqvae_forward.5} parent=0 // pred_check
    _
  $region11: #{vqvae_forward.5} parent=0 // pred_check_branch
    %13 = sbr.rel (0) target = $region13
  $region12: #{vqvae_forward.5} parent=0 // pred_region
    _
  $region13: #{vqvae_forward.5} parent=0 // pred_fallthru
    _
  %v15 = vld [vmem:[%s0] sm:$0xff]
  %v16 = vld [vmem:[%s0 + $0x8] sm:$0xff]
  %v17 = vld [vmem:[%s0 + $0x10] sm:$0xf]
  %v18 = vld [vmem:[%s0 + $0x14] sm:$0xff]
  %v19 = vld [vmem:[%s0 + $0x1c] sm:$0xff]
  %v20 = vld [vmem:[%s0 + $0x24] sm:$0xf]
  %v21 = vld [vmem:[%s1] sm:$0xf]
  %v22 = vld [vmem:[%s1 + $0x4] sm:$0xf]
  %v29 = vunpack.c.l.b16 %v15
  %v30 = vunpack.c.h.b16 %v15
  %v31 = vunpack.c.l.b16 %v16
  %v32 = vunpack.c.h.b16 %v16
  %v33 = vunpack.c.l.b16 %v17
  %v34 = vunpack.c.l.b16 %v18
  %v35 = vunpack.c.h.b16 %v18
  %v36 = vunpack.c.l.b16 %v19
  %v37 = vunpack.c.h.b16 %v19
  %v38 = vunpack.c.l.b16 %v20
  %v39 = vpack.c.b16 %v34, %v29
  %v40 = vpack.c.b16 %v35, %v30
  %v41 = vpack.c.b16 %v36, %v31
  %v42 = vpack.c.b16 %v37, %v32
  %v43 = vpack.c.b16 %v38, %v33
  %49 = vrot.lane.b32.xlu0 %v39, 127
  %v50 = vpop.permute.xlu0 %49
  %51 = vrot.lane.b32.xlu0 %v40, 127
  %v52 = vpop.permute.xlu0 %51
  %53 = vrot.lane.b32.xlu0 %v41, 127
  %v54 = vpop.permute.xlu0 %53
  %55 = vrot.lane.b32.xlu0 %v42, 127
  %v56 = vpop.permute.xlu0 %55
  %57 = vrot.lane.b32.xlu0 %v43, 127
  %v58 = vpop.permute.xlu0 %57
  %vm59 = vcmask 1039360
  %v60 = vsel %vm59, %v50, %v52
  %v61 = vsel %vm59, %v52, %v54
  %v62 = vsel %vm59, %v54, %v56
  %v63 = vsel %vm59, %v56, %v58
  %69 = vrot.lane.b32.xlu0 %v39, 111
  %v70 = vpop.permute.xlu0 %69
  %71 = vrot.lane.b32.xlu0 %v40, 111
  %v72 = vpop.permute.xlu0 %71
  %73 = vrot.lane.b32.xlu0 %v41, 111
  %v74 = vpop.permute.xlu0 %73
  %75 = vrot.lane.b32.xlu0 %v42, 111
  %v76 = vpop.permute.xlu0 %75
  %77 = vrot.lane.b32.xlu0 %v43, 111
  %v78 = vpop.permute.xlu0 %77
  %vm79 = vcmask 908288
  %v80 = vsel %vm79, %v70, %v72
  %v81 = vsel %vm79, %v72, %v74
  %v82 = vsel %vm79, %v74, %v76
  %v83 = vsel %vm79, %v76, %v78
  %89 = vrot.lane.b32.xlu0 %v39, 110
  %v90 = vpop.permute.xlu0 %89
  %91 = vrot.lane.b32.xlu0 %v40, 110
  %v92 = vpop.permute.xlu0 %91
  %93 = vrot.lane.b32.xlu0 %v41, 110
  %v94 = vpop.permute.xlu0 %93
  %95 = vrot.lane.b32.xlu0 %v42, 110
  %v96 = vpop.permute.xlu0 %95
  %97 = vrot.lane.b32.xlu0 %v43, 110
  %v98 = vpop.permute.xlu0 %97
  %vm99 = vcmask 900096
  %v100 = vsel %vm99, %v90, %v92
  %v101 = vsel %vm99, %v92, %v94
  %v102 = vsel %vm99, %v94, %v96
  %v103 = vsel %vm99, %v96, %v98
  %v109 = vld [vmem:[%s2] sm:$0xff]
  %v110 = vld [vmem:[%s2 + $0x8] sm:$0xff]
  %112 = vset.pattern.permute.xlu0 0
  %113 = vperm.xlu0 %112, %v109
  %v114 = vpop.permute.xlu0 %113
  %117 = vset.pattern.permute.xlu0 0
  %118 = vperm.xlu0 %117, %v110
  %v119 = vpop.permute.xlu0 %118
  %v123 = vunpack.c.l.b16 %v21
  %v124 = vunpack.c.l.b16 %v22
  %v125 = vpack.c.b16 %v124, %v123
  %vm126 = vcmask 523264
  %v128 = vsel %vm126, %v125, 0
  %130 = vmatprep.subr.bf16.mxu0 %v40
  %131 = vmatpush1.bf16.msra.mxu0 %v39
  %132 = vmatprep.subr.bf16.mxu0 %v61
  %133 = vmatpush1.bf16.msra.mxu0 %v60
  %134 = vmatprep.subr.bf16.mxu0 %v81
  %135 = vmatpush1.bf16.msra.mxu0 %v80
  %136 = vmatprep.subr.bf16.mxu0 %v101
  %137 = vmatpush1.bf16.msra.mxu0 %v100
  %138 = vmatprep.subr.bf16.mxu0 0
  %139 = vmatpush1.bf16.msra.mxu0 0
  %140 = vmatprep.subr.bf16.mxu0 0
  %141 = vmatpush1.bf16.msra.mxu0 0
  %142 = vmatprep.subr.bf16.mxu0 0
  %143 = vmatpush1.bf16.msra.mxu0 0
  %144 = vmatprep.subr.bf16.mxu0 0
  %145 = vmatpush1.bf16.msra.mxu0 0
  %146 = vmatprep.subr.bf16.mxu0 0
  %147 = vmatpush1.bf16.msra.mxu0 0
  %148 = vmatprep.subr.bf16.mxu0 0
  %149 = vmatpush1.bf16.msra.mxu0 0
  %150 = vmatprep.subr.bf16.mxu0 0
  %151 = vmatpush1.bf16.msra.mxu0 0
  %152 = vmatprep.subr.bf16.mxu0 0
  %153 = vmatpush1.bf16.msra.mxu0 0
  %154 = vmatprep.subr.bf16.mxu0 0
  %155 = vmatpush1.bf16.msra.mxu0 0
  %156 = vmatprep.subr.bf16.mxu0 0
  %157 = vmatpush1.bf16.msra.mxu0 0
  %158 = vmatprep.subr.bf16.mxu0 0
  %159 = vmatpush1.bf16.msra.mxu0 0
  %160 = vmatprep.subr.bf16.mxu0 0
  %161 = vmatpush1.bf16.msra.mxu0 0
  %162 = vmatprep.mubr.bf16.mxu0 0
  %163 = vmatmul.mubr.bf16.gmra.mrb[0].mxu0 %v128
  %v164 = vpop.f32.mrb[0].mxu0
  %v165 = vadd.f32 %v114, %v164
  %v166 = vpop.f32.mrb[0].mxu0
  %v167 = vadd.f32 %v114, %v166
  %v168 = vpop.f32.mrb[0].mxu0
  %v169 = vadd.f32 %v119, %v168
  %v170 = vpop.f32.mrb[0].mxu0
  %v171 = vadd.f32 %v119, %v170
  %172 = vdwg.mxu0
  %173 = vmatprep.subr.bf16.mxu0 %v42
  %174 = vmatpush1.bf16.msra.mxu0 %v41
  %175 = vmatprep.subr.bf16.mxu0 %v63
  %176 = vmatpush1.bf16.msra.mxu0 %v62
  %177 = vmatprep.subr.bf16.mxu0 %v83
  %178 = vmatpush1.bf16.msra.mxu0 %v82
  %179 = vmatprep.subr.bf16.mxu0 %v103
  %180 = vmatpush1.bf16.msra.mxu0 %v102
  %181 = vmatprep.subr.bf16.mxu0 0
  %182 = vmatpush1.bf16.msra.mxu0 0
  %183 = vmatprep.subr.bf16.mxu0 0
  %184 = vmatpush1.bf16.msra.mxu0 0
  %185 = vmatprep.subr.bf16.mxu0 0
  %186 = vmatpush1.bf16.msra.mxu0 0
  %187 = vmatprep.subr.bf16.mxu0 0
  %188 = vmatpush1.bf16.msra.mxu0 0
  %189 = vmatprep.subr.bf16.mxu0 0
  %190 = vmatpush1.bf16.msra.mxu0 0
  %191 = vmatprep.subr.bf16.mxu0 0
  %192 = vmatpush1.bf16.msra.mxu0 0
  %193 = vmatprep.subr.bf16.mxu0 0
  %194 = vmatpush1.bf16.msra.mxu0 0
  %195 = vmatprep.subr.bf16.mxu0 0
  %196 = vmatpush1.bf16.msra.mxu0 0
  %197 = vmatprep.subr.bf16.mxu0 0
  %198 = vmatpush1.bf16.msra.mxu0 0
  %199 = vmatprep.subr.bf16.mxu0 0
  %200 = vmatpush1.bf16.msra.mxu0 0
  %201 = vmatprep.subr.bf16.mxu0 0
  %202 = vmatpush1.bf16.msra.mxu0 0
  %203 = vmatprep.subr.bf16.mxu0 0
  %204 = vmatpush1.bf16.msra.mxu0 0
  %205 = vmatprep.mubr.bf16.mxu0 0
  %206 = vmatmul.mubr.bf16.gmra.mrb[0].mxu0 %v128
  %v207 = vpop.f32.mrb[0].mxu0
  %v208 = vadd.f32 %v114, %v207
  %v209 = vpop.f32.mrb[0].mxu0
  %v210 = vadd.f32 %v114, %v209
  %v211 = vpop.f32.mrb[0].mxu0
  %v212 = vadd.f32 %v119, %v211
  %v213 = vpop.f32.mrb[0].mxu0
  %v214 = vadd.f32 %v119, %v213
  %215 = vdwg.mxu0
  %216 = vmatprep.subr.bf16.mxu0 0
  %217 = vmatpush1.bf16.msra.mxu0 %v43
  %218 = vmatprep.subr.bf16.mxu0 0
  %219 = vmatpush1.bf16.msra.mxu0 %v58
  %220 = vmatprep.subr.bf16.mxu0 0
  %221 = vmatpush1.bf16.msra.mxu0 %v78
  %222 = vmatprep.subr.bf16.mxu0 0
  %223 = vmatpush1.bf16.msra.mxu0 %v98
  %224 = vmatprep.subr.bf16.mxu0 0
  %225 = vmatpush1.bf16.msra.mxu0 0
  %226 = vmatprep.subr.bf16.mxu0 0
  %227 = vmatpush1.bf16.msra.mxu0 0
  %228 = vmatprep.subr.bf16.mxu0 0
  %229 = vmatpush1.bf16.msra.mxu0 0
  %230 = vmatprep.subr.bf16.mxu0 0
  %231 = vmatpush1.bf16.msra.mxu0 0
  %232 = vmatprep.subr.bf16.mxu0 0
  %233 = vmatpush1.bf16.msra.mxu0 0
  %234 = vmatprep.subr.bf16.mxu0 0
  %235 = vmatpush1.bf16.msra.mxu0 0
  %236 = vmatprep.subr.bf16.mxu0 0
  %237 = vmatpush1.bf16.msra.mxu0 0
  %238 = vmatprep.subr.bf16.mxu0 0
  %239 = vmatpush1.bf16.msra.mxu0 0
  %240 = vmatprep.subr.bf16.mxu0 0
  %241 = vmatpush1.bf16.msra.mxu0 0
  %242 = vmatprep.subr.bf16.mxu0 0
  %243 = vmatpush1.bf16.msra.mxu0 0
  %244 = vmatprep.subr.bf16.mxu0 0
  %245 = vmatpush1.bf16.msra.mxu0 0
  %246 = vmatprep.subr.bf16.mxu0 0
  %247 = vmatpush1.bf16.msra.mxu0 0
  %248 = vmatprep.mubr.bf16.mxu0 0
  %249 = vmatmul.mubr.bf16.gmra.mrb[0].mxu0 %v128
  %v250 = vpop.f32.mrb[0].mxu0
  %v251 = vadd.f32 %v114, %v250
  %v252 = vpop.f32.mrb[0].mxu0
  %v253 = vpop.f32.mrb[0].mxu0
  %v254 = vadd.f32 %v119, %v253
  %v255 = vpop.f32.mrb[0].mxu0
  %256 = vdwg.mxu0
  %v257 = vmax.f32 %v165, 0.0
  %v258 = vmax.f32 %v167, 0.0
  %v259 = vmax.f32 %v208, 0.0
  %v260 = vmax.f32 %v210, 0.0
  %v261 = vmax.f32 %v251, 0.0
  %v262 = vmax.f32 %v169, 0.0
  %v263 = vmax.f32 %v171, 0.0
  %v264 = vmax.f32 %v212, 0.0
  %v265 = vmax.f32 %v214, 0.0
  %v266 = vmax.f32 %v254, 0.0
  %v267 = vpack.c.bf16 %v262, %v257
  %v268 = vpack.c.bf16 %v263, %v258
  %v269 = vpack.c.bf16 %v264, %v259
  %v270 = vpack.c.bf16 %v265, %v260
  %v271 = vpack.c.bf16 %v266, %v261
  %v277 = vunpack.c.l.b16 %v267
  %v278 = vunpack.c.l.b16 %v268
  %v279 = vunpack.c.l.b16 %v269
  %v280 = vunpack.c.l.b16 %v270
  %v281 = vunpack.c.l.b16 %v271
  %v282 = vunpack.c.h.b16 %v267
  %v283 = vunpack.c.h.b16 %v268
  %v284 = vunpack.c.h.b16 %v269
  %v285 = vunpack.c.h.b16 %v270
  %v286 = vunpack.c.h.b16 %v271
  %v287 = vpack.c.b16 %v278, %v277
  %v288 = vpack.c.b16 %v280, %v279
  %v289 = vpack.c.b16 %v281, %v281
  %v290 = vpack.c.b16 %v283, %v282
  %v291 = vpack.c.b16 %v285, %v284
  %v292 = vpack.c.b16 %v286, %v286
  %299 = vst [vmem:[%s3] sm:$0xff] %v287
  %300 = vst [vmem:[%s3 + $0x8] sm:$0xff] %v288
  %vm301 = vcmask 388096
  %302 = vst.msk [vmem:[%s3 + $0x10] sm:$0xf] %vm301, %v289
  %303 = vst [vmem:[%s3 + $0x14] sm:$0xff] %v290
  %304 = vst [vmem:[%s3 + $0x1c] sm:$0xff] %v291
  %305 = vst.msk [vmem:[%s3 + $0x24] sm:$0xf] %vm301, %v292
  %vm306 = vcmask 1043840
  %307 = vst.msk [vmem:[%s3 + $0x10] sm:$0xf] %vm306, 0
  %308 = vst.msk [vmem:[%s3 + $0x24] sm:$0xf] %vm306, 0
  // Predicated region
  $region14: #{vqvae_forward.5} parent=0 // pred_check
    _
  $region15: #{vqvae_forward.5} parent=0 // pred_check_branch
    %310 = sbr.rel (0) target = $region17
  $region16: #{vqvae_forward.5} parent=0 // pred_region
    _
  $region17: #{vqvae_forward.5} parent=0 // pred_fallthru
    _
  // Predicated region
  $region18: #{vqvae_forward.5} parent=0 // pred_check
    _
  $region19: #{vqvae_forward.5} parent=0 // pred_check_branch
    %312 = sbr.rel (0) target = $region21
  $region20: #{vqvae_forward.5} parent=0 // pred_region
    _
  $region21: #{vqvae_forward.5} parent=0 // pred_fallthru
    _

// kernel: vqvae_forward.6
$region0: #{vqvae_forward.6}
  #allocation0 [shape = 'u32[]', space=smem, size = 0x4, offset = 0x4, fixed_abs, tag = 'smem constant byte address 0x4 - core index']
  #allocation1 [shape = 'u32[144,128]{1,0:T(1,128)}', space=vmem, size = 0x12000, scoped, tag = 'internal scratch']
  %s0 = inlined_call_operand.vmem [shape: bf16[64,256], index: 0, kind: input, shape index: {}]
  %s1 = inlined_call_operand.vmem [shape: bf16[32,256], index: 1, kind: input, shape index: {}]
  %s2 = inlined_call_operand.vmem [shape: f32[32,1], index: 2, kind: input, shape index: {}]
  %s3 = inlined_call_operand.vmem [shape: bf16[32,256], index: 3, kind: output, shape index: {}]
  %s4 = sld [smem:[#allocation0]]
  $region22: #{vqvae_forward.6} parent=0
    _
  %s6 = ssub.s32 1, %s4
  %s7 = scalar_select 0, %s6, %s4
  // Predicated region
  $region2: #{vqvae_forward.6} parent=0 // pred_check
    _
  $region3: #{vqvae_forward.6} parent=0 // pred_check_branch
    %9 = sbr.rel (0) target = $region5
  $region4: #{vqvae_forward.6} parent=0 // pred_region
    _
  $region5: #{vqvae_forward.6} parent=0 // pred_fallthru
    _
  // Predicated region
  $region6: #{vqvae_forward.6} parent=0 // pred_check
    _
  $region7: #{vqvae_forward.6} parent=0 // pred_check_branch
    %11 = sbr.rel (0) target = $region9
  $region8: #{vqvae_forward.6} parent=0 // pred_region
    _
  $region9: #{vqvae_forward.6} parent=0 // pred_fallthru
    _
  // Predicated region
  $region10: #{vqvae_forward.6} parent=0 // pred_check
    _
  $region11: #{vqvae_forward.6} parent=0 // pred_check_branch
    %13 = sbr.rel (0) target = $region13
  $region12: #{vqvae_forward.6} parent=0 // pred_region
    _
  $region13: #{vqvae_forward.6} parent=0 // pred_fallthru
    _
  %v15 = vld [vmem:[%s0] sm:$0xff]
  %v16 = vld [vmem:[%s0 + $0x8] sm:$0xff]
  %v17 = vld [vmem:[%s0 + $0x10] sm:$0xff]
  %v18 = vld [vmem:[%s0 + $0x18] sm:$0xff]
  %v19 = vld [vmem:[%s0 + $0x20] sm:$0xff]
  %v20 = vld [vmem:[%s0 + $0x28] sm:$0xff]
  %v21 = vld [vmem:[%s0 + $0x30] sm:$0xff]
  %v22 = vld [vmem:[%s0 + $0x38] sm:$0xff]
  %v23 = vld [vmem:[%s1] sm:$0xff]
  %v24 = vld [vmem:[%s1 + $0x8] sm:$0xff]
  %v25 = vld [vmem:[%s1 + $0x10] sm:$0xff]
  %v26 = vld [vmem:[%s1 + $0x18] sm:$0xff]
  %v35 = vunpack.c.l.b16 %v15
  %v36 = vunpack.c.h.b16 %v15
  %v37 = vunpack.c.l.b16 %v16
  %v38 = vunpack.c.h.b16 %v16
  %v39 = vunpack.c.l.b16 %v17
  %v40 = vunpack.c.h.b16 %v17
  %v41 = vunpack.c.l.b16 %v18
  %v42 = vunpack.c.h.b16 %v18
  %v43 = vunpack.c.l.b16 %v19
  %v44 = vunpack.c.h.b16 %v19
  %v45 = vunpack.c.l.b16 %v20
  %v46 = vunpack.c.h.b16 %v20
  %v47 = vunpack.c.l.b16 %v21
  %v48 = vunpack.c.h.b16 %v21
  %v49 = vunpack.c.l.b16 %v22
  %v50 = vunpack.c.h.b16 %v22
  %v51 = vpack.c.b16 %v37, %v35
  %v52 = vpack.c.b16 %v38, %v36
  %v53 = vpack.c.b16 %v41, %v39
  %v54 = vpack.c.b16 %v42, %v40
  %v55 = vpack.c.b16 %v45, %v43
  %v56 = vpack.c.b16 %v46, %v44
  %v57 = vpack.c.b16 %v49, %v47
  %v58 = vpack.c.b16 %v50, %v48
  %67 = vrot.lane.b32.xlu0 %v51, 127
  %v68 = vpop.permute.xlu0 %67
  %69 = vrot.lane.b32.xlu0 %v52, 127
  %v70 = vpop.permute.xlu0 %69
  %71 = vrot.lane.b32.xlu0 %v53, 127
  %v72 = vpop.permute.xlu0 %71
  %73 = vrot.lane.b32.xlu0 %v54, 127
  %v74 = vpop.permute.xlu0 %73
  %75 = vrot.lane.b32.xlu0 %v55, 127
  %v76 = vpop.permute.xlu0 %75
  %77 = vrot.lane.b32.xlu0 %v56, 127
  %v78 = vpop.permute.xlu0 %77
  %79 = vrot.lane.b32.xlu0 %v57, 127
  %v80 = vpop.permute.xlu0 %79
  %81 = vrot.lane.b32.xlu0 %v58, 127
  %v82 = vpop.permute.xlu0 %81
  %vm83 = vcmask 1039360
  %v84 = vsel %vm83, %v68, %v70
  %v85 = vsel %vm83, %v72, %v74
  %v86 = vsel %vm83, %v76, %v78
  %v87 = vsel %vm83, %v80, %v82
  %96 = vrot.lane.b32.xlu0 %v51, 119
  %v97 = vpop.permute.xlu0 %96
  %98 = vrot.lane.b32.xlu0 %v52, 119
  %v99 = vpop.permute.xlu0 %98
  %100 = vrot.lane.b32.xlu0 %v53, 119
  %v101 = vpop.permute.xlu0 %100
  %102 = vrot.lane.b32.xlu0 %v54, 119
  %v103 = vpop.permute.xlu0 %102
  %104 = vrot.lane.b32.xlu0 %v55, 119
  %v105 = vpop.permute.xlu0 %104
  %106 = vrot.lane.b32.xlu0 %v56, 119
  %v107 = vpop.permute.xlu0 %106
  %108 = vrot.lane.b32.xlu0 %v57, 119
  %v109 = vpop.permute.xlu0 %108
  %110 = vrot.lane.b32.xlu0 %v58, 119
  %v111 = vpop.permute.xlu0 %110
  %vm112 = vcmask 973824
  %v113 = vsel %vm112, %v97, %v99
  %v114 = vsel %vm112, %v101, %v103
  %v115 = vsel %vm112, %v105, %v107
  %v116 = vsel %vm112, %v109, %v111
  %125 = vrot.lane.b32.xlu0 %v51, 118
  %v126 = vpop.permute.xlu0 %125
  %127 = vrot.lane.b32.xlu0 %v52, 118
  %v128 = vpop.permute.xlu0 %127
  %129 = vrot.lane.b32.xlu0 %v53, 118
  %v130 = vpop.permute.xlu0 %129
  %131 = vrot.lane.b32.xlu0 %v54, 118
  %v132 = vpop.permute.xlu0 %131
  %133 = vrot.lane.b32.xlu0 %v55, 118
  %v134 = vpop.permute.xlu0 %133
  %135 = vrot.lane.b32.xlu0 %v56, 118
  %v136 = vpop.permute.xlu0 %135
  %137 = vrot.lane.b32.xlu0 %v57, 118
  %v138 = vpop.permute.xlu0 %137
  %139 = vrot.lane.b32.xlu0 %v58, 118
  %v140 = vpop.permute.xlu0 %139
  %vm141 = vcmask 965632
  %v142 = vsel %vm141, %v126, %v128
  %v143 = vsel %vm141, %v130, %v132
  %v144 = vsel %vm141, %v134, %v136
  %v145 = vsel %vm141, %v138, %v140
  %v154 = vld [vmem:[%s2] sm:$0xff]
  %v155 = vld [vmem:[%s2 + $0x8] sm:$0xff]
  %v156 = vld [vmem:[%s2 + $0x10] sm:$0xff]
  %v157 = vld [vmem:[%s2 + $0x18] sm:$0xff]
  %159 = vset.pattern.permute.xlu0 0
  %160 = vperm.xlu0 %159, %v154
  %v161 = vpop.permute.xlu0 %160
  %164 = vset.pattern.permute.xlu0 0
  %165 = vperm.xlu0 %164, %v155
  %v166 = vpop.permute.xlu0 %165
  %169 = vset.pattern.permute.xlu0 0
  %170 = vperm.xlu0 %169, %v156
  %v171 = vpop.permute.xlu0 %170
  %174 = vset.pattern.permute.xlu0 0
  %175 = vperm.xlu0 %174, %v157
  %v176 = vpop.permute.xlu0 %175
  %v182 = vunpack.c.l.b16 %v23
  %v183 = vunpack.c.h.b16 %v23
  %v184 = vunpack.c.l.b16 %v24
  %v185 = vunpack.c.h.b16 %v24
  %v186 = vunpack.c.l.b16 %v25
  %v187 = vunpack.c.h.b16 %v25
  %v188 = vunpack.c.l.b16 %v26
  %v189 = vunpack.c.h.b16 %v26
  %v190 = vpack.c.b16 %v184, %v182
  %v191 = vpack.c.b16 %v185, %v183
  %v192 = vpack.c.b16 %v188, %v186
  %v193 = vpack.c.b16 %v189, %v187
  %198 = vmatprep.subr.bf16.mxu0 %v52
  %199 = vmatpush1.bf16.msra.mxu0 %v51
  %200 = vmatprep.subr.bf16.mxu0 %v54
  %201 = vmatpush1.bf16.msra.mxu0 %v53
  %202 = vmatprep.subr.bf16.mxu0 %v56
  %203 = vmatpush1.bf16.msra.mxu0 %v55
  %204 = vmatprep.subr.bf16.mxu0 %v58
  %205 = vmatpush1.bf16.msra.mxu0 %v57
  %206 = vmatprep.subr.bf16.mxu0 %v70
  %207 = vmatpush1.bf16.msra.mxu0 %v84
  %208 = vmatprep.subr.bf16.mxu0 %v74
  %209 = vmatpush1.bf16.msra.mxu0 %v85
  %210 = vmatprep.subr.bf16.mxu0 %v78
  %211 = vmatpush1.bf16.msra.mxu0 %v86
  %212 = vmatprep.subr.bf16.mxu0 %v82
  %213 = vmatpush1.bf16.msra.mxu0 %v87
  %214 = vmatprep.subr.bf16.mxu0 %v99
  %215 = vmatpush1.bf16.msra.mxu0 %v113
  %216 = vmatprep.subr.bf16.mxu0 %v103
  %217 = vmatpush1.bf16.msra.mxu0 %v114
  %218 = vmatprep.subr.bf16.mxu0 %v107
  %219 = vmatpush1.bf16.msra.mxu0 %v115
  %220 = vmatprep.subr.bf16.mxu0 %v111
  %221 = vmatpush1.bf16.msra.mxu0 %v116
  %222 = vmatprep.subr.bf16.mxu0 %v128
  %223 = vmatpush1.bf16.msra.mxu0 %v142
  %224 = vmatprep.subr.bf16.mxu0 %v132
  %225 = vmatpush1.bf16.msra.mxu0 %v143
  %226 = vmatprep.subr.bf16.mxu0 %v136
  %227 = vmatpush1.bf16.msra.mxu0 %v144
  %228 = vmatprep.subr.bf16.mxu0 %v140
  %229 = vmatpush1.bf16.msra.mxu0 %v145
  %230 = vmatprep.mubr.bf16.mxu0 %v191
  %231 = vmatmul.mubr.bf16.gmra.mrb[0].mxu0 %v190
  %v232 = vpop.f32.mrb[0].mxu0
  %v233 = vadd.f32 %v161, %v232
  %v234 = vpop.f32.mrb[0].mxu0
  %v235 = vadd.f32 %v161, %v234
  %v236 = vpop.f32.mrb[0].mxu0
  %v237 = vadd.f32 %v166, %v236
  %v238 = vpop.f32.mrb[0].mxu0
  %v239 = vadd.f32 %v166, %v238
  %240 = vmatprep.mubr.bf16.mxu0 %v193
  %241 = vmatmul.mubr.bf16.gmra.mrb[0].mxu0 %v192
  %v242 = vpop.f32.mrb[0].mxu0
  %v243 = vadd.f32 %v171, %v242
  %v244 = vpop.f32.mrb[0].mxu0
  %v245 = vadd.f32 %v171, %v244
  %v246 = vpop.f32.mrb[0].mxu0
  %v247 = vadd.f32 %v176, %v246
  %v248 = vpop.f32.mrb[0].mxu0
  %v249 = vadd.f32 %v176, %v248
  %250 = vdwg.mxu0
  %v251 = vmax.f32 %v233, 0.0
  %v252 = vmax.f32 %v235, 0.0
  %v253 = vmax.f32 %v237, 0.0
  %v254 = vmax.f32 %v239, 0.0
  %v255 = vmax.f32 %v243, 0.0
  %v256 = vmax.f32 %v245, 0.0
  %v257 = vmax.f32 %v247, 0.0
  %v258 = vmax.f32 %v249, 0.0
  %v259 = vpack.c.bf16 %v253, %v251
  %v260 = vpack.c.bf16 %v254, %v252
  %v261 = vpack.c.bf16 %v257, %v255
  %v262 = vpack.c.bf16 %v258, %v256
  %v267 = vunpack.c.l.b16 %v259
  %v268 = vunpack.c.l.b16 %v260
  %v269 = vunpack.c.h.b16 %v259
  %v270 = vunpack.c.h.b16 %v260
  %v271 = vunpack.c.l.b16 %v261
  %v272 = vunpack.c.l.b16 %v262
  %v273 = vunpack.c.h.b16 %v261
  %v274 = vunpack.c.h.b16 %v262
  %v275 = vpack.c.b16 %v268, %v267
  %v276 = vpack.c.b16 %v270, %v269
  %v277 = vpack.c.b16 %v272, %v271
  %v278 = vpack.c.b16 %v274, %v273
  %vm283 = vcmask 1043456
  %vm284 = vcmask 195588
  %vm285 = vmor %vm284, %vm283
  %286 = vst.msk [vmem:[%s3] sm:$0xff] %vm285, %v275
  %287 = vst.msk [vmem:[%s3 + $0x8] sm:$0xff] %vm285, %v276
  %288 = vst.msk [vmem:[%s3 + $0x10] sm:$0xff] %vm285, %v277
  %289 = vst.msk [vmem:[%s3 + $0x18] sm:$0xff] %vm285, %v278
  %vm290 = vcmask 1043648
  %291 = vst.msk [vmem:[%s3 + $0x4] sm:$0xf] %vm290, 0
  %292 = vst.msk [vmem:[%s3 + $0xc] sm:$0xf] %vm290, 0
  %293 = vst.msk [vmem:[%s3 + $0x14] sm:$0xf] %vm290, 0
  %294 = vst.msk [vmem:[%s3 + $0x1c] sm:$0xf] %vm290, 0
  // Predicated region
  $region14: #{vqvae_forward.6} parent=0 // pred_check
    _
  $region15: #{vqvae_forward.6} parent=0 // pred_check_branch
    %296 = sbr.rel (0) target = $region17
  $region16: #{vqvae_forward.6} parent=0 // pred_region
    _
  $region17: #{vqvae_forward.6} parent=0 // pred_fallthru
    _
  // Predicated region
  $region18: #{vqvae_forward.6} parent=0 // pred_check
    _
  $region19: #{vqvae_forward.6} parent=0 // pred_check_branch
    %298 = sbr.rel (0) target = $region21
  $region20: #{vqvae_forward.6} parent=0 // pred_region
    _
  $region21: #{vqvae_forward.6} parent=0 // pred_fallthru
    _

// kernel: vqvae_forward.7
$region0: #{vqvae_forward.7}
  #allocation0 [shape = 'u32[]', space=smem, size = 0x4, offset = 0x4, fixed_abs, tag = 'smem constant byte address 0x4 - core index']
  #allocation1 [shape = 'u32[144,128]{1,0:T(1,128)}', space=vmem, size = 0x12000, scoped, tag = 'internal scratch']
  #allocation2 [shape = 'bf16[32,256]{1,0:T(16,128)(2,1)}', space=vmem, size = 0x4000, scoped, tag = 'scratch operand']
  %s0 = inlined_call_operand.vmem [shape: bf16[32,256], index: 0, kind: input, shape index: {}]
  %s1 = inlined_call_operand.vmem [shape: f32[1,256], index: 1, kind: input, shape index: {}]
  %s2 = inlined_call_operand.vmem [shape: bf16[32,288], index: 2, kind: input, shape index: {}]
  %s3 = inlined_call_operand.vmem [shape: f32[32,1], index: 3, kind: input, shape index: {}]
  %s4 = inlined_call_operand.vmem [shape: bf16[2,8,288], index: 4, kind: input, shape index: {}]
  %s5 = inlined_call_operand.vmem [shape: bf16[2,32,8], index: 5, kind: input, shape index: {}]
  %s6 = inlined_call_operand.vmem [shape: bf16[8,32], index: 6, kind: input, shape index: {}]
  %s7 = inlined_call_operand.vmem [shape: f32[8,1], index: 7, kind: input, shape index: {}]
  %s8 = inlined_call_operand.vmem [shape: f32[16,8], index: 8, kind: input, shape index: {}]
  %s9 = inlined_call_operand.vmem [shape: f32[8,16], index: 9, kind: input, shape index: {}]
  %s10 = inlined_call_operand.vmem [shape: f32[8,256], index: 10, kind: output, shape index: {0}]
  %s11 = inlined_call_operand.hbm [shape: f32[1,1], index: 11, kind: output, shape index: {1}]
  %s12 = inlined_call_operand.hbm [shape: f32[1,1], index: 12, kind: output, shape index: {2}]
  %13 = xla_tuple %s10, %s11, %s12
  %s14 = sld [smem:[#allocation0]]
  $region66: #{vqvae_forward.7} parent=0
    _
  %s16 = ssub.s32 1, %s14
  %s17 = scalar_select 0, %s16, %s14
  $region1: #{vqvae_forward.7} parent=0
    #allocation3 [shape = 'u8[512]{0}', space=vmem, size = 0x400, scoped, tag = 'output window, operand 1, single buffered']
    #allocation4 [shape = 's32[1]{0}', space=sflag, size = 0x4, scoped, tag = 'scoped memory for vqvae_forward.7']
    #allocation5 [shape = 'u8[512]{0}', space=vmem, size = 0x400, scoped, tag = 'output window, operand 2, single buffered']
    #allocation6 [shape = 's32[1]{0}', space=sflag, size = 0x4, scoped, tag = 'scoped memory for vqvae_forward.7']
    %18 = vsyncpa [#allocation4], 0
    %19 = vsyncpa [#allocation6], 0
    // Predicated region
    $region2: #{vqvae_forward.7} parent=1 // pred_check
      _
    $region3: #{vqvae_forward.7} parent=1 // pred_check_branch
      %21 = sbr.rel (0) target = $region5
    $region4: #{vqvae_forward.7} parent=1 // pred_region
      _
    $region5: #{vqvae_forward.7} parent=1 // pred_fallthru
      _
    // Predicated region
    $region6: #{vqvae_forward.7} parent=1 // pred_check
      _
    $region7: #{vqvae_forward.7} parent=1 // pred_check_branch
      %23 = sbr.rel (0) target = $region9
    $region8: #{vqvae_forward.7} parent=1 // pred_region
      _
    $region9: #{vqvae_forward.7} parent=1 // pred_fallthru
      _
    // Predicated region
    $region10: #{vqvae_forward.7} parent=1 // pred_check
      _
    $region11: #{vqvae_forward.7} parent=1 // pred_check_branch
      %25 = sbr.rel (0) target = $region13
    $region12: #{vqvae_forward.7} parent=1 // pred_region
      _
    $region13: #{vqvae_forward.7} parent=1 // pred_fallthru
      _
    // Predicated region
    $region14: #{vqvae_forward.7} parent=1 // pred_check
      _
    $region15: #{vqvae_forward.7} parent=1 // pred_check_branch
      %27 = sbr.rel (0) target = $region17
    $region16: #{vqvae_forward.7} parent=1 // pred_region
      _
    $region17: #{vqvae_forward.7} parent=1 // pred_fallthru
      _
    // Predicated region
    $region18: #{vqvae_forward.7} parent=1 // pred_check
      _
    $region19: #{vqvae_forward.7} parent=1 // pred_check_branch
      %29 = sbr.rel (0) target = $region21
    $region20: #{vqvae_forward.7} parent=1 // pred_region
      _
    $region21: #{vqvae_forward.7} parent=1 // pred_fallthru
      _
    // Predicated region
    $region22: #{vqvae_forward.7} parent=1 // pred_check
      _
    $region23: #{vqvae_forward.7} parent=1 // pred_check_branch
      %31 = sbr.rel (0) target = $region25
    $region24: #{vqvae_forward.7} parent=1 // pred_region
      _
    $region25: #{vqvae_forward.7} parent=1 // pred_fallthru
      _
    // Predicated region
    $region26: #{vqvae_forward.7} parent=1 // pred_check
      _
    $region27: #{vqvae_forward.7} parent=1 // pred_check_branch
      %33 = sbr.rel (0) target = $region29
    $region28: #{vqvae_forward.7} parent=1 // pred_region
      _
    $region29: #{vqvae_forward.7} parent=1 // pred_fallthru
      _
    // Predicated region
    $region30: #{vqvae_forward.7} parent=1 // pred_check
      _
    $region31: #{vqvae_forward.7} parent=1 // pred_check_branch
      %35 = sbr.rel (0) target = $region33
    $region32: #{vqvae_forward.7} parent=1 // pred_region
      _
    $region33: #{vqvae_forward.7} parent=1 // pred_fallthru
      _
    // Predicated region
    $region34: #{vqvae_forward.7} parent=1 // pred_check
      _
    $region35: #{vqvae_forward.7} parent=1 // pred_check_branch
      %37 = sbr.rel (0) target = $region37
    $region36: #{vqvae_forward.7} parent=1 // pred_region
      _
    $region37: #{vqvae_forward.7} parent=1 // pred_fallthru
      _
    // Predicated region
    $region38: #{vqvae_forward.7} parent=1 // pred_check
      _
    $region39: #{vqvae_forward.7} parent=1 // pred_check_branch
      %39 = sbr.rel (0) target = $region41
    $region40: #{vqvae_forward.7} parent=1 // pred_region
      _
    $region41: #{vqvae_forward.7} parent=1 // pred_fallthru
      _
    %v41 = vld [vmem:[%s1] sm:$0x3]
    %v42 = vld [vmem:[%s0] sm:$0xff]
    %v43 = vld [vmem:[%s0 + $0x8] sm:$0xff]
    %v44 = vld [vmem:[%s0 + $0x10] sm:$0xff]
    %v45 = vld [vmem:[%s0 + $0x18] sm:$0xff]
    %v46 = vld [vmem:[%s2] sm:$0xff]
    %v47 = vld [vmem:[%s2 + $0x8] sm:$0xf]
    %v48 = vld [vmem:[%s2 + $0xc] sm:$0xff]
    %v49 = vld [vmem:[%s2 + $0x14] sm:$0xf]
    %v50 = vld [vmem:[%s2 + $0x18] sm:$0xff]
    %v51 = vld [vmem:[%s2 + $0x20] sm:$0xf]
    %v52 = vld [vmem:[%s2 + $0x24] sm:$0xff]
    %v53 = vld [vmem:[%s2 + $0x2c] sm:$0xf]
    %v58 = vunpack.c.l.b16 %v42
    %v59 = vunpack.c.h.b16 %v42
    %v60 = vunpack.c.l.b16 %v43
    %v61 = vunpack.c.h.b16 %v43
    %v62 = vunpack.c.l.b16 %v44
    %v63 = vunpack.c.h.b16 %v44
    %v64 = vunpack.c.l.b16 %v45
    %v65 = vunpack.c.h.b16 %v45
    %v66 = vpack.c.b16 %v60, %v58
    %v67 = vpack.c.b16 %v61, %v59
    %v68 = vpack.c.b16 %v64, %v62
    %v69 = vpack.c.b16 %v65, %v63
    %74 = vrot.lane.b32.xlu0 %v66, 127
    %v75 = vpop.permute.xlu0 %74
    %76 = vrot.lane.b32.xlu0 %v67, 127
    %v77 = vpop.permute.xlu0 %76
    %78 = vrot.lane.b32.xlu0 %v68, 127
    %v79 = vpop.permute.xlu0 %78
    %80 = vrot.lane.b32.xlu0 %v69, 127
    %v81 = vpop.permute.xlu0 %80
    %vm82 = vcmask 1039360
    %v83 = vsel %vm82, %v75, %v77
    %v84 = vsel %vm82, %v79, %v81
    %89 = vrot.lane.b32.xlu0 %v66, 126
    %v90 = vpop.permute.xlu0 %89
    %91 = vrot.lane.b32.xlu0 %v67, 126
    %v92 = vpop.permute.xlu0 %91
    %93 = vrot.lane.b32.xlu0 %v68, 126
    %v94 = vpop.permute.xlu0 %93
    %95 = vrot.lane.b32.xlu0 %v69, 126
    %v96 = vpop.permute.xlu0 %95
    %vm97 = vcmask 1031168
    %v98 = vsel %vm97, %v90, %v92
    %v99 = vsel %vm97, %v94, %v96
    %104 = vrot.lane.b32.xlu0 %v66, 118
    %v105 = vpop.permute.xlu0 %104
    %106 = vrot.lane.b32.xlu0 %v67, 118
    %v107 = vpop.permute.xlu0 %106
    %108 = vrot.lane.b32.xlu0 %v68, 118
    %v109 = vpop.permute.xlu0 %108
    %110 = vrot.lane.b32.xlu0 %v69, 118
    %v111 = vpop.permute.xlu0 %110
    %vm112 = vcmask 965632
    %v113 = vsel %vm112, %v105, %v107
    %v114 = vsel %vm112, %v109, %v111
    %119 = vrot.lane.b32.xlu0 %v66, 117
    %v120 = vpop.permute.xlu0 %119
    %121 = vrot.lane.b32.xlu0 %v67, 117
    %v122 = vpop.permute.xlu0 %121
    %123 = vrot.lane.b32.xlu0 %v68, 117
    %v124 = vpop.permute.xlu0 %123
    %125 = vrot.lane.b32.xlu0 %v69, 117
    %v126 = vpop.permute.xlu0 %125
    %vm127 = vcmask 957440
    %v128 = vsel %vm127, %v120, %v122
    %v129 = vsel %vm127, %v124, %v126
    %134 = vrot.lane.b32.xlu0 %v66, 116
    %v135 = vpop.permute.xlu0 %134
    %136 = vrot.lane.b32.xlu0 %v67, 116
    %v137 = vpop.permute.xlu0 %136
    %138 = vrot.lane.b32.xlu0 %v68, 116
    %v139 = vpop.permute.xlu0 %138
    %140 = vrot.lane.b32.xlu0 %v69, 116
    %v141 = vpop.permute.xlu0 %140
    %vm142 = vcmask 949248
    %v143 = vsel %vm142, %v135, %v137
    %v144 = vsel %vm142, %v139, %v141
    %149 = vrot.lane.b32.xlu0 %v66, 108
    %v150 = vpop.permute.xlu0 %149
    %151 = vrot.lane.b32.xlu0 %v67, 108
    %v152 = vpop.permute.xlu0 %151
    %153 = vrot.lane.b32.xlu0 %v68, 108
    %v154 = vpop.permute.xlu0 %153
    %155 = vrot.lane.b32.xlu0 %v69, 108
    %v156 = vpop.permute.xlu0 %155
    %vm157 = vcmask 883712
    %v158 = vsel %vm157, %v150, %v152
    %v159 = vsel %vm157, %v154, %v156
    %164 = vrot.lane.b32.xlu0 %v66, 107
    %v165 = vpop.permute.xlu0 %164
    %166 = vrot.lane.b32.xlu0 %v67, 107
    %v167 = vpop.permute.xlu0 %166
    %168 = vrot.lane.b32.xlu0 %v68, 107
    %v169 = vpop.permute.xlu0 %168
    %170 = vrot.lane.b32.xlu0 %v69, 107
    %v171 = vpop.permute.xlu0 %170
    %vm172 = vcmask 875520
    %v173 = vsel %vm172, %v165, %v167
    %v174 = vsel %vm172, %v169, %v171
    %179 = vrot.lane.b32.xlu0 %v66, 106
    %v180 = vpop.permute.xlu0 %179
    %181 = vrot.lane.b32.xlu0 %v67, 106
    %v182 = vpop.permute.xlu0 %181
    %183 = vrot.lane.b32.xlu0 %v68, 106
    %v184 = vpop.permute.xlu0 %183
    %185 = vrot.lane.b32.xlu0 %v69, 106
    %v186 = vpop.permute.xlu0 %185
    %vm187 = vcmask 867328
    %v188 = vsel %vm187, %v180, %v182
    %v189 = vsel %vm187, %v184, %v186
    %v194 = vld [vmem:[%s3] sm:$0xff]
    %v195 = vld [vmem:[%s3 + $0x8] sm:$0xff]
    %v196 = vld [vmem:[%s3 + $0x10] sm:$0xff]
    %v197 = vld [vmem:[%s3 + $0x18] sm:$0xff]
    %199 = vset.pattern.permute.xlu0 0
    %200 = vperm.xlu0 %199, %v194
    %v201 = vpop.permute.xlu0 %200
    %204 = vset.pattern.permute.xlu0 0
    %205 = vperm.xlu0 %204, %v195
    %v206 = vpop.permute.xlu0 %205
    %209 = vset.pattern.permute.xlu0 0
    %210 = vperm.xlu0 %209, %v196
    %v211 = vpop.permute.xlu0 %210
    %214 = vset.pattern.permute.xlu0 0
    %215 = vperm.xlu0 %214, %v197
    %v216 = vpop.permute.xlu0 %215
    %v226 = vunpack.c.l.b16 %v46
    %v227 = vunpack.c.h.b16 %v46
    %v228 = vunpack.c.l.b16 %v47
    %v229 = vunpack.c.l.b16 %v48
    %v230 = vunpack.c.h.b16 %v48
    %v231 = vunpack.c.l.b16 %v49
    %v232 = vunpack.c.l.b16 %v50
    %v233 = vunpack.c.h.b16 %v50
    %v234 = vunpack.c.l.b16 %v51
    %v235 = vunpack.c.l.b16 %v52
    %v236 = vunpack.c.h.b16 %v52
    %v237 = vunpack.c.l.b16 %v53
    %v238 = vpack.c.b16 %v229, %v226
    %v239 = vpack.c.b16 %v230, %v227
    %v240 = vpack.c.b16 %v231, %v228
    %v241 = vpack.c.b16 %v235, %v232
    %v242 = vpack.c.b16 %v236, %v233
    %v243 = vpack.c.b16 %v237, %v234
    %vm248 = vcmask 261120
    %v250 = vsel %vm248, %v240, 0
    %v253 = vsel %vm248, %v243, 0
    %255 = vmatprep.subr.bf16.mxu0 %v67
    %256 = vmatpush1.bf16.msra.mxu0 %v66
    %257 = vmatprep.subr.bf16.mxu0 %v69
    %258 = vmatpush1.bf16.msra.mxu0 %v68
    %259 = vmatprep.subr.bf16.mxu0 %v77
    %260 = vmatpush1.bf16.msra.mxu0 %v83
    %261 = vmatprep.subr.bf16.mxu0 %v81
    %262 = vmatpush1.bf16.msra.mxu0 %v84
    %263 = vmatprep.subr.bf16.mxu0 %v92
    %264 = vmatpush1.bf16.msra.mxu0 %v98
    %265 = vmatprep.subr.bf16.mxu0 %v96
    %266 = vmatpush1.bf16.msra.mxu0 %v99
    %267 = vmatprep.subr.bf16.mxu0 %v107
    %268 = vmatpush1.bf16.msra.mxu0 %v113
    %269 = vmatprep.subr.bf16.mxu0 %v111
    %270 = vmatpush1.bf16.msra.mxu0 %v114
    %271 = vmatprep.subr.bf16.mxu0 %v122
    %272 = vmatpush1.bf16.msra.mxu0 %v128
    %273 = vmatprep.subr.bf16.mxu0 %v126
    %274 = vmatpush1.bf16.msra.mxu0 %v129
    %275 = vmatprep.subr.bf16.mxu0 %v137
    %276 = vmatpush1.bf16.msra.mxu0 %v143
    %277 = vmatprep.subr.bf16.mxu0 %v141
    %278 = vmatpush1.bf16.msra.mxu0 %v144
    %279 = vmatprep.subr.bf16.mxu0 %v152
    %280 = vmatpush1.bf16.msra.mxu0 %v158
    %281 = vmatprep.subr.bf16.mxu0 %v156
    %282 = vmatpush1.bf16.msra.mxu0 %v159
    %283 = vmatprep.subr.bf16.mxu0 %v167
    %284 = vmatpush1.bf16.msra.mxu0 %v173
    %285 = vmatprep.subr.bf16.mxu0 %v171
    %286 = vmatpush1.bf16.msra.mxu0 %v174
    %287 = vmatprep.mubr.bf16.mxu0 %v239
    %288 = vmatmul.mubr.bf16.gmra.mrb[0].mxu0 %v238
    %v289 = vpop.f32.mrb[0].mxu0
    %v290 = vadd.f32 %v201, %v289
    %v291 = vpop.f32.mrb[0].mxu0
    %v292 = vadd.f32 %v201, %v291
    %v293 = vpop.f32.mrb[0].mxu0
    %v294 = vadd.f32 %v206, %v293
    %v295 = vpop.f32.mrb[0].mxu0
    %v296 = vadd.f32 %v206, %v295
    %297 = vmatprep.mubr.bf16.mxu0 %v242
    %298 = vmatmul.mubr.bf16.gmra.mrb[0].mxu0 %v241
    %v299 = vpop.f32.mrb[0].mxu0
    %v300 = vadd.f32 %v211, %v299
    %v301 = vpop.f32.mrb[0].mxu0
    %v302 = vadd.f32 %v211, %v301
    %v303 = vpop.f32.mrb[0].mxu0
    %v304 = vadd.f32 %v216, %v303
    %v305 = vpop.f32.mrb[0].mxu0
    %v306 = vadd.f32 %v216, %v305
    %307 = vdwg.mxu0
    %308 = vmatprep.subr.bf16.mxu0 %v182
    %309 = vmatpush1.bf16.msra.mxu0 %v188
    %310 = vmatprep.subr.bf16.mxu0 %v186
    %311 = vmatpush1.bf16.msra.mxu0 %v189
    %312 = vmatprep.subr.bf16.mxu0 0
    %313 = vmatpush1.bf16.msra.mxu0 0
    %314 = vmatprep.subr.bf16.mxu0 0
    %315 = vmatpush1.bf16.msra.mxu0 0
    %316 = vmatprep.subr.bf16.mxu0 0
    %317 = vmatpush1.bf16.msra.mxu0 0
    %318 = vmatprep.subr.bf16.mxu0 0
    %319 = vmatpush1.bf16.msra.mxu0 0
    %320 = vmatprep.subr.bf16.mxu0 0
    %321 = vmatpush1.bf16.msra.mxu0 0
    %322 = vmatprep.subr.bf16.mxu0 0
    %323 = vmatpush1.bf16.msra.mxu0 0
    %324 = vmatprep.subr.bf16.mxu0 0
    %325 = vmatpush1.bf16.msra.mxu0 0
    %326 = vmatprep.subr.bf16.mxu0 0
    %327 = vmatpush1.bf16.msra.mxu0 0
    %328 = vmatprep.subr.bf16.mxu0 0
    %329 = vmatpush1.bf16.msra.mxu0 0
    %330 = vmatprep.subr.bf16.mxu0 0
    %331 = vmatpush1.bf16.msra.mxu0 0
    %332 = vmatprep.subr.bf16.mxu0 0
    %333 = vmatpush1.bf16.msra.mxu0 0
    %334 = vmatprep.subr.bf16.mxu0 0
    %335 = vmatpush1.bf16.msra.mxu0 0
    %336 = vmatprep.subr.bf16.mxu0 0
    %337 = vmatpush1.bf16.msra.mxu0 0
    %338 = vmatprep.subr.bf16.mxu0 0
    %339 = vmatpush1.bf16.msra.mxu0 0
    %340 = vmatprep.mubr.bf16.mxu0 0
    %341 = vmatmul.mubr.bf16.gmra.mrb[0].mxu0 %v250
    %v342 = vpop.f32.mrb[0].mxu0
    %v343 = vadd.f32 %v290, %v342
    %v344 = vpop.f32.mrb[0].mxu0
    %v345 = vadd.f32 %v292, %v344
    %v346 = vpop.f32.mrb[0].mxu0
    %v347 = vadd.f32 %v294, %v346
    %v348 = vpop.f32.mrb[0].mxu0
    %v349 = vadd.f32 %v296, %v348
    %350 = vmatprep.mubr.bf16.mxu0 0
    %351 = vmatmul.mubr.bf16.gmra.mrb[0].mxu0 %v253
    %v352 = vpop.f32.mrb[0].mxu0
    %v353 = vadd.f32 %v300, %v352
    %v354 = vpop.f32.mrb[0].mxu0
    %v355 = vadd.f32 %v302, %v354
    %v356 = vpop.f32.mrb[0].mxu0
    %v357 = vadd.f32 %v304, %v356
    %v358 = vpop.f32.mrb[0].mxu0
    %v359 = vadd.f32 %v306, %v358
    %360 = vdwg.mxu0
    %361 = vst [vmem:[#allocation2] sm:$0xff] 0
    %362 = vst [vmem:[#allocation2 + $0x8] sm:$0xff] 0
    %363 = vst [vmem:[#allocation2 + $0x10] sm:$0xff] 0
    %364 = vst [vmem:[#allocation2 + $0x18] sm:$0xff] 0
    %v366 = vlaneseq
    %v367 = vshrl.u32 %v366, 7
    %v368 = vsub.s32 0, %v367
    %v369 = vrot.slane %v41, %v368
    %v370 = vlaneseq
    %v371 = vshrl.u32 %v370, 7
    %v372 = vsub.s32 1, %v371
    %v373 = vrot.slane %v41, %v372
    %376 = vrot.lane.b32.xlu0 %v369, 117
    %v377 = vpop.permute.xlu0 %376
    %378 = vrot.lane.b32.xlu0 %v373, 117
    %v379 = vpop.permute.xlu0 %378
    %vm380 = vcmask 957440
    %v381 = vsel %vm380, %v377, %v379
    %v384 = vmul.f32 %v343, %v381
    %v385 = vmul.f32 %v345, %v379
    %v386 = vmul.f32 %v347, %v381
    %v387 = vmul.f32 %v349, %v379
    %v388 = vmul.f32 %v353, %v381
    %v389 = vmul.f32 %v355, %v379
    %v390 = vmul.f32 %v357, %v381
    %v391 = vmul.f32 %v359, %v379
    %v392 = vpack.c.bf16 %v386, %v384
    %v393 = vpack.c.bf16 %v387, %v385
    %v394 = vpack.c.bf16 %v390, %v388
    %v395 = vpack.c.bf16 %v391, %v389
    %400 = vrot.lane.b32.xlu0 %v392, 11
    %v401 = vpop.permute.xlu0 %400
    %402 = vrot.lane.b32.xlu0 %v393, 11
    %v403 = vpop.permute.xlu0 %402
    %404 = vrot.lane.b32.xlu0 %v394, 11
    %v405 = vpop.permute.xlu0 %404
    %406 = vrot.lane.b32.xlu0 %v395, 11
    %v407 = vpop.permute.xlu0 %406
    %vm408 = vcmask 89088
    %v409 = vsel %vm408, %v401, %v403
    %v410 = vsel %vm408, %v405, %v407
    %vm415 = vcmask 1047640
    %416 = vst.msk [vmem:[#allocation2] sm:$0xff] %vm415, %v401
    %vm417 = vcmask 498688
    %418 = vst.msk [vmem:[#allocation2 + $0x8] sm:$0xff] %vm417, %v409
    %419 = vst.msk [vmem:[#allocation2 + $0x10] sm:$0xff] %vm415, %v405
    %420 = vst.msk [vmem:[#allocation2 + $0x18] sm:$0xff] %vm417, %v410
    %v421 = vld [vmem:[#allocation2] sm:$0xff]
    %v422 = vld [vmem:[#allocation2 + $0x8] sm:$0xff]
    %v423 = vld [vmem:[#allocation2 + $0x10] sm:$0xff]
    %v424 = vld [vmem:[#allocation2 + $0x18] sm:$0xff]
    %v425 = vmax.bf16 %v421, 0
    %v426 = vmax.bf16 %v422, 0
    %v427 = vmax.bf16 %v423, 0
    %v428 = vmax.bf16 %v424, 0
    %v429 = vld [vmem:[%s4] sm:$0xff]
    %v430 = vld [vmem:[%s4 + $0x8] sm:$0xf]
    %435 = vrot.lane.b32.xlu0 %v425, 127
    %v436 = vpop.permute.xlu0 %435
    %437 = vrot.lane.b32.xlu0 %v426, 127
    %v438 = vpop.permute.xlu0 %437
    %439 = vrot.lane.b32.xlu0 %v427, 127
    %v440 = vpop.permute.xlu0 %439
    %441 = vrot.lane.b32.xlu0 %v428, 127
    %v442 = vpop.permute.xlu0 %441
    %v443 = vsel %vm82, %v436, %v438
    %v444 = vsel %vm82, %v440, %v442
    %449 = vrot.lane.b32.xlu0 %v425, 126
    %v450 = vpop.permute.xlu0 %449
    %451 = vrot.lane.b32.xlu0 %v426, 126
    %v452 = vpop.permute.xlu0 %451
    %453 = vrot.lane.b32.xlu0 %v427, 126
    %v454 = vpop.permute.xlu0 %453
    %455 = vrot.lane.b32.xlu0 %v428, 126
    %v456 = vpop.permute.xlu0 %455
    %v457 = vsel %vm97, %v450, %v452
    %v458 = vsel %vm97, %v454, %v456
    %463 = vrot.lane.b32.xlu0 %v425, 118
    %v464 = vpop.permute.xlu0 %463
    %465 = vrot.lane.b32.xlu0 %v426, 118
    %v466 = vpop.permute.xlu0 %465
    %467 = vrot.lane.b32.xlu0 %v427, 118
    %v468 = vpop.permute.xlu0 %467
    %469 = vrot.lane.b32.xlu0 %v428, 118
    %v470 = vpop.permute.xlu0 %469
    %v471 = vsel %vm112, %v464, %v466
    %v472 = vsel %vm112, %v468, %v470
    %477 = vrot.lane.b32.xlu0 %v425, 117
    %v478 = vpop.permute.xlu0 %477
    %479 = vrot.lane.b32.xlu0 %v426, 117
    %v480 = vpop.permute.xlu0 %479
    %481 = vrot.lane.b32.xlu0 %v427, 117
    %v482 = vpop.permute.xlu0 %481
    %483 = vrot.lane.b32.xlu0 %v428, 117
    %v484 = vpop.permute.xlu0 %483
    %v485 = vsel %vm127, %v478, %v480
    %v486 = vsel %vm127, %v482, %v484
    %491 = vrot.lane.b32.xlu0 %v425, 116
    %v492 = vpop.permute.xlu0 %491
    %493 = vrot.lane.b32.xlu0 %v426, 116
    %v494 = vpop.permute.xlu0 %493
    %495 = vrot.lane.b32.xlu0 %v427, 116
    %v496 = vpop.permute.xlu0 %495
    %497 = vrot.lane.b32.xlu0 %v428, 116
    %v498 = vpop.permute.xlu0 %497
    %v499 = vsel %vm142, %v492, %v494
    %v500 = vsel %vm142, %v496, %v498
    %505 = vrot.lane.b32.xlu0 %v425, 108
    %v506 = vpop.permute.xlu0 %505
    %507 = vrot.lane.b32.xlu0 %v426, 108
    %v508 = vpop.permute.xlu0 %507
    %509 = vrot.lane.b32.xlu0 %v427, 108
    %v510 = vpop.permute.xlu0 %509
    %511 = vrot.lane.b32.xlu0 %v428, 108
    %v512 = vpop.permute.xlu0 %511
    %v513 = vsel %vm157, %v506, %v508
    %v514 = vsel %vm157, %v510, %v512
    %519 = vrot.lane.b32.xlu0 %v425, 107
    %v520 = vpop.permute.xlu0 %519
    %521 = vrot.lane.b32.xlu0 %v426, 107
    %v522 = vpop.permute.xlu0 %521
    %523 = vrot.lane.b32.xlu0 %v427, 107
    %v524 = vpop.permute.xlu0 %523
    %525 = vrot.lane.b32.xlu0 %v428, 107
    %v526 = vpop.permute.xlu0 %525
    %v527 = vsel %vm172, %v520, %v522
    %v528 = vsel %vm172, %v524, %v526
    %533 = vrot.lane.b32.xlu0 %v425, 106
    %v534 = vpop.permute.xlu0 %533
    %535 = vrot.lane.b32.xlu0 %v426, 106
    %v536 = vpop.permute.xlu0 %535
    %537 = vrot.lane.b32.xlu0 %v427, 106
    %v538 = vpop.permute.xlu0 %537
    %539 = vrot.lane.b32.xlu0 %v428, 106
    %v540 = vpop.permute.xlu0 %539
    %v541 = vsel %vm187, %v534, %v536
    %v542 = vsel %vm187, %v538, %v540
    %v549 = vunpack.c.l.b16 %v429
    %v550 = vunpack.c.h.b16 %v429
    %v551 = vunpack.c.l.b16 %v430
    %v552 = vpack.c.b16 %v549, %v549
    %v553 = vpack.c.b16 %v550, %v550
    %v554 = vpack.c.b16 %v551, %v551
    %v558 = vsel %vm248, %v554, 0
    %560 = vmatprep.subr.bf16.mxu0 %v426
    %561 = vmatpush1.bf16.msra.mxu0 %v425
    %562 = vmatprep.subr.bf16.mxu0 %v428
    %563 = vmatpush1.bf16.msra.mxu0 %v427
    %564 = vmatprep.subr.bf16.mxu0 %v438
    %565 = vmatpush1.bf16.msra.mxu0 %v443
    %566 = vmatprep.subr.bf16.mxu0 %v442
    %567 = vmatpush1.bf16.msra.mxu0 %v444
    %568 = vmatprep.subr.bf16.mxu0 %v452
    %569 = vmatpush1.bf16.msra.mxu0 %v457
    %570 = vmatprep.subr.bf16.mxu0 %v456
    %571 = vmatpush1.bf16.msra.mxu0 %v458
    %572 = vmatprep.subr.bf16.mxu0 %v466
    %573 = vmatpush1.bf16.msra.mxu0 %v471
    %574 = vmatprep.subr.bf16.mxu0 %v470
    %575 = vmatpush1.bf16.msra.mxu0 %v472
    %576 = vmatprep.subr.bf16.mxu0 %v480
    %577 = vmatpush1.bf16.msra.mxu0 %v485
    %578 = vmatprep.subr.bf16.mxu0 %v484
    %579 = vmatpush1.bf16.msra.mxu0 %v486
    %580 = vmatprep.subr.bf16.mxu0 %v494
    %581 = vmatpush1.bf16.msra.mxu0 %v499
    %582 = vmatprep.subr.bf16.mxu0 %v498
    %583 = vmatpush1.bf16.msra.mxu0 %v500
    %584 = vmatprep.subr.bf16.mxu0 %v508
    %585 = vmatpush1.bf16.msra.mxu0 %v513
    %586 = vmatprep.subr.bf16.mxu0 %v512
    %587 = vmatpush1.bf16.msra.mxu0 %v514
    %588 = vmatprep.subr.bf16.mxu0 %v522
    %589 = vmatpush1.bf16.msra.mxu0 %v527
    %590 = vmatprep.subr.bf16.mxu0 %v526
    %591 = vmatpush1.bf16.msra.mxu0 %v528
    %592 = vmatprep.mubr.bf16.mxu0 %v553
    %593 = vmatmul.mubr.bf16.gmra.mrb[0].mxu0 %v552
    %v594 = vpop.f32.mrb[0].mxu0
    %v595 = vadd.f32 0.0, %v594
    %v596 = vpop.f32.mrb[0].mxu0
    %v597 = vadd.f32 0.0, %v596
    %v598 = vpop.f32.mrb[0].mxu0
    %v599 = vpop.f32.mrb[0].mxu0
    %600 = vdwg.mxu0
    %601 = vmatprep.subr.bf16.mxu0 %v536
    %602 = vmatpush1.bf16.msra.mxu0 %v541
    %603 = vmatprep.subr.bf16.mxu0 %v540
    %604 = vmatpush1.bf16.msra.mxu0 %v542
    %605 = vmatprep.subr.bf16.mxu0 0
    %606 = vmatpush1.bf16.msra.mxu0 0
    %607 = vmatprep.subr.bf16.mxu0 0
    %608 = vmatpush1.bf16.msra.mxu0 0
    %609 = vmatprep.subr.bf16.mxu0 0
    %610 = vmatpush1.bf16.msra.mxu0 0
    %611 = vmatprep.subr.bf16.mxu0 0
    %612 = vmatpush1.bf16.msra.mxu0 0
    %613 = vmatprep.subr.bf16.mxu0 0
    %614 = vmatpush1.bf16.msra.mxu0 0
    %615 = vmatprep.subr.bf16.mxu0 0
    %616 = vmatpush1.bf16.msra.mxu0 0
    %617 = vmatprep.subr.bf16.mxu0 0
    %618 = vmatpush1.bf16.msra.mxu0 0
    %619 = vmatprep.subr.bf16.mxu0 0
    %620 = vmatpush1.bf16.msra.mxu0 0
    %621 = vmatprep.subr.bf16.mxu0 0
    %622 = vmatpush1.bf16.msra.mxu0 0
    %623 = vmatprep.subr.bf16.mxu0 0
    %624 = vmatpush1.bf16.msra.mxu0 0
    %625 = vmatprep.subr.bf16.mxu0 0
    %626 = vmatpush1.bf16.msra.mxu0 0
    %627 = vmatprep.subr.bf16.mxu0 0
    %628 = vmatpush1.bf16.msra.mxu0 0
    %629 = vmatprep.subr.bf16.mxu0 0
    %630 = vmatpush1.bf16.msra.mxu0 0
    %631 = vmatprep.subr.bf16.mxu0 0
    %632 = vmatpush1.bf16.msra.mxu0 0
    %633 = vmatprep.mubr.bf16.mxu0 0
    %634 = vmatmul.mubr.bf16.gmra.mrb[0].mxu0 %v558
    %v635 = vpop.f32.mrb[0].mxu0
    %v636 = vadd.f32 %v595, %v635
    %v637 = vpop.f32.mrb[0].mxu0
    %v638 = vadd.f32 %v597, %v637
    %v639 = vpop.f32.mrb[0].mxu0
    %v640 = vpop.f32.mrb[0].mxu0
    %641 = vdwg.mxu0
    %v642 = vmax.f32 %v636, 0.0
    %v643 = vmax.f32 %v638, 0.0
    %v644 = vpack.c.bf16 %v642, %v642
    %v645 = vpack.c.bf16 %v643, %v643
    %v646 = vld [vmem:[%s5] sm:$0xf]
    %v647 = vld [vmem:[%s5 + $0x4] sm:$0xf]
    %v648 = vld [vmem:[%s5 + $0x8] sm:$0xf]
    %v649 = vld [vmem:[%s5 + $0xc] sm:$0xf]
    %v654 = vunpack.c.l.b16 %v646
    %v655 = vunpack.c.l.b16 %v647
    %v656 = vunpack.c.l.b16 %v648
    %v657 = vunpack.c.l.b16 %v649
    %v658 = vpack.c.b16 %v655, %v654
    %v659 = vpack.c.b16 %v657, %v656
    %vm660 = vcmask 64512
    %v662 = vsel %vm660, %v658, 0
    %v665 = vsel %vm660, %v659, 0
    %vm667 = vcmask 1043456
    %v669 = vsel %vm667, %v644, 0
    %v672 = vsel %vm667, %v645, 0
    %674 = vmatprep.subr.bf16.mxu0 %v672
    %675 = vmatpush1.bf16.msra.mxu0 %v669
    %676 = vmatprep.subr.bf16.mxu0 0
    %677 = vmatpush1.bf16.msra.mxu0 0
    %678 = vmatprep.subr.bf16.mxu0 0
    %679 = vmatpush1.bf16.msra.mxu0 0
    %680 = vmatprep.subr.bf16.mxu0 0
    %681 = vmatpush1.bf16.msra.mxu0 0
    %682 = vmatprep.subr.bf16.mxu0 0
    %683 = vmatpush1.bf16.msra.mxu0 0
    %684 = vmatprep.subr.bf16.mxu0 0
    %685 = vmatpush1.bf16.msra.mxu0 0
    %686 = vmatprep.subr.bf16.mxu0 0
    %687 = vmatpush1.bf16.msra.mxu0 0
    %688 = vmatprep.subr.bf16.mxu0 0
    %689 = vmatpush1.bf16.msra.mxu0 0
    %690 = vmatprep.subr.bf16.mxu0 0
    %691 = vmatpush1.bf16.msra.mxu0 0
    %692 = vmatprep.subr.bf16.mxu0 0
    %693 = vmatpush1.bf16.msra.mxu0 0
    %694 = vmatprep.subr.bf16.mxu0 0
    %695 = vmatpush1.bf16.msra.mxu0 0
    %696 = vmatprep.subr.bf16.mxu0 0
    %697 = vmatpush1.bf16.msra.mxu0 0
    %698 = vmatprep.subr.bf16.mxu0 0
    %699 = vmatpush1.bf16.msra.mxu0 0
    %700 = vmatprep.subr.bf16.mxu0 0
    %701 = vmatpush1.bf16.msra.mxu0 0
    %702 = vmatprep.subr.bf16.mxu0 0
    %703 = vmatpush1.bf16.msra.mxu0 0
    %704 = vmatprep.subr.bf16.mxu0 0
    %705 = vmatpush1.bf16.msra.mxu0 0
    %706 = vmatprep.mubr.bf16.mxu0 0
    %707 = vmatmul.mubr.bf16.gmra.mrb[0].mxu0 %v662
    %v708 = vpop.f32.mrb[0].mxu0
    %v709 = vadd.f32 0.0, %v708
    %v710 = vpop.f32.mrb[0].mxu0
    %v711 = vadd.f32 0.0, %v710
    %v712 = vpop.f32.mrb[0].mxu0
    %v713 = vadd.f32 0.0, %v712
    %v714 = vpop.f32.mrb[0].mxu0
    %v715 = vadd.f32 0.0, %v714
    %716 = vmatprep.mubr.bf16.mxu0 0
    %717 = vmatmul.mubr.bf16.gmra.mrb[0].mxu0 %v665
    %v718 = vpop.f32.mrb[0].mxu0
    %v719 = vadd.f32 0.0, %v718
    %v720 = vpop.f32.mrb[0].mxu0
    %v721 = vadd.f32 0.0, %v720
    %v722 = vpop.f32.mrb[0].mxu0
    %v723 = vadd.f32 0.0, %v722
    %v724 = vpop.f32.mrb[0].mxu0
    %v725 = vadd.f32 0.0, %v724
    %726 = vdwg.mxu0
    %v727 = vunpack.c.l.bf16 %v421
    %v728 = vunpack.c.l.bf16 %v422
    %v729 = vunpack.c.h.bf16 %v421
    %v730 = vunpack.c.h.bf16 %v422
    %v731 = vunpack.c.l.bf16 %v423
    %v732 = vunpack.c.l.bf16 %v424
    %v733 = vunpack.c.h.bf16 %v423
    %v734 = vunpack.c.h.bf16 %v424
    %743 = vrot.lane.b32.xlu0 %v709, 11
    %v744 = vpop.permute.xlu0 %743
    %745 = vrot.lane.b32.xlu0 %v711, 11
    %v746 = vpop.permute.xlu0 %745
    %747 = vrot.lane.b32.xlu0 %v713, 11
    %v748 = vpop.permute.xlu0 %747
    %749 = vrot.lane.b32.xlu0 %v715, 11
    %v750 = vpop.permute.xlu0 %749
    %751 = vrot.lane.b32.xlu0 %v719, 11
    %v752 = vpop.permute.xlu0 %751
    %753 = vrot.lane.b32.xlu0 %v721, 11
    %v754 = vpop.permute.xlu0 %753
    %755 = vrot.lane.b32.xlu0 %v723, 11
    %v756 = vpop.permute.xlu0 %755
    %757 = vrot.lane.b32.xlu0 %v725, 11
    %v758 = vpop.permute.xlu0 %757
    %vm759 = vcmask 89088
    %v760 = vsel %vm759, %v744, %v746
    %v761 = vsel %vm759, %v748, %v750
    %v762 = vsel %vm759, %v752, %v754
    %v763 = vsel %vm759, %v756, %v758
    %v772 = vadd.f32 %v727, %v744
    %v773 = vadd.f32 %v728, %v760
    %v774 = vadd.f32 %v729, %v748
    %v775 = vadd.f32 %v730, %v761
    %v776 = vadd.f32 %v731, %v752
    %v777 = vadd.f32 %v732, %v762
    %v778 = vadd.f32 %v733, %v756
    %v779 = vadd.f32 %v734, %v763
    %v780 = vmul.f32 %v772, %v369
    %v781 = vmul.f32 %v773, %v373
    %v782 = vmul.f32 %v774, %v369
    %v783 = vmul.f32 %v775, %v373
    %v784 = vmul.f32 %v776, %v369
    %v785 = vmul.f32 %v777, %v373
    %v786 = vmul.f32 %v778, %v369
    %v787 = vmul.f32 %v779, %v373
    %v788 = vpack.c.bf16 %v782, %v780
    %v789 = vpack.c.bf16 %v783, %v781
    %v790 = vpack.c.bf16 %v786, %v784
    %v791 = vpack.c.bf16 %v787, %v785
    %792 = vst.msk [vmem:[#allocation2] sm:$0xff] %vm415, %v788
    %793 = vst.msk [vmem:[#allocation2 + $0x8] sm:$0xff] %vm417, %v789
    %794 = vst.msk [vmem:[#allocation2 + $0x10] sm:$0xff] %vm415, %v790
    %795 = vst.msk [vmem:[#allocation2 + $0x18] sm:$0xff] %vm417, %v791
    %v796 = vld [vmem:[#allocation2] sm:$0xff]
    %v797 = vld [vmem:[#allocation2 + $0x8] sm:$0xff]
    %v798 = vld [vmem:[#allocation2 + $0x10] sm:$0xff]
    %v799 = vld [vmem:[#allocation2 + $0x18] sm:$0xff]
    %v800 = vmax.bf16 %v796, 0
    %v801 = vmax.bf16 %v797, 0
    %v802 = vmax.bf16 %v798, 0
    %v803 = vmax.bf16 %v799, 0
    %s804 = scalar_lea.vmem %s4, 12
    %v805 = vld [vmem:[%s804] sm:$0xff]
    %v806 = vld [vmem:[%s804 + $0x8] sm:$0xf]
    %811 = vrot.lane.b32.xlu0 %v800, 127
    %v812 = vpop.permute.xlu0 %811
    %813 = vrot.lane.b32.xlu0 %v801, 127
    %v814 = vpop.permute.xlu0 %813
    %815 = vrot.lane.b32.xlu0 %v802, 127
    %v816 = vpop.permute.xlu0 %815
    %817 = vrot.lane.b32.xlu0 %v803, 127
    %v818 = vpop.permute.xlu0 %817
    %v819 = vsel %vm82, %v812, %v814
    %v820 = vsel %vm82, %v816, %v818
    %825 = vrot.lane.b32.xlu0 %v800, 126
    %v826 = vpop.permute.xlu0 %825
    %827 = vrot.lane.b32.xlu0 %v801, 126
    %v828 = vpop.permute.xlu0 %827
    %829 = vrot.lane.b32.xlu0 %v802, 126
    %v830 = vpop.permute.xlu0 %829
    %831 = vrot.lane.b32.xlu0 %v803, 126
    %v832 = vpop.permute.xlu0 %831
    %v833 = vsel %vm97, %v826, %v828
    %v834 = vsel %vm97, %v830, %v832
    %839 = vrot.lane.b32.xlu0 %v800, 118
    %v840 = vpop.permute.xlu0 %839
    %841 = vrot.lane.b32.xlu0 %v801, 118
    %v842 = vpop.permute.xlu0 %841
    %843 = vrot.lane.b32.xlu0 %v802, 118
    %v844 = vpop.permute.xlu0 %843
    %845 = vrot.lane.b32.xlu0 %v803, 118
    %v846 = vpop.permute.xlu0 %845
    %v847 = vsel %vm112, %v840, %v842
    %v848 = vsel %vm112, %v844, %v846
    %853 = vrot.lane.b32.xlu0 %v800, 117
    %v854 = vpop.permute.xlu0 %853
    %855 = vrot.lane.b32.xlu0 %v801, 117
    %v856 = vpop.permute.xlu0 %855
    %857 = vrot.lane.b32.xlu0 %v802, 117
    %v858 = vpop.permute.xlu0 %857
    %859 = vrot.lane.b32.xlu0 %v803, 117
    %v860 = vpop.permute.xlu0 %859
    %v861 = vsel %vm127, %v854, %v856
    %v862 = vsel %vm127, %v858, %v860
    %867 = vrot.lane.b32.xlu0 %v800, 116
    %v868 = vpop.permute.xlu0 %867
    %869 = vrot.lane.b32.xlu0 %v801, 116
    %v870 = vpop.permute.xlu0 %869
    %871 = vrot.lane.b32.xlu0 %v802, 116
    %v872 = vpop.permute.xlu0 %871
    %873 = vrot.lane.b32.xlu0 %v803, 116
    %v874 = vpop.permute.xlu0 %873
    %v875 = vsel %vm142, %v868, %v870
    %v876 = vsel %vm142, %v872, %v874
    %881 = vrot.lane.b32.xlu0 %v800, 108
    %v882 = vpop.permute.xlu0 %881
    %883 = vrot.lane.b32.xlu0 %v801, 108
    %v884 = vpop.permute.xlu0 %883
    %885 = vrot.lane.b32.xlu0 %v802, 108
    %v886 = vpop.permute.xlu0 %885
    %887 = vrot.lane.b32.xlu0 %v803, 108
    %v888 = vpop.permute.xlu0 %887
    %v889 = vsel %vm157, %v882, %v884
    %v890 = vsel %vm157, %v886, %v888
    %895 = vrot.lane.b32.xlu0 %v800, 107
    %v896 = vpop.permute.xlu0 %895
    %897 = vrot.lane.b32.xlu0 %v801, 107
    %v898 = vpop.permute.xlu0 %897
    %899 = vrot.lane.b32.xlu0 %v802, 107
    %v900 = vpop.permute.xlu0 %899
    %901 = vrot.lane.b32.xlu0 %v803, 107
    %v902 = vpop.permute.xlu0 %901
    %v903 = vsel %vm172, %v896, %v898
    %v904 = vsel %vm172, %v900, %v902
    %909 = vrot.lane.b32.xlu0 %v800, 106
    %v910 = vpop.permute.xlu0 %909
    %911 = vrot.lane.b32.xlu0 %v801, 106
    %v912 = vpop.permute.xlu0 %911
    %913 = vrot.lane.b32.xlu0 %v802, 106
    %v914 = vpop.permute.xlu0 %913
    %915 = vrot.lane.b32.xlu0 %v803, 106
    %v916 = vpop.permute.xlu0 %915
    %v917 = vsel %vm187, %v910, %v912
    %v918 = vsel %vm187, %v914, %v916
    %v925 = vunpack.c.l.b16 %v805
    %v926 = vunpack.c.h.b16 %v805
    %v927 = vunpack.c.l.b16 %v806
    %v928 = vpack.c.b16 %v925, %v925
    %v929 = vpack.c.b16 %v926, %v926
    %v930 = vpack.c.b16 %v927, %v927
    %v934 = vsel %vm248, %v930, 0
    %936 = vmatprep.subr.bf16.mxu0 %v801
    %937 = vmatpush1.bf16.msra.mxu0 %v800
    %938 = vmatprep.subr.bf16.mxu0 %v803
    %939 = vmatpush1.bf16.msra.mxu0 %v802
    %940 = vmatprep.subr.bf16.mxu0 %v814
    %941 = vmatpush1.bf16.msra.mxu0 %v819
    %942 = vmatprep.subr.bf16.mxu0 %v818
    %943 = vmatpush1.bf16.msra.mxu0 %v820
    %944 = vmatprep.subr.bf16.mxu0 %v828
    %945 = vmatpush1.bf16.msra.mxu0 %v833
    %946 = vmatprep.subr.bf16.mxu0 %v832
    %947 = vmatpush1.bf16.msra.mxu0 %v834
    %948 = vmatprep.subr.bf16.mxu0 %v842
    %949 = vmatpush1.bf16.msra.mxu0 %v847
    %950 = vmatprep.subr.bf16.mxu0 %v846
    %951 = vmatpush1.bf16.msra.mxu0 %v848
    %952 = vmatprep.subr.bf16.mxu0 %v856
    %953 = vmatpush1.bf16.msra.mxu0 %v861
    %954 = vmatprep.subr.bf16.mxu0 %v860
    %955 = vmatpush1.bf16.msra.mxu0 %v862
    %956 = vmatprep.subr.bf16.mxu0 %v870
    %957 = vmatpush1.bf16.msra.mxu0 %v875
    %958 = vmatprep.subr.bf16.mxu0 %v874
    %959 = vmatpush1.bf16.msra.mxu0 %v876
    %960 = vmatprep.subr.bf16.mxu0 %v884
    %961 = vmatpush1.bf16.msra.mxu0 %v889
    %962 = vmatprep.subr.bf16.mxu0 %v888
    %963 = vmatpush1.bf16.msra.mxu0 %v890
    %964 = vmatprep.subr.bf16.mxu0 %v898
    %965 = vmatpush1.bf16.msra.mxu0 %v903
    %966 = vmatprep.subr.bf16.mxu0 %v902
    %967 = vmatpush1.bf16.msra.mxu0 %v904
    %968 = vmatprep.mubr.bf16.mxu0 %v929
    %969 = vmatmul.mubr.bf16.gmra.mrb[0].mxu0 %v928
    %v970 = vpop.f32.mrb[0].mxu0
    %v971 = vadd.f32 0.0, %v970
    %v972 = vpop.f32.mrb[0].mxu0
    %v973 = vadd.f32 0.0, %v972
    %v974 = vpop.f32.mrb[0].mxu0
    %v975 = vpop.f32.mrb[0].mxu0
    %976 = vdwg.mxu0
    %977 = vmatprep.subr.bf16.mxu0 %v912
    %978 = vmatpush1.bf16.msra.mxu0 %v917
    %979 = vmatprep.subr.bf16.mxu0 %v916
    %980 = vmatpush1.bf16.msra.mxu0 %v918
    %981 = vmatprep.subr.bf16.mxu0 0
    %982 = vmatpush1.bf16.msra.mxu0 0
    %983 = vmatprep.subr.bf16.mxu0 0
    %984 = vmatpush1.bf16.msra.mxu0 0
    %985 = vmatprep.subr.bf16.mxu0 0
    %986 = vmatpush1.bf16.msra.mxu0 0
    %987 = vmatprep.subr.bf16.mxu0 0
    %988 = vmatpush1.bf16.msra.mxu0 0
    %989 = vmatprep.subr.bf16.mxu0 0
    %990 = vmatpush1.bf16.msra.mxu0 0
    %991 = vmatprep.subr.bf16.mxu0 0
    %992 = vmatpush1.bf16.msra.mxu0 0
    %993 = vmatprep.subr.bf16.mxu0 0
    %994 = vmatpush1.bf16.msra.mxu0 0
    %995 = vmatprep.subr.bf16.mxu0 0
    %996 = vmatpush1.bf16.msra.mxu0 0
    %997 = vmatprep.subr.bf16.mxu0 0
    %998 = vmatpush1.bf16.msra.mxu0 0
    %999 = vmatprep.subr.bf16.mxu0 0
    %1000 = vmatpush1.bf16.msra.mxu0 0
    %1001 = vmatprep.subr.bf16.mxu0 0
    %1002 = vmatpush1.bf16.msra.mxu0 0
    %1003 = vmatprep.subr.bf16.mxu0 0
    %1004 = vmatpush1.bf16.msra.mxu0 0
    %1005 = vmatprep.subr.bf16.mxu0 0
    %1006 = vmatpush1.bf16.msra.mxu0 0
    %1007 = vmatprep.subr.bf16.mxu0 0
    %1008 = vmatpush1.bf16.msra.mxu0 0
    %1009 = vmatprep.mubr.bf16.mxu0 0
    %1010 = vmatmul.mubr.bf16.gmra.mrb[0].mxu0 %v934
    %v1011 = vpop.f32.mrb[0].mxu0
    %v1012 = vadd.f32 %v971, %v1011
    %v1013 = vpop.f32.mrb[0].mxu0
    %v1014 = vadd.f32 %v973, %v1013
    %v1015 = vpop.f32.mrb[0].mxu0
    %v1016 = vpop.f32.mrb[0].mxu0
    %1017 = vdwg.mxu0
    %v1018 = vmax.f32 %v1012, 0.0
    %v1019 = vmax.f32 %v1014, 0.0
    %v1020 = vpack.c.bf16 %v1018, %v1018
    %v1021 = vpack.c.bf16 %v1019, %v1019
    %s1022 = scalar_lea.vmem %s5, 16
    %v1023 = vld [vmem:[%s1022] sm:$0xf]
    %v1024 = vld [vmem:[%s1022 + $0x4] sm:$0xf]
    %v1025 = vld [vmem:[%s1022 + $0x8] sm:$0xf]
    %v1026 = vld [vmem:[%s1022 + $0xc] sm:$0xf]
    %v1031 = vunpack.c.l.b16 %v1023
    %v1032 = vunpack.c.l.b16 %v1024
    %v1033 = vunpack.c.l.b16 %v1025
    %v1034 = vunpack.c.l.b16 %v1026
    %v1035 = vpack.c.b16 %v1032, %v1031
    %v1036 = vpack.c.b16 %v1034, %v1033
    %v1038 = vsel %vm660, %v1035, 0
    %v1041 = vsel %vm660, %v1036, 0
    %v1044 = vsel %vm667, %v1020, 0
    %v1047 = vsel %vm667, %v1021, 0
    %1049 = vmatprep.subr.bf16.mxu0 %v1047
    %1050 = vmatpush1.bf16.msra.mxu0 %v1044
    %1051 = vmatprep.subr.bf16.mxu0 0
    %1052 = vmatpush1.bf16.msra.mxu0 0
    %1053 = vmatprep.subr.bf16.mxu0 0
    %1054 = vmatpush1.bf16.msra.mxu0 0
    %1055 = vmatprep.subr.bf16.mxu0 0
    %1056 = vmatpush1.bf16.msra.mxu0 0
    %1057 = vmatprep.subr.bf16.mxu0 0
    %1058 = vmatpush1.bf16.msra.mxu0 0
    %1059 = vmatprep.subr.bf16.mxu0 0
    %1060 = vmatpush1.bf16.msra.mxu0 0
    %1061 = vmatprep.subr.bf16.mxu0 0
    %1062 = vmatpush1.bf16.msra.mxu0 0
    %1063 = vmatprep.subr.bf16.mxu0 0
    %1064 = vmatpush1.bf16.msra.mxu0 0
    %1065 = vmatprep.subr.bf16.mxu0 0
    %1066 = vmatpush1.bf16.msra.mxu0 0
    %1067 = vmatprep.subr.bf16.mxu0 0
    %1068 = vmatpush1.bf16.msra.mxu0 0
    %1069 = vmatprep.subr.bf16.mxu0 0
    %1070 = vmatpush1.bf16.msra.mxu0 0
    %1071 = vmatprep.subr.bf16.mxu0 0
    %1072 = vmatpush1.bf16.msra.mxu0 0
    %1073 = vmatprep.subr.bf16.mxu0 0
    %1074 = vmatpush1.bf16.msra.mxu0 0
    %1075 = vmatprep.subr.bf16.mxu0 0
    %1076 = vmatpush1.bf16.msra.mxu0 0
    %1077 = vmatprep.subr.bf16.mxu0 0
    %1078 = vmatpush1.bf16.msra.mxu0 0
    %1079 = vmatprep.subr.bf16.mxu0 0
    %1080 = vmatpush1.bf16.msra.mxu0 0
    %1081 = vmatprep.mubr.bf16.mxu0 0
    %1082 = vmatmul.mubr.bf16.gmra.mrb[0].mxu0 %v1038
    %v1083 = vpop.f32.mrb[0].mxu0
    %v1084 = vadd.f32 0.0, %v1083
    %v1085 = vpop.f32.mrb[0].mxu0
    %v1086 = vadd.f32 0.0, %v1085
    %v1087 = vpop.f32.mrb[0].mxu0
    %v1088 = vadd.f32 0.0, %v1087
    %v1089 = vpop.f32.mrb[0].mxu0
    %v1090 = vadd.f32 0.0, %v1089
    %1091 = vmatprep.mubr.bf16.mxu0 0
    %1092 = vmatmul.mubr.bf16.gmra.mrb[0].mxu0 %v1041
    %v1093 = vpop.f32.mrb[0].mxu0
    %v1094 = vadd.f32 0.0, %v1093
    %v1095 = vpop.f32.mrb[0].mxu0
    %v1096 = vadd.f32 0.0, %v1095
    %v1097 = vpop.f32.mrb[0].mxu0
    %v1098 = vadd.f32 0.0, %v1097
    %v1099 = vpop.f32.mrb[0].mxu0
    %v1100 = vadd.f32 0.0, %v1099
    %1101 = vdwg.mxu0
    %v1102 = vunpack.c.l.bf16 %v796
    %v1103 = vunpack.c.l.bf16 %v797
    %v1104 = vunpack.c.h.bf16 %v796
    %v1105 = vunpack.c.h.bf16 %v797
    %v1106 = vunpack.c.l.bf16 %v798
    %v1107 = vunpack.c.l.bf16 %v799
    %v1108 = vunpack.c.h.bf16 %v798
    %v1109 = vunpack.c.h.bf16 %v799
    %1118 = vrot.lane.b32.xlu0 %v1084, 11
    %v1119 = vpop.permute.xlu0 %1118
    %1120 = vrot.lane.b32.xlu0 %v1086, 11
    %v1121 = vpop.permute.xlu0 %1120
    %1122 = vrot.lane.b32.xlu0 %v1088, 11
    %v1123 = vpop.permute.xlu0 %1122
    %1124 = vrot.lane.b32.xlu0 %v1090, 11
    %v1125 = vpop.permute.xlu0 %1124
    %1126 = vrot.lane.b32.xlu0 %v1094, 11
    %v1127 = vpop.permute.xlu0 %1126
    %1128 = vrot.lane.b32.xlu0 %v1096, 11
    %v1129 = vpop.permute.xlu0 %1128
    %1130 = vrot.lane.b32.xlu0 %v1098, 11
    %v1131 = vpop.permute.xlu0 %1130
    %1132 = vrot.lane.b32.xlu0 %v1100, 11
    %v1133 = vpop.permute.xlu0 %1132
    %v1134 = vsel %vm759, %v1119, %v1121
    %v1135 = vsel %vm759, %v1123, %v1125
    %v1136 = vsel %vm759, %v1127, %v1129
    %v1137 = vsel %vm759, %v1131, %v1133
    %v1146 = vadd.f32 %v1102, %v1119
    %v1147 = vadd.f32 %v1103, %v1134
    %v1148 = vadd.f32 %v1104, %v1123
    %v1149 = vadd.f32 %v1105, %v1135
    %v1150 = vadd.f32 %v1106, %v1127
    %v1151 = vadd.f32 %v1107, %v1136
    %v1152 = vadd.f32 %v1108, %v1131
    %v1153 = vadd.f32 %v1109, %v1137
    %v1154 = vmax.f32 %v1146, 0.0
    %v1155 = vmax.f32 %v1147, 0.0
    %v1156 = vmax.f32 %v1148, 0.0
    %v1157 = vmax.f32 %v1149, 0.0
    %v1158 = vmax.f32 %v1150, 0.0
    %v1159 = vmax.f32 %v1151, 0.0
    %v1160 = vmax.f32 %v1152, 0.0
    %v1161 = vmax.f32 %v1153, 0.0
    %v1162 = vld [vmem:[%s6] sm:$0xf]
    %v1163 = vpack.c.bf16 %v1156, %v1154
    %v1164 = vpack.c.bf16 %v1157, %v1155
    %v1165 = vpack.c.bf16 %v1160, %v1158
    %v1166 = vpack.c.bf16 %v1161, %v1159
    %v1167 = vld [vmem:[%s7] sm:$0xff]
    %1169 = vset.pattern.permute.xlu0 0
    %1170 = vperm.xlu0 %1169, %v1167
    %v1171 = vpop.permute.xlu0 %1170
    %1177 = vrot.lane.b32.xlu0 %v1163, 117
    %v1178 = vpop.permute.xlu0 %1177
    %1179 = vrot.lane.b32.xlu0 %v1164, 117
    %v1180 = vpop.permute.xlu0 %1179
    %1181 = vrot.lane.b32.xlu0 %v1165, 117
    %v1182 = vpop.permute.xlu0 %1181
    %1183 = vrot.lane.b32.xlu0 %v1166, 117
    %v1184 = vpop.permute.xlu0 %1183
    %v1185 = vsel %vm127, %v1178, %v1180
    %v1186 = vsel %vm127, %v1182, %v1184
    %v1192 = vsel %vm248, %v1162, 0
    %1194 = vmatprep.subr.bf16.mxu0 %v1180
    %1195 = vmatpush1.bf16.msra.mxu0 %v1185
    %1196 = vmatprep.subr.bf16.mxu0 %v1184
    %1197 = vmatpush1.bf16.msra.mxu0 %v1186
    %1198 = vmatprep.subr.bf16.mxu0 0
    %1199 = vmatpush1.bf16.msra.mxu0 0
    %1200 = vmatprep.subr.bf16.mxu0 0
    %1201 = vmatpush1.bf16.msra.mxu0 0
    %1202 = vmatprep.subr.bf16.mxu0 0
    %1203 = vmatpush1.bf16.msra.mxu0 0
    %1204 = vmatprep.subr.bf16.mxu0 0
    %1205 = vmatpush1.bf16.msra.mxu0 0
    %1206 = vmatprep.subr.bf16.mxu0 0
    %1207 = vmatpush1.bf16.msra.mxu0 0
    %1208 = vmatprep.subr.bf16.mxu0 0
    %1209 = vmatpush1.bf16.msra.mxu0 0
    %1210 = vmatprep.subr.bf16.mxu0 0
    %1211 = vmatpush1.bf16.msra.mxu0 0
    %1212 = vmatprep.subr.bf16.mxu0 0
    %1213 = vmatpush1.bf16.msra.mxu0 0
    %1214 = vmatprep.subr.bf16.mxu0 0
    %1215 = vmatpush1.bf16.msra.mxu0 0
    %1216 = vmatprep.subr.bf16.mxu0 0
    %1217 = vmatpush1.bf16.msra.mxu0 0
    %1218 = vmatprep.subr.bf16.mxu0 0
    %1219 = vmatpush1.bf16.msra.mxu0 0
    %1220 = vmatprep.subr.bf16.mxu0 0
    %1221 = vmatpush1.bf16.msra.mxu0 0
    %1222 = vmatprep.subr.bf16.mxu0 0
    %1223 = vmatpush1.bf16.msra.mxu0 0
    %1224 = vmatprep.subr.bf16.mxu0 0
    %1225 = vmatpush1.bf16.msra.mxu0 0
    %1226 = vmatprep.mubr.bf16.mxu0 0
    %1227 = vmatmul.mubr.bf16.gmra.mrb[0].mxu0 %v1192
    %v1228 = vpop.f32.mrb[0].mxu0
    %v1229 = vadd.f32 %v1171, %v1228
    %v1230 = vpop.f32.mrb[0].mxu0
    %v1231 = vadd.f32 %v1171, %v1230
    %v1232 = vpop.f32.mrb[0].mxu0
    %v1233 = vpop.f32.mrb[0].mxu0
    %1234 = vdwg.mxu0
    %v1235 = vld [vmem:[%s8] sm:$0xff]
    %v1236 = vld [vmem:[%s8 + $0x8] sm:$0xff]
    %v1237 = vld [vmem:[%s9] sm:$0xff]
    %v1238 = vmul.f32 %v1229, %v1229
    %v1239 = vmul.f32 %v1231, %v1231
    %v1240 = vrot.slane %v1238, 4
    %v1241 = vadd.f32 %v1238, %v1240
    %v1242 = vrot.slane %v1241, 2
    %v1243 = vadd.f32 %v1241, %v1242
    %v1244 = vrot.slane %v1243, 1
    %v1245 = vadd.f32 %v1243, %v1244
    %vm1246 = vcmask 408576
    %v1247 = vsel %vm1246, %v1239, 0.0
    %v1248 = vrot.slane %v1247, 4
    %v1249 = vadd.f32 %v1247, %v1248
    %v1250 = vrot.slane %v1249, 2
    %v1251 = vadd.f32 %v1249, %v1250
    %v1252 = vrot.slane %v1251, 1
    %v1253 = vadd.f32 %v1251, %v1252
    %v1254 = vmul.f32 %v1235, %v1235
    %v1255 = vmul.f32 %v1236, %v1236
    %v1256 = vsel %vm660, %v1254, 0.0
    %1257 = vadd.xlane.f32.xlu0 %v1256
    %v1258 = vpop.xlane.xlu0 %1257
    %v1259 = vsel %vm660, %v1255, 0.0
    %1260 = vadd.xlane.f32.xlu0 %v1259
    %v1261 = vpop.xlane.xlu0 %1260
    %v1263 = vsel %vm660, %v1235, 0
    %v1266 = vsel %vm660, %v1236, 0
    %1268 = vmatprep.subr.mxu0 %v1231
    %1269 = vmatpush1.msra.mxu0 %v1229
    %1270 = vmatprep.subr.mxu0 0.0
    %1271 = vmatpush1.msra.mxu0 0.0
    %1272 = vmatprep.subr.mxu0 0.0
    %1273 = vmatpush1.msra.mxu0 0.0
    %1274 = vmatprep.subr.mxu0 0.0
    %1275 = vmatpush1.msra.mxu0 0.0
    %1276 = vmatprep.subr.mxu0 0.0
    %1277 = vmatpush1.msra.mxu0 0.0
    %1278 = vmatprep.subr.mxu0 0.0
    %1279 = vmatpush1.msra.mxu0 0.0
    %1280 = vmatprep.subr.mxu0 0.0
    %1281 = vmatpush1.msra.mxu0 0.0
    %1282 = vmatprep.subr.mxu0 0.0
    %1283 = vmatpush1.msra.mxu0 0.0
    %1284 = vmatprep.subr.mxu0 0.0
    %1285 = vmatpush1.msra.mxu0 0.0
    %1286 = vmatprep.subr.mxu0 0.0
    %1287 = vmatpush1.msra.mxu0 0.0
    %1288 = vmatprep.subr.mxu0 0.0
    %1289 = vmatpush1.msra.mxu0 0.0
    %1290 = vmatprep.subr.mxu0 0.0
    %1291 = vmatpush1.msra.mxu0 0.0
    %1292 = vmatprep.subr.mxu0 0.0
    %1293 = vmatpush1.msra.mxu0 0.0
    %1294 = vmatprep.subr.mxu0 0.0
    %1295 = vmatpush1.msra.mxu0 0.0
    %1296 = vmatprep.subr.mxu0 0.0
    %1297 = vmatpush1.msra.mxu0 0.0
    %1298 = vmatprep.subr.mxu0 0.0
    %1299 = vmatpush1.msra.mxu0 0.0
    %1300 = vmatprep.subr.mxu0 0.0
    %1301 = vmatpush1.msra.mxu0 0.0
    %1302 = vmatprep.subr.mxu0 0.0
    %1303 = vmatpush1.msra.mxu0 0.0
    %1304 = vmatprep.subr.mxu0 0.0
    %1305 = vmatpush1.msra.mxu0 0.0
    %1306 = vmatprep.subr.mxu0 0.0
    %1307 = vmatpush1.msra.mxu0 0.0
    %1308 = vmatprep.subr.mxu0 0.0
    %1309 = vmatpush1.msra.mxu0 0.0
    %1310 = vmatprep.subr.mxu0 0.0
    %1311 = vmatpush1.msra.mxu0 0.0
    %1312 = vmatprep.subr.mxu0 0.0
    %1313 = vmatpush1.msra.mxu0 0.0
    %1314 = vmatprep.subr.mxu0 0.0
    %1315 = vmatpush1.msra.mxu0 0.0
    %1316 = vmatprep.subr.mxu0 0.0
    %1317 = vmatpush1.msra.mxu0 0.0
    %1318 = vmatprep.subr.mxu0 0.0
    %1319 = vmatpush1.msra.mxu0 0.0
    %1320 = vmatprep.subr.mxu0 0.0
    %1321 = vmatpush1.msra.mxu0 0.0
    %1322 = vmatprep.subr.mxu0 0.0
    %1323 = vmatpush1.msra.mxu0 0.0
    %1324 = vmatprep.subr.mxu0 0.0
    %1325 = vmatpush1.msra.mxu0 0.0
    %1326 = vmatprep.subr.mxu0 0.0
    %1327 = vmatpush1.msra.mxu0 0.0
    %1328 = vmatprep.subr.mxu0 0.0
    %1329 = vmatpush1.msra.mxu0 0.0
    %1330 = vmatprep.subr.mxu0 0.0
    %1331 = vmatpush1.msra.mxu0 0.0
    %1332 = vmatprep.mubr.f32.mxu0 0.0
    %1333 = vmatmul.mubr.f32.gmra.mrb[0].mxu0 %v1263
    %v1334 = vpop.f32.mrb[0].mxu0
    %v1335 = vadd.f32 0.0, %v1334
    %v1336 = vpop.f32.mrb[0].mxu0
    %v1337 = vadd.f32 0.0, %v1336
    %1338 = vmatprep.mubr.f32.mxu0 0.0
    %1339 = vmatmul.mubr.f32.gmra.mrb[0].mxu0 %v1266
    %v1340 = vpop.f32.mrb[0].mxu0
    %v1341 = vadd.f32 0.0, %v1340
    %v1342 = vpop.f32.mrb[0].mxu0
    %v1343 = vadd.f32 0.0, %v1342
    %1344 = vdwg.mxu0
    %v1345 = vadd.f32 %v1245, %v1258
    %v1346 = vadd.f32 %v1253, %v1258
    %v1347 = vadd.f32 %v1245, %v1261
    %v1348 = vadd.f32 %v1253, %v1261
    %v1349 = vmul.f32 %v1335, 2.0
    %v1350 = vmul.f32 %v1337, 2.0
    %v1351 = vmul.f32 %v1341, 2.0
    %v1352 = vmul.f32 %v1343, 2.0
    %v1353 = vsub.f32 %v1345, %v1349
    %v1354 = vsub.f32 %v1346, %v1350
    %v1355 = vsub.f32 %v1347, %v1351
    %v1356 = vsub.f32 %v1348, %v1352
    %v1357 = vmin.f32 %v1353, %v1355
    %v1358 = vrot.slane %v1357, 4
    %v1359 = vmin.f32 %v1357, %v1358
    %v1360 = vrot.slane %v1359, 2
    %v1361 = vmin.f32 %v1359, %v1360
    %v1362 = vrot.slane %v1361, 1
    %v1363 = vmin.f32 %v1361, %v1362
    %v1364 = vsel %vm1246, %v1354, inf
    %v1365 = vsel %vm1246, %v1356, inf
    %v1366 = vmin.f32 %v1364, %v1365
    %v1367 = vrot.slane %v1366, 4
    %v1368 = vmin.f32 %v1366, %v1367
    %v1369 = vrot.slane %v1368, 2
    %v1370 = vmin.f32 %v1368, %v1369
    %v1371 = vrot.slane %v1370, 1
    %v1372 = vmin.f32 %v1370, %v1371
    %v1373 = vlaneseq
    %v1374 = vshrl.u32 %v1373, 7
    %v1375 = vadd.s32 %v1374, 8
    %vm1376 = vcmp.le.f32.partialorder %v1353, %v1363
    %vm1377 = vcmp.le.f32.partialorder %v1354, %v1372
    %vm1378 = vcmp.le.f32.partialorder %v1355, %v1363
    %vm1379 = vcmp.le.f32.partialorder %v1356, %v1372
    %v1380 = vsel %vm1376, %v1374, 16
    %v1381 = vsel %vm1377, %v1374, 16
    %v1382 = vsel %vm1378, %v1375, 16
    %v1383 = vsel %vm1379, %v1375, 16
    %vm1384 = vcmp.lt.s32.totalorder %v1380, %v1382
    %v1385 = vsel %vm1384, %v1380, %v1382
    %v1386 = vrot.slane %v1385, 4
    %vm1387 = vcmp.lt.s32.totalorder %v1385, %v1386
    %v1388 = vsel %vm1387, %v1385, %v1386
    %v1389 = vrot.slane %v1388, 2
    %vm1390 = vcmp.lt.s32.totalorder %v1388, %v1389
    %v1391 = vsel %vm1390, %v1388, %v1389
    %v1392 = vrot.slane %v1391, 1
    %vm1393 = vcmp.lt.s32.totalorder %v1391, %v1392
    %v1394 = vsel %vm1393, %v1391, %v1392
    %v1395 = vsel %vm1246, %v1381, 2147483647
    %v1396 = vsel %vm1246, %v1383, 2147483647
    %vm1397 = vcmp.lt.s32.totalorder %v1395, %v1396
    %v1398 = vsel %vm1397, %v1395, %v1396
    %v1399 = vrot.slane %v1398, 4
    %vm1400 = vcmp.lt.s32.totalorder %v1398, %v1399
    %v1401 = vsel %vm1400, %v1398, %v1399
    %v1402 = vrot.slane %v1401, 2
    %vm1403 = vcmp.lt.s32.totalorder %v1401, %v1402
    %v1404 = vsel %vm1403, %v1401, %v1402
    %v1405 = vrot.slane %v1404, 1
    %vm1406 = vcmp.lt.s32.totalorder %v1404, %v1405
    %v1407 = vsel %vm1406, %v1404, %v1405
    %vm1408 = vcmp.eq.s32.totalorder %v1374, %v1394
    %vm1409 = vcmp.eq.s32.totalorder %v1374, %v1407
    %vm1410 = vcmp.eq.s32.totalorder %v1375, %v1394
    %vm1411 = vcmp.eq.s32.totalorder %v1375, %v1407
    %v1412 = vsel %vm1408, 1, 0
    %v1413 = vsel %vm1409, 1, 0
    %v1414 = vsel %vm1410, 1, 0
    %v1415 = vsel %vm1411, 1, 0
    %v1416 = vcvt.s32.f32 %v1412
    %v1417 = vcvt.s32.f32 %v1413
    %v1418 = vcvt.s32.f32 %v1414
    %v1419 = vcvt.s32.f32 %v1415
    %vm1420 = vcmask 130048
    %v1422 = vsel %vm1420, %v1237, 0
    %1424 = vmatprep.subr.mxu0 %v1417
    %1425 = vmatpush1.msra.mxu0 %v1416
    %1426 = vmatprep.subr.mxu0 %v1419
    %1427 = vmatpush1.msra.mxu0 %v1418
    %1428 = vmatprep.subr.mxu0 0.0
    %1429 = vmatpush1.msra.mxu0 0.0
    %1430 = vmatprep.subr.mxu0 0.0
    %1431 = vmatpush1.msra.mxu0 0.0
    %1432 = vmatprep.subr.mxu0 0.0
    %1433 = vmatpush1.msra.mxu0 0.0
    %1434 = vmatprep.subr.mxu0 0.0
    %1435 = vmatpush1.msra.mxu0 0.0
    %1436 = vmatprep.subr.mxu0 0.0
    %1437 = vmatpush1.msra.mxu0 0.0
    %1438 = vmatprep.subr.mxu0 0.0
    %1439 = vmatpush1.msra.mxu0 0.0
    %1440 = vmatprep.subr.mxu0 0.0
    %1441 = vmatpush1.msra.mxu0 0.0
    %1442 = vmatprep.subr.mxu0 0.0
    %1443 = vmatpush1.msra.mxu0 0.0
    %1444 = vmatprep.subr.mxu0 0.0
    %1445 = vmatpush1.msra.mxu0 0.0
    %1446 = vmatprep.subr.mxu0 0.0
    %1447 = vmatpush1.msra.mxu0 0.0
    %1448 = vmatprep.subr.mxu0 0.0
    %1449 = vmatpush1.msra.mxu0 0.0
    %1450 = vmatprep.subr.mxu0 0.0
    %1451 = vmatpush1.msra.mxu0 0.0
    %1452 = vmatprep.subr.mxu0 0.0
    %1453 = vmatpush1.msra.mxu0 0.0
    %1454 = vmatprep.subr.mxu0 0.0
    %1455 = vmatpush1.msra.mxu0 0.0
    %1456 = vmatprep.subr.mxu0 0.0
    %1457 = vmatpush1.msra.mxu0 0.0
    %1458 = vmatprep.subr.mxu0 0.0
    %1459 = vmatpush1.msra.mxu0 0.0
    %1460 = vmatprep.subr.mxu0 0.0
    %1461 = vmatpush1.msra.mxu0 0.0
    %1462 = vmatprep.subr.mxu0 0.0
    %1463 = vmatpush1.msra.mxu0 0.0
    %1464 = vmatprep.subr.mxu0 0.0
    %1465 = vmatpush1.msra.mxu0 0.0
    %1466 = vmatprep.subr.mxu0 0.0
    %1467 = vmatpush1.msra.mxu0 0.0
    %1468 = vmatprep.subr.mxu0 0.0
    %1469 = vmatpush1.msra.mxu0 0.0
    %1470 = vmatprep.subr.mxu0 0.0
    %1471 = vmatpush1.msra.mxu0 0.0
    %1472 = vmatprep.subr.mxu0 0.0
    %1473 = vmatpush1.msra.mxu0 0.0
    %1474 = vmatprep.subr.mxu0 0.0
    %1475 = vmatpush1.msra.mxu0 0.0
    %1476 = vmatprep.subr.mxu0 0.0
    %1477 = vmatpush1.msra.mxu0 0.0
    %1478 = vmatprep.subr.mxu0 0.0
    %1479 = vmatpush1.msra.mxu0 0.0
    %1480 = vmatprep.subr.mxu0 0.0
    %1481 = vmatpush1.msra.mxu0 0.0
    %1482 = vmatprep.subr.mxu0 0.0
    %1483 = vmatpush1.msra.mxu0 0.0
    %1484 = vmatprep.subr.mxu0 0.0
    %1485 = vmatpush1.msra.mxu0 0.0
    %1486 = vmatprep.subr.mxu0 0.0
    %1487 = vmatpush1.msra.mxu0 0.0
    %1488 = vmatprep.mubr.f32.mxu0 0.0
    %1489 = vmatmul.mubr.f32.gmra.mrb[0].mxu0 %v1422
    %v1490 = vpop.f32.mrb[0].mxu0
    %v1491 = vadd.f32 0.0, %v1490
    %v1492 = vpop.f32.mrb[0].mxu0
    %v1493 = vadd.f32 0.0, %v1492
    %1494 = vdwg.mxu0
    %v1495 = vsub.f32 %v1491, %v1229
    %v1496 = vsub.f32 %v1493, %v1231
    %v1497 = vmul.f32 %v1495, %v1495
    %v1498 = vmul.f32 %v1496, %v1496
    %v1499 = vmul.f32 %v1497, %v381
    %v1500 = vmul.f32 %v1498, %v379
    %v1501 = vsel %vm1246, %v1500, 0.0
    %v1502 = vadd.f32 %v1499, %v1501
    %1503 = vadd.xlane.f32.xlu0 %v1502
    %v1504 = vpop.xlane.xlu0 %1503
    %v1505 = vrot.slane %v1504, 4
    %v1506 = vadd.f32 %v1504, %v1505
    %v1507 = vrot.slane %v1506, 2
    %v1508 = vadd.f32 %v1506, %v1507
    %v1509 = vrot.slane %v1508, 1
    %v1510 = vadd.f32 %v1508, %v1509
    %v1511 = vrcp.pop 1024.0
    %v1512 = vmul.f32 %v1510, %v1511
    %v1513 = vmul.f32 %v1512, 1.25
    %vm1514 = vcmask 0
    %1515 = vst.msk [vmem:[#allocation3] sm:$0x1] %vm1514, %v1513
    %v1516 = vmul.f32 %v1416, %v381
    %v1517 = vmul.f32 %v1417, %v379
    %v1518 = vmul.f32 %v1418, %v381
    %v1519 = vmul.f32 %v1419, %v379
    %v1520 = vsel %vm1246, %v1517, 0.0
    %v1521 = vadd.f32 %v1516, %v1520
    %1522 = vadd.xlane.f32.xlu0 %v1521
    %v1523 = vpop.xlane.xlu0 %1522
    %v1524 = vsel %vm1246, %v1519, 0.0
    %v1525 = vadd.f32 %v1518, %v1524
    %1526 = vadd.xlane.f32.xlu0 %v1525
    %v1527 = vpop.xlane.xlu0 %1526
    %v1528 = vrcp.pop 128.0
    %v1529 = vmul.f32 %v1523, %v1528
    %v1530 = vmul.f32 %v1527, %v1528
    %v1531 = vadd.f32 %v1529, 1e-10
    %v1532 = vadd.f32 %v1530, 1e-10
    %v1533 = vlog2.pop %v1531
    %v1534 = vmul.f32 %v1533, 0.6931472
    %v1535 = vlog2.pop %v1532
    %v1536 = vmul.f32 %v1535, 0.6931472
    %v1537 = vmul.f32 %v1529, %v1534
    %v1538 = vmul.f32 %v1530, %v1536
    %v1539 = vadd.f32 %v1537, %v1538
    %v1540 = vrot.slane %v1539, 4
    %v1541 = vadd.f32 %v1539, %v1540
    %v1542 = vrot.slane %v1541, 2
    %v1543 = vadd.f32 %v1541, %v1542
    %v1544 = vrot.slane %v1543, 1
    %v1545 = vadd.f32 %v1543, %v1544
    %v1546 = vsub.f32 0.0, %v1545
    %v1547 = vmul.f32 %v1546, 1.442695
    %v1548 = vpow.pop %v1547
    %1549 = vst.msk [vmem:[#allocation5] sm:$0x1] %vm1514, %v1548
    %1550 = vst [vmem:[%s10] sm:$0xff] 0.0
    %1551 = vst [vmem:[%s10 + $0x8] sm:$0xff] 0.0
    %v1552 = vmul.f32 %v1491, %v381
    %v1553 = vmul.f32 %v1493, %v379
    %1556 = vrot.lane.b32.xlu0 %v1552, 11
    %v1557 = vpop.permute.xlu0 %1556
    %1558 = vrot.lane.b32.xlu0 %v1553, 11
    %v1559 = vpop.permute.xlu0 %1558
    %v1560 = vsel %vm759, %v1557, %v1559
    %1563 = vst.msk [vmem:[%s10] sm:$0xff] %vm415, %v1557
    %1564 = vst.msk [vmem:[%s10 + $0x8] sm:$0xff] %vm417, %v1560
    // Predicated region
    $region42: #{vqvae_forward.7} parent=1 // pred_check
      _
    $region43: #{vqvae_forward.7} parent=1 // pred_check_branch
      %1566 = sbr.rel (0) target = $region45
    $region44: #{vqvae_forward.7} parent=1 // pred_region
      _
    $region45: #{vqvae_forward.7} parent=1 // pred_fallthru
      _
    // Predicated region
    $region46: #{vqvae_forward.7} parent=1 // pred_check
      _
    $region47: #{vqvae_forward.7} parent=1 // pred_check_branch
      %1568 = sbr.rel (0) target = $region49
    $region48: #{vqvae_forward.7} parent=1 // pred_region
      %s1570 = ssub.s32 16, 16
      %1571 = vsyncadd [#allocation4], %s1570
      %s1573 = sshll.u32 [#allocation3], 4
      %s1574 = int_to_ptr.vmem [resolvable:$true] %s1573
      %1576 = dma.vmem_to_hbm [thread:$0]  %s1574, 16, %s11, [#allocation4]
    $region49: #{vqvae_forward.7} parent=1 // pred_fallthru
      _
    // Predicated region
    $region50: #{vqvae_forward.7} parent=1 // pred_check
      _
    $region51: #{vqvae_forward.7} parent=1 // pred_check_branch
      %1578 = sbr.rel (0) target = $region53
    $region52: #{vqvae_forward.7} parent=1 // pred_region
      %s1580 = ssub.s32 16, 16
      %1581 = vsyncadd [#allocation6], %s1580
      %s1583 = sshll.u32 [#allocation5], 4
      %s1584 = int_to_ptr.vmem [resolvable:$true] %s1583
      %1586 = dma.vmem_to_hbm [thread:$0]  %s1584, 16, %s12, [#allocation6]
    $region53: #{vqvae_forward.7} parent=1 // pred_fallthru
      _
    // Predicated region
    $region54: #{vqvae_forward.7} parent=1 // pred_check
      _
    $region55: #{vqvae_forward.7} parent=1 // pred_check_branch
      %1588 = sbr.rel (0) target = $region57
    $region56: #{vqvae_forward.7} parent=1 // pred_region
      _
    $region57: #{vqvae_forward.7} parent=1 // pred_fallthru
      _
    // Predicated region
    $region58: #{vqvae_forward.7} parent=1 // pred_check
      _
    $region59: #{vqvae_forward.7} parent=1 // pred_check_branch
      %1590 = sbr.rel (0) target = $region61
    $region60: #{vqvae_forward.7} parent=1 // pred_region
      %1591 = dma.done [#allocation4], 16
    $region61: #{vqvae_forward.7} parent=1 // pred_fallthru
      _
    // Predicated region
    $region62: #{vqvae_forward.7} parent=1 // pred_check
      _
    $region63: #{vqvae_forward.7} parent=1 // pred_check_branch
      %1593 = sbr.rel (0) target = $region65
    $region64: #{vqvae_forward.7} parent=1 // pred_region
      %1594 = dma.done [#allocation6], 16
    $region65: #{vqvae_forward.7} parent=1 // pred_fallthru
      _
    %1595 = vsyncpa [#allocation4], 1
    %1596 = vsyncpa [#allocation6], 1

// kernel: vqvae_forward.8
$region0: #{vqvae_forward.8}
  #allocation0 [shape = 'u32[]', space=smem, size = 0x4, offset = 0x4, fixed_abs, tag = 'smem constant byte address 0x4 - core index']
  #allocation1 [shape = 'u32[144,128]{1,0:T(1,128)}', space=vmem, size = 0x12000, scoped, tag = 'internal scratch']
  #allocation2 [shape = 'bf16[32,256]{1,0:T(16,128)(2,1)}', space=vmem, size = 0x4000, scoped, tag = 'scratch operand']
  %s0 = inlined_call_operand.vmem [shape: f32[8,256], index: 0, kind: input, shape index: {}]
  %s1 = inlined_call_operand.vmem [shape: f32[1,256], index: 1, kind: input, shape index: {}]
  %s2 = inlined_call_operand.vmem [shape: bf16[32,72], index: 2, kind: input, shape index: {}]
  %s3 = inlined_call_operand.vmem [shape: f32[32,1], index: 3, kind: input, shape index: {}]
  %s4 = inlined_call_operand.vmem [shape: bf16[2,8,288], index: 4, kind: input, shape index: {}]
  %s5 = inlined_call_operand.vmem [shape: bf16[2,32,8], index: 5, kind: input, shape index: {}]
  %s6 = inlined_call_operand.vmem [shape: bf16[64,288], index: 6, kind: input, shape index: {}]
  %s7 = inlined_call_operand.vmem [shape: f32[64,1], index: 7, kind: input, shape index: {}]
  %s8 = inlined_call_operand.vmem [shape: bf16[64,256], index: 8, kind: output, shape index: {}]
  %s9 = sld [smem:[#allocation0]]
  $region42: #{vqvae_forward.8} parent=0
    _
  %s11 = ssub.s32 1, %s9
  %s12 = scalar_select 0, %s11, %s9
  // Predicated region
  $region2: #{vqvae_forward.8} parent=0 // pred_check
    _
  $region3: #{vqvae_forward.8} parent=0 // pred_check_branch
    %14 = sbr.rel (0) target = $region5
  $region4: #{vqvae_forward.8} parent=0 // pred_region
    _
  $region5: #{vqvae_forward.8} parent=0 // pred_fallthru
    _
  // Predicated region
  $region6: #{vqvae_forward.8} parent=0 // pred_check
    _
  $region7: #{vqvae_forward.8} parent=0 // pred_check_branch
    %16 = sbr.rel (0) target = $region9
  $region8: #{vqvae_forward.8} parent=0 // pred_region
    _
  $region9: #{vqvae_forward.8} parent=0 // pred_fallthru
    _
  // Predicated region
  $region10: #{vqvae_forward.8} parent=0 // pred_check
    _
  $region11: #{vqvae_forward.8} parent=0 // pred_check_branch
    %18 = sbr.rel (0) target = $region13
  $region12: #{vqvae_forward.8} parent=0 // pred_region
    _
  $region13: #{vqvae_forward.8} parent=0 // pred_fallthru
    _
  // Predicated region
  $region14: #{vqvae_forward.8} parent=0 // pred_check
    _
  $region15: #{vqvae_forward.8} parent=0 // pred_check_branch
    %20 = sbr.rel (0) target = $region17
  $region16: #{vqvae_forward.8} parent=0 // pred_region
    _
  $region17: #{vqvae_forward.8} parent=0 // pred_fallthru
    _
  // Predicated region
  $region18: #{vqvae_forward.8} parent=0 // pred_check
    _
  $region19: #{vqvae_forward.8} parent=0 // pred_check_branch
    %22 = sbr.rel (0) target = $region21
  $region20: #{vqvae_forward.8} parent=0 // pred_region
    _
  $region21: #{vqvae_forward.8} parent=0 // pred_fallthru
    _
  // Predicated region
  $region22: #{vqvae_forward.8} parent=0 // pred_check
    _
  $region23: #{vqvae_forward.8} parent=0 // pred_check_branch
    %24 = sbr.rel (0) target = $region25
  $region24: #{vqvae_forward.8} parent=0 // pred_region
    _
  $region25: #{vqvae_forward.8} parent=0 // pred_fallthru
    _
  // Predicated region
  $region26: #{vqvae_forward.8} parent=0 // pred_check
    _
  $region27: #{vqvae_forward.8} parent=0 // pred_check_branch
    %26 = sbr.rel (0) target = $region29
  $region28: #{vqvae_forward.8} parent=0 // pred_region
    _
  $region29: #{vqvae_forward.8} parent=0 // pred_fallthru
    _
  // Predicated region
  $region30: #{vqvae_forward.8} parent=0 // pred_check
    _
  $region31: #{vqvae_forward.8} parent=0 // pred_check_branch
    %28 = sbr.rel (0) target = $region33
  $region32: #{vqvae_forward.8} parent=0 // pred_region
    _
  $region33: #{vqvae_forward.8} parent=0 // pred_fallthru
    _
  %v30 = vld [vmem:[%s1] sm:$0x3]
  %v31 = vld [vmem:[%s0] sm:$0xff]
  %v32 = vld [vmem:[%s0 + $0x8] sm:$0xff]
  %v33 = vld [vmem:[%s2] sm:$0xf]
  %v34 = vld [vmem:[%s2 + $0x4] sm:$0xf]
  %v35 = vld [vmem:[%s2 + $0x8] sm:$0xf]
  %v36 = vld [vmem:[%s2 + $0xc] sm:$0xf]
  %39 = vrot.lane.b32.xlu0 %v31, 127
  %v40 = vpop.permute.xlu0 %39
  %41 = vrot.lane.b32.xlu0 %v32, 127
  %v42 = vpop.permute.xlu0 %41
  %vm43 = vcmask 1039360
  %v44 = vsel %vm43, %v40, %v42
  %47 = vrot.lane.b32.xlu0 %v31, 126
  %v48 = vpop.permute.xlu0 %47
  %49 = vrot.lane.b32.xlu0 %v32, 126
  %v50 = vpop.permute.xlu0 %49
  %vm51 = vcmask 1031168
  %v52 = vsel %vm51, %v48, %v50
  %55 = vrot.lane.b32.xlu0 %v31, 118
  %v56 = vpop.permute.xlu0 %55
  %57 = vrot.lane.b32.xlu0 %v32, 118
  %v58 = vpop.permute.xlu0 %57
  %vm59 = vcmask 965632
  %v60 = vsel %vm59, %v56, %v58
  %63 = vrot.lane.b32.xlu0 %v31, 117
  %v64 = vpop.permute.xlu0 %63
  %65 = vrot.lane.b32.xlu0 %v32, 117
  %v66 = vpop.permute.xlu0 %65
  %vm67 = vcmask 957440
  %v68 = vsel %vm67, %v64, %v66
  %71 = vrot.lane.b32.xlu0 %v31, 116
  %v72 = vpop.permute.xlu0 %71
  %73 = vrot.lane.b32.xlu0 %v32, 116
  %v74 = vpop.permute.xlu0 %73
  %vm75 = vcmask 949248
  %v76 = vsel %vm75, %v72, %v74
  %79 = vrot.lane.b32.xlu0 %v31, 108
  %v80 = vpop.permute.xlu0 %79
  %81 = vrot.lane.b32.xlu0 %v32, 108
  %v82 = vpop.permute.xlu0 %81
  %vm83 = vcmask 883712
  %v84 = vsel %vm83, %v80, %v82
  %87 = vrot.lane.b32.xlu0 %v31, 107
  %v88 = vpop.permute.xlu0 %87
  %89 = vrot.lane.b32.xlu0 %v32, 107
  %v90 = vpop.permute.xlu0 %89
  %vm91 = vcmask 875520
  %v92 = vsel %vm91, %v88, %v90
  %95 = vrot.lane.b32.xlu0 %v31, 106
  %v96 = vpop.permute.xlu0 %95
  %97 = vrot.lane.b32.xlu0 %v32, 106
  %v98 = vpop.permute.xlu0 %97
  %vm99 = vcmask 867328
  %v100 = vsel %vm99, %v96, %v98
  %v103 = vpack.c.bf16 %v44, %v31
  %v104 = vpack.c.bf16 %v42, %v32
  %v105 = vpack.c.bf16 %v60, %v52
  %v106 = vpack.c.bf16 %v58, %v50
  %v107 = vpack.c.bf16 %v76, %v68
  %v108 = vpack.c.bf16 %v74, %v66
  %v109 = vpack.c.bf16 %v92, %v84
  %v110 = vpack.c.bf16 %v90, %v82
  %v111 = vpack.c.bf16 %v100, %v100
  %v112 = vpack.c.bf16 %v98, %v98
  %v113 = vld [vmem:[%s3] sm:$0xff]
  %v114 = vld [vmem:[%s3 + $0x8] sm:$0xff]
  %v115 = vld [vmem:[%s3 + $0x10] sm:$0xff]
  %v116 = vld [vmem:[%s3 + $0x18] sm:$0xff]
  %118 = vset.pattern.permute.xlu0 0
  %119 = vperm.xlu0 %118, %v113
  %v120 = vpop.permute.xlu0 %119
  %123 = vset.pattern.permute.xlu0 0
  %124 = vperm.xlu0 %123, %v114
  %v125 = vpop.permute.xlu0 %124
  %128 = vset.pattern.permute.xlu0 0
  %129 = vperm.xlu0 %128, %v115
  %v130 = vpop.permute.xlu0 %129
  %133 = vset.pattern.permute.xlu0 0
  %134 = vperm.xlu0 %133, %v116
  %v135 = vpop.permute.xlu0 %134
  %v141 = vunpack.c.l.b16 %v33
  %v142 = vunpack.c.l.b16 %v34
  %v143 = vunpack.c.l.b16 %v35
  %v144 = vunpack.c.l.b16 %v36
  %v145 = vpack.c.b16 %v142, %v141
  %v146 = vpack.c.b16 %v144, %v143
  %vm147 = vcmask 588800
  %v149 = vsel %vm147, %v145, 0
  %v152 = vsel %vm147, %v146, 0
  %vm154 = vcmask 1043456
  %v156 = vsel %vm154, %v111, 0
  %v159 = vsel %vm154, %v112, 0
  %161 = vmatprep.subr.bf16.mxu0 %v104
  %162 = vmatpush1.bf16.msra.mxu0 %v103
  %163 = vmatprep.subr.bf16.mxu0 %v106
  %164 = vmatpush1.bf16.msra.mxu0 %v105
  %165 = vmatprep.subr.bf16.mxu0 %v108
  %166 = vmatpush1.bf16.msra.mxu0 %v107
  %167 = vmatprep.subr.bf16.mxu0 %v110
  %168 = vmatpush1.bf16.msra.mxu0 %v109
  %169 = vmatprep.subr.bf16.mxu0 %v159
  %170 = vmatpush1.bf16.msra.mxu0 %v156
  %171 = vmatprep.subr.bf16.mxu0 0
  %172 = vmatpush1.bf16.msra.mxu0 0
  %173 = vmatprep.subr.bf16.mxu0 0
  %174 = vmatpush1.bf16.msra.mxu0 0
  %175 = vmatprep.subr.bf16.mxu0 0
  %176 = vmatpush1.bf16.msra.mxu0 0
  %177 = vmatprep.subr.bf16.mxu0 0
  %178 = vmatpush1.bf16.msra.mxu0 0
  %179 = vmatprep.subr.bf16.mxu0 0
  %180 = vmatpush1.bf16.msra.mxu0 0
  %181 = vmatprep.subr.bf16.mxu0 0
  %182 = vmatpush1.bf16.msra.mxu0 0
  %183 = vmatprep.subr.bf16.mxu0 0
  %184 = vmatpush1.bf16.msra.mxu0 0
  %185 = vmatprep.subr.bf16.mxu0 0
  %186 = vmatpush1.bf16.msra.mxu0 0
  %187 = vmatprep.subr.bf16.mxu0 0
  %188 = vmatpush1.bf16.msra.mxu0 0
  %189 = vmatprep.subr.bf16.mxu0 0
  %190 = vmatpush1.bf16.msra.mxu0 0
  %191 = vmatprep.subr.bf16.mxu0 0
  %192 = vmatpush1.bf16.msra.mxu0 0
  %193 = vmatprep.mubr.bf16.mxu0 0
  %194 = vmatmul.mubr.bf16.gmra.mrb[0].mxu0 %v149
  %v195 = vpop.f32.mrb[0].mxu0
  %v196 = vadd.f32 %v120, %v195
  %v197 = vpop.f32.mrb[0].mxu0
  %v198 = vadd.f32 %v120, %v197
  %v199 = vpop.f32.mrb[0].mxu0
  %v200 = vadd.f32 %v125, %v199
  %v201 = vpop.f32.mrb[0].mxu0
  %v202 = vadd.f32 %v125, %v201
  %203 = vmatprep.mubr.bf16.mxu0 0
  %204 = vmatmul.mubr.bf16.gmra.mrb[0].mxu0 %v152
  %v205 = vpop.f32.mrb[0].mxu0
  %v206 = vadd.f32 %v130, %v205
  %v207 = vpop.f32.mrb[0].mxu0
  %v208 = vadd.f32 %v130, %v207
  %v209 = vpop.f32.mrb[0].mxu0
  %v210 = vadd.f32 %v135, %v209
  %v211 = vpop.f32.mrb[0].mxu0
  %v212 = vadd.f32 %v135, %v211
  %213 = vdwg.mxu0
  %214 = vst [vmem:[#allocation2] sm:$0xff] 0
  %215 = vst [vmem:[#allocation2 + $0x8] sm:$0xff] 0
  %216 = vst [vmem:[#allocation2 + $0x10] sm:$0xff] 0
  %217 = vst [vmem:[#allocation2 + $0x18] sm:$0xff] 0
  %v219 = vlaneseq
  %v220 = vshrl.u32 %v219, 7
  %v221 = vsub.s32 0, %v220
  %v222 = vrot.slane %v30, %v221
  %v223 = vlaneseq
  %v224 = vshrl.u32 %v223, 7
  %v225 = vsub.s32 1, %v224
  %v226 = vrot.slane %v30, %v225
  %229 = vrot.lane.b32.xlu0 %v222, 117
  %v230 = vpop.permute.xlu0 %229
  %231 = vrot.lane.b32.xlu0 %v226, 117
  %v232 = vpop.permute.xlu0 %231
  %v233 = vsel %vm67, %v230, %v232
  %v236 = vmul.f32 %v196, %v233
  %v237 = vmul.f32 %v198, %v232
  %v238 = vmul.f32 %v200, %v233
  %v239 = vmul.f32 %v202, %v232
  %v240 = vmul.f32 %v206, %v233
  %v241 = vmul.f32 %v208, %v232
  %v242 = vmul.f32 %v210, %v233
  %v243 = vmul.f32 %v212, %v232
  %v244 = vpack.c.bf16 %v238, %v236
  %v245 = vpack.c.bf16 %v239, %v237
  %v246 = vpack.c.bf16 %v242, %v240
  %v247 = vpack.c.bf16 %v243, %v241
  %252 = vrot.lane.b32.xlu0 %v244, 11
  %v253 = vpop.permute.xlu0 %252
  %254 = vrot.lane.b32.xlu0 %v245, 11
  %v255 = vpop.permute.xlu0 %254
  %256 = vrot.lane.b32.xlu0 %v246, 11
  %v257 = vpop.permute.xlu0 %256
  %258 = vrot.lane.b32.xlu0 %v247, 11
  %v259 = vpop.permute.xlu0 %258
  %vm260 = vcmask 89088
  %v261 = vsel %vm260, %v253, %v255
  %v262 = vsel %vm260, %v257, %v259
  %vm267 = vcmask 1047640
  %268 = vst.msk [vmem:[#allocation2] sm:$0xff] %vm267, %v253
  %vm269 = vcmask 498688
  %270 = vst.msk [vmem:[#allocation2 + $0x8] sm:$0xff] %vm269, %v261
  %271 = vst.msk [vmem:[#allocation2 + $0x10] sm:$0xff] %vm267, %v257
  %272 = vst.msk [vmem:[#allocation2 + $0x18] sm:$0xff] %vm269, %v262
  %v273 = vld [vmem:[#allocation2] sm:$0xff]
  %v274 = vld [vmem:[#allocation2 + $0x8] sm:$0xff]
  %v275 = vld [vmem:[#allocation2 + $0x10] sm:$0xff]
  %v276 = vld [vmem:[#allocation2 + $0x18] sm:$0xff]
  %v277 = vmax.bf16 %v273, 0
  %v278 = vmax.bf16 %v274, 0
  %v279 = vmax.bf16 %v275, 0
  %v280 = vmax.bf16 %v276, 0
  %v281 = vld [vmem:[%s4] sm:$0xff]
  %v282 = vld [vmem:[%s4 + $0x8] sm:$0xf]
  %287 = vrot.lane.b32.xlu0 %v277, 127
  %v288 = vpop.permute.xlu0 %287
  %289 = vrot.lane.b32.xlu0 %v278, 127
  %v290 = vpop.permute.xlu0 %289
  %291 = vrot.lane.b32.xlu0 %v279, 127
  %v292 = vpop.permute.xlu0 %291
  %293 = vrot.lane.b32.xlu0 %v280, 127
  %v294 = vpop.permute.xlu0 %293
  %vm295 = vcmask 1039360
  %v296 = vsel %vm295, %v288, %v290
  %v297 = vsel %vm295, %v292, %v294
  %302 = vrot.lane.b32.xlu0 %v277, 126
  %v303 = vpop.permute.xlu0 %302
  %304 = vrot.lane.b32.xlu0 %v278, 126
  %v305 = vpop.permute.xlu0 %304
  %306 = vrot.lane.b32.xlu0 %v279, 126
  %v307 = vpop.permute.xlu0 %306
  %308 = vrot.lane.b32.xlu0 %v280, 126
  %v309 = vpop.permute.xlu0 %308
  %vm310 = vcmask 1031168
  %v311 = vsel %vm310, %v303, %v305
  %v312 = vsel %vm310, %v307, %v309
  %317 = vrot.lane.b32.xlu0 %v277, 118
  %v318 = vpop.permute.xlu0 %317
  %319 = vrot.lane.b32.xlu0 %v278, 118
  %v320 = vpop.permute.xlu0 %319
  %321 = vrot.lane.b32.xlu0 %v279, 118
  %v322 = vpop.permute.xlu0 %321
  %323 = vrot.lane.b32.xlu0 %v280, 118
  %v324 = vpop.permute.xlu0 %323
  %vm325 = vcmask 965632
  %v326 = vsel %vm325, %v318, %v320
  %v327 = vsel %vm325, %v322, %v324
  %332 = vrot.lane.b32.xlu0 %v277, 117
  %v333 = vpop.permute.xlu0 %332
  %334 = vrot.lane.b32.xlu0 %v278, 117
  %v335 = vpop.permute.xlu0 %334
  %336 = vrot.lane.b32.xlu0 %v279, 117
  %v337 = vpop.permute.xlu0 %336
  %338 = vrot.lane.b32.xlu0 %v280, 117
  %v339 = vpop.permute.xlu0 %338
  %vm340 = vcmask 957440
  %v341 = vsel %vm340, %v333, %v335
  %v342 = vsel %vm340, %v337, %v339
  %347 = vrot.lane.b32.xlu0 %v277, 116
  %v348 = vpop.permute.xlu0 %347
  %349 = vrot.lane.b32.xlu0 %v278, 116
  %v350 = vpop.permute.xlu0 %349
  %351 = vrot.lane.b32.xlu0 %v279, 116
  %v352 = vpop.permute.xlu0 %351
  %353 = vrot.lane.b32.xlu0 %v280, 116
  %v354 = vpop.permute.xlu0 %353
  %vm355 = vcmask 949248
  %v356 = vsel %vm355, %v348, %v350
  %v357 = vsel %vm355, %v352, %v354
  %362 = vrot.lane.b32.xlu0 %v277, 108
  %v363 = vpop.permute.xlu0 %362
  %364 = vrot.lane.b32.xlu0 %v278, 108
  %v365 = vpop.permute.xlu0 %364
  %366 = vrot.lane.b32.xlu0 %v279, 108
  %v367 = vpop.permute.xlu0 %366
  %368 = vrot.lane.b32.xlu0 %v280, 108
  %v369 = vpop.permute.xlu0 %368
  %vm370 = vcmask 883712
  %v371 = vsel %vm370, %v363, %v365
  %v372 = vsel %vm370, %v367, %v369
  %377 = vrot.lane.b32.xlu0 %v277, 107
  %v378 = vpop.permute.xlu0 %377
  %379 = vrot.lane.b32.xlu0 %v278, 107
  %v380 = vpop.permute.xlu0 %379
  %381 = vrot.lane.b32.xlu0 %v279, 107
  %v382 = vpop.permute.xlu0 %381
  %383 = vrot.lane.b32.xlu0 %v280, 107
  %v384 = vpop.permute.xlu0 %383
  %vm385 = vcmask 875520
  %v386 = vsel %vm385, %v378, %v380
  %v387 = vsel %vm385, %v382, %v384
  %392 = vrot.lane.b32.xlu0 %v277, 106
  %v393 = vpop.permute.xlu0 %392
  %394 = vrot.lane.b32.xlu0 %v278, 106
  %v395 = vpop.permute.xlu0 %394
  %396 = vrot.lane.b32.xlu0 %v279, 106
  %v397 = vpop.permute.xlu0 %396
  %398 = vrot.lane.b32.xlu0 %v280, 106
  %v399 = vpop.permute.xlu0 %398
  %vm400 = vcmask 867328
  %v401 = vsel %vm400, %v393, %v395
  %v402 = vsel %vm400, %v397, %v399
  %v409 = vunpack.c.l.b16 %v281
  %v410 = vunpack.c.h.b16 %v281
  %v411 = vunpack.c.l.b16 %v282
  %v412 = vpack.c.b16 %v409, %v409
  %v413 = vpack.c.b16 %v410, %v410
  %v414 = vpack.c.b16 %v411, %v411
  %vm417 = vcmask 261120
  %v419 = vsel %vm417, %v414, 0
  %421 = vmatprep.subr.bf16.mxu0 %v278
  %422 = vmatpush1.bf16.msra.mxu0 %v277
  %423 = vmatprep.subr.bf16.mxu0 %v280
  %424 = vmatpush1.bf16.msra.mxu0 %v279
  %425 = vmatprep.subr.bf16.mxu0 %v290
  %426 = vmatpush1.bf16.msra.mxu0 %v296
  %427 = vmatprep.subr.bf16.mxu0 %v294
  %428 = vmatpush1.bf16.msra.mxu0 %v297
  %429 = vmatprep.subr.bf16.mxu0 %v305
  %430 = vmatpush1.bf16.msra.mxu0 %v311
  %431 = vmatprep.subr.bf16.mxu0 %v309
  %432 = vmatpush1.bf16.msra.mxu0 %v312
  %433 = vmatprep.subr.bf16.mxu0 %v320
  %434 = vmatpush1.bf16.msra.mxu0 %v326
  %435 = vmatprep.subr.bf16.mxu0 %v324
  %436 = vmatpush1.bf16.msra.mxu0 %v327
  %437 = vmatprep.subr.bf16.mxu0 %v335
  %438 = vmatpush1.bf16.msra.mxu0 %v341
  %439 = vmatprep.subr.bf16.mxu0 %v339
  %440 = vmatpush1.bf16.msra.mxu0 %v342
  %441 = vmatprep.subr.bf16.mxu0 %v350
  %442 = vmatpush1.bf16.msra.mxu0 %v356
  %443 = vmatprep.subr.bf16.mxu0 %v354
  %444 = vmatpush1.bf16.msra.mxu0 %v357
  %445 = vmatprep.subr.bf16.mxu0 %v365
  %446 = vmatpush1.bf16.msra.mxu0 %v371
  %447 = vmatprep.subr.bf16.mxu0 %v369
  %448 = vmatpush1.bf16.msra.mxu0 %v372
  %449 = vmatprep.subr.bf16.mxu0 %v380
  %450 = vmatpush1.bf16.msra.mxu0 %v386
  %451 = vmatprep.subr.bf16.mxu0 %v384
  %452 = vmatpush1.bf16.msra.mxu0 %v387
  %453 = vmatprep.mubr.bf16.mxu0 %v413
  %454 = vmatmul.mubr.bf16.gmra.mrb[0].mxu0 %v412
  %v455 = vpop.f32.mrb[0].mxu0
  %v456 = vadd.f32 0.0, %v455
  %v457 = vpop.f32.mrb[0].mxu0
  %v458 = vadd.f32 0.0, %v457
  %v459 = vpop.f32.mrb[0].mxu0
  %v460 = vpop.f32.mrb[0].mxu0
  %461 = vdwg.mxu0
  %462 = vmatprep.subr.bf16.mxu0 %v395
  %463 = vmatpush1.bf16.msra.mxu0 %v401
  %464 = vmatprep.subr.bf16.mxu0 %v399
  %465 = vmatpush1.bf16.msra.mxu0 %v402
  %466 = vmatprep.subr.bf16.mxu0 0
  %467 = vmatpush1.bf16.msra.mxu0 0
  %468 = vmatprep.subr.bf16.mxu0 0
  %469 = vmatpush1.bf16.msra.mxu0 0
  %470 = vmatprep.subr.bf16.mxu0 0
  %471 = vmatpush1.bf16.msra.mxu0 0
  %472 = vmatprep.subr.bf16.mxu0 0
  %473 = vmatpush1.bf16.msra.mxu0 0
  %474 = vmatprep.subr.bf16.mxu0 0
  %475 = vmatpush1.bf16.msra.mxu0 0
  %476 = vmatprep.subr.bf16.mxu0 0
  %477 = vmatpush1.bf16.msra.mxu0 0
  %478 = vmatprep.subr.bf16.mxu0 0
  %479 = vmatpush1.bf16.msra.mxu0 0
  %480 = vmatprep.subr.bf16.mxu0 0
  %481 = vmatpush1.bf16.msra.mxu0 0
  %482 = vmatprep.subr.bf16.mxu0 0
  %483 = vmatpush1.bf16.msra.mxu0 0
  %484 = vmatprep.subr.bf16.mxu0 0
  %485 = vmatpush1.bf16.msra.mxu0 0
  %486 = vmatprep.subr.bf16.mxu0 0
  %487 = vmatpush1.bf16.msra.mxu0 0
  %488 = vmatprep.subr.bf16.mxu0 0
  %489 = vmatpush1.bf16.msra.mxu0 0
  %490 = vmatprep.subr.bf16.mxu0 0
  %491 = vmatpush1.bf16.msra.mxu0 0
  %492 = vmatprep.subr.bf16.mxu0 0
  %493 = vmatpush1.bf16.msra.mxu0 0
  %494 = vmatprep.mubr.bf16.mxu0 0
  %495 = vmatmul.mubr.bf16.gmra.mrb[0].mxu0 %v419
  %v496 = vpop.f32.mrb[0].mxu0
  %v497 = vadd.f32 %v456, %v496
  %v498 = vpop.f32.mrb[0].mxu0
  %v499 = vadd.f32 %v458, %v498
  %v500 = vpop.f32.mrb[0].mxu0
  %v501 = vpop.f32.mrb[0].mxu0
  %502 = vdwg.mxu0
  %v503 = vmax.f32 %v497, 0.0
  %v504 = vmax.f32 %v499, 0.0
  %v505 = vpack.c.bf16 %v503, %v503
  %v506 = vpack.c.bf16 %v504, %v504
  %v507 = vld [vmem:[%s5] sm:$0xf]
  %v508 = vld [vmem:[%s5 + $0x4] sm:$0xf]
  %v509 = vld [vmem:[%s5 + $0x8] sm:$0xf]
  %v510 = vld [vmem:[%s5 + $0xc] sm:$0xf]
  %v515 = vunpack.c.l.b16 %v507
  %v516 = vunpack.c.l.b16 %v508
  %v517 = vunpack.c.l.b16 %v509
  %v518 = vunpack.c.l.b16 %v510
  %v519 = vpack.c.b16 %v516, %v515
  %v520 = vpack.c.b16 %v518, %v517
  %vm521 = vcmask 64512
  %v523 = vsel %vm521, %v519, 0
  %v526 = vsel %vm521, %v520, 0
  %v529 = vsel %vm154, %v505, 0
  %v532 = vsel %vm154, %v506, 0
  %534 = vmatprep.subr.bf16.mxu0 %v532
  %535 = vmatpush1.bf16.msra.mxu0 %v529
  %536 = vmatprep.subr.bf16.mxu0 0
  %537 = vmatpush1.bf16.msra.mxu0 0
  %538 = vmatprep.subr.bf16.mxu0 0
  %539 = vmatpush1.bf16.msra.mxu0 0
  %540 = vmatprep.subr.bf16.mxu0 0
  %541 = vmatpush1.bf16.msra.mxu0 0
  %542 = vmatprep.subr.bf16.mxu0 0
  %543 = vmatpush1.bf16.msra.mxu0 0
  %544 = vmatprep.subr.bf16.mxu0 0
  %545 = vmatpush1.bf16.msra.mxu0 0
  %546 = vmatprep.subr.bf16.mxu0 0
  %547 = vmatpush1.bf16.msra.mxu0 0
  %548 = vmatprep.subr.bf16.mxu0 0
  %549 = vmatpush1.bf16.msra.mxu0 0
  %550 = vmatprep.subr.bf16.mxu0 0
  %551 = vmatpush1.bf16.msra.mxu0 0
  %552 = vmatprep.subr.bf16.mxu0 0
  %553 = vmatpush1.bf16.msra.mxu0 0
  %554 = vmatprep.subr.bf16.mxu0 0
  %555 = vmatpush1.bf16.msra.mxu0 0
  %556 = vmatprep.subr.bf16.mxu0 0
  %557 = vmatpush1.bf16.msra.mxu0 0
  %558 = vmatprep.subr.bf16.mxu0 0
  %559 = vmatpush1.bf16.msra.mxu0 0
  %560 = vmatprep.subr.bf16.mxu0 0
  %561 = vmatpush1.bf16.msra.mxu0 0
  %562 = vmatprep.subr.bf16.mxu0 0
  %563 = vmatpush1.bf16.msra.mxu0 0
  %564 = vmatprep.subr.bf16.mxu0 0
  %565 = vmatpush1.bf16.msra.mxu0 0
  %566 = vmatprep.mubr.bf16.mxu0 0
  %567 = vmatmul.mubr.bf16.gmra.mrb[0].mxu0 %v523
  %v568 = vpop.f32.mrb[0].mxu0
  %v569 = vadd.f32 0.0, %v568
  %v570 = vpop.f32.mrb[0].mxu0
  %v571 = vadd.f32 0.0, %v570
  %v572 = vpop.f32.mrb[0].mxu0
  %v573 = vadd.f32 0.0, %v572
  %v574 = vpop.f32.mrb[0].mxu0
  %v575 = vadd.f32 0.0, %v574
  %576 = vmatprep.mubr.bf16.mxu0 0
  %577 = vmatmul.mubr.bf16.gmra.mrb[0].mxu0 %v526
  %v578 = vpop.f32.mrb[0].mxu0
  %v579 = vadd.f32 0.0, %v578
  %v580 = vpop.f32.mrb[0].mxu0
  %v581 = vadd.f32 0.0, %v580
  %v582 = vpop.f32.mrb[0].mxu0
  %v583 = vadd.f32 0.0, %v582
  %v584 = vpop.f32.mrb[0].mxu0
  %v585 = vadd.f32 0.0, %v584
  %586 = vdwg.mxu0
  %v587 = vunpack.c.l.bf16 %v273
  %v588 = vunpack.c.l.bf16 %v274
  %v589 = vunpack.c.h.bf16 %v273
  %v590 = vunpack.c.h.bf16 %v274
  %v591 = vunpack.c.l.bf16 %v275
  %v592 = vunpack.c.l.bf16 %v276
  %v593 = vunpack.c.h.bf16 %v275
  %v594 = vunpack.c.h.bf16 %v276
  %603 = vrot.lane.b32.xlu0 %v569, 11
  %v604 = vpop.permute.xlu0 %603
  %605 = vrot.lane.b32.xlu0 %v571, 11
  %v606 = vpop.permute.xlu0 %605
  %607 = vrot.lane.b32.xlu0 %v573, 11
  %v608 = vpop.permute.xlu0 %607
  %609 = vrot.lane.b32.xlu0 %v575, 11
  %v610 = vpop.permute.xlu0 %609
  %611 = vrot.lane.b32.xlu0 %v579, 11
  %v612 = vpop.permute.xlu0 %611
  %613 = vrot.lane.b32.xlu0 %v581, 11
  %v614 = vpop.permute.xlu0 %613
  %615 = vrot.lane.b32.xlu0 %v583, 11
  %v616 = vpop.permute.xlu0 %615
  %617 = vrot.lane.b32.xlu0 %v585, 11
  %v618 = vpop.permute.xlu0 %617
  %vm619 = vcmask 89088
  %v620 = vsel %vm619, %v604, %v606
  %v621 = vsel %vm619, %v608, %v610
  %v622 = vsel %vm619, %v612, %v614
  %v623 = vsel %vm619, %v616, %v618
  %v632 = vadd.f32 %v587, %v604
  %v633 = vadd.f32 %v588, %v620
  %v634 = vadd.f32 %v589, %v608
  %v635 = vadd.f32 %v590, %v621
  %v636 = vadd.f32 %v591, %v612
  %v637 = vadd.f32 %v592, %v622
  %v638 = vadd.f32 %v593, %v616
  %v639 = vadd.f32 %v594, %v623
  %v640 = vmul.f32 %v632, %v222
  %v641 = vmul.f32 %v633, %v226
  %v642 = vmul.f32 %v634, %v222
  %v643 = vmul.f32 %v635, %v226
  %v644 = vmul.f32 %v636, %v222
  %v645 = vmul.f32 %v637, %v226
  %v646 = vmul.f32 %v638, %v222
  %v647 = vmul.f32 %v639, %v226
  %v648 = vpack.c.bf16 %v642, %v640
  %v649 = vpack.c.bf16 %v643, %v641
  %v650 = vpack.c.bf16 %v646, %v644
  %v651 = vpack.c.bf16 %v647, %v645
  %652 = vst.msk [vmem:[#allocation2] sm:$0xff] %vm267, %v648
  %653 = vst.msk [vmem:[#allocation2 + $0x8] sm:$0xff] %vm269, %v649
  %654 = vst.msk [vmem:[#allocation2 + $0x10] sm:$0xff] %vm267, %v650
  %655 = vst.msk [vmem:[#allocation2 + $0x18] sm:$0xff] %vm269, %v651
  %v656 = vld [vmem:[#allocation2] sm:$0xff]
  %v657 = vld [vmem:[#allocation2 + $0x8] sm:$0xff]
  %v658 = vld [vmem:[#allocation2 + $0x10] sm:$0xff]
  %v659 = vld [vmem:[#allocation2 + $0x18] sm:$0xff]
  %v660 = vmax.bf16 %v656, 0
  %v661 = vmax.bf16 %v657, 0
  %v662 = vmax.bf16 %v658, 0
  %v663 = vmax.bf16 %v659, 0
  %s664 = scalar_lea.vmem %s4, 12
  %v665 = vld [vmem:[%s664] sm:$0xff]
  %v666 = vld [vmem:[%s664 + $0x8] sm:$0xf]
  %671 = vrot.lane.b32.xlu0 %v660, 127
  %v672 = vpop.permute.xlu0 %671
  %673 = vrot.lane.b32.xlu0 %v661, 127
  %v674 = vpop.permute.xlu0 %673
  %675 = vrot.lane.b32.xlu0 %v662, 127
  %v676 = vpop.permute.xlu0 %675
  %677 = vrot.lane.b32.xlu0 %v663, 127
  %v678 = vpop.permute.xlu0 %677
  %v679 = vsel %vm295, %v672, %v674
  %v680 = vsel %vm295, %v676, %v678
  %685 = vrot.lane.b32.xlu0 %v660, 126
  %v686 = vpop.permute.xlu0 %685
  %687 = vrot.lane.b32.xlu0 %v661, 126
  %v688 = vpop.permute.xlu0 %687
  %689 = vrot.lane.b32.xlu0 %v662, 126
  %v690 = vpop.permute.xlu0 %689
  %691 = vrot.lane.b32.xlu0 %v663, 126
  %v692 = vpop.permute.xlu0 %691
  %v693 = vsel %vm310, %v686, %v688
  %v694 = vsel %vm310, %v690, %v692
  %699 = vrot.lane.b32.xlu0 %v660, 118
  %v700 = vpop.permute.xlu0 %699
  %701 = vrot.lane.b32.xlu0 %v661, 118
  %v702 = vpop.permute.xlu0 %701
  %703 = vrot.lane.b32.xlu0 %v662, 118
  %v704 = vpop.permute.xlu0 %703
  %705 = vrot.lane.b32.xlu0 %v663, 118
  %v706 = vpop.permute.xlu0 %705
  %v707 = vsel %vm325, %v700, %v702
  %v708 = vsel %vm325, %v704, %v706
  %713 = vrot.lane.b32.xlu0 %v660, 117
  %v714 = vpop.permute.xlu0 %713
  %715 = vrot.lane.b32.xlu0 %v661, 117
  %v716 = vpop.permute.xlu0 %715
  %717 = vrot.lane.b32.xlu0 %v662, 117
  %v718 = vpop.permute.xlu0 %717
  %719 = vrot.lane.b32.xlu0 %v663, 117
  %v720 = vpop.permute.xlu0 %719
  %v721 = vsel %vm340, %v714, %v716
  %v722 = vsel %vm340, %v718, %v720
  %727 = vrot.lane.b32.xlu0 %v660, 116
  %v728 = vpop.permute.xlu0 %727
  %729 = vrot.lane.b32.xlu0 %v661, 116
  %v730 = vpop.permute.xlu0 %729
  %731 = vrot.lane.b32.xlu0 %v662, 116
  %v732 = vpop.permute.xlu0 %731
  %733 = vrot.lane.b32.xlu0 %v663, 116
  %v734 = vpop.permute.xlu0 %733
  %v735 = vsel %vm355, %v728, %v730
  %v736 = vsel %vm355, %v732, %v734
  %741 = vrot.lane.b32.xlu0 %v660, 108
  %v742 = vpop.permute.xlu0 %741
  %743 = vrot.lane.b32.xlu0 %v661, 108
  %v744 = vpop.permute.xlu0 %743
  %745 = vrot.lane.b32.xlu0 %v662, 108
  %v746 = vpop.permute.xlu0 %745
  %747 = vrot.lane.b32.xlu0 %v663, 108
  %v748 = vpop.permute.xlu0 %747
  %v749 = vsel %vm370, %v742, %v744
  %v750 = vsel %vm370, %v746, %v748
  %755 = vrot.lane.b32.xlu0 %v660, 107
  %v756 = vpop.permute.xlu0 %755
  %757 = vrot.lane.b32.xlu0 %v661, 107
  %v758 = vpop.permute.xlu0 %757
  %759 = vrot.lane.b32.xlu0 %v662, 107
  %v760 = vpop.permute.xlu0 %759
  %761 = vrot.lane.b32.xlu0 %v663, 107
  %v762 = vpop.permute.xlu0 %761
  %v763 = vsel %vm385, %v756, %v758
  %v764 = vsel %vm385, %v760, %v762
  %769 = vrot.lane.b32.xlu0 %v660, 106
  %v770 = vpop.permute.xlu0 %769
  %771 = vrot.lane.b32.xlu0 %v661, 106
  %v772 = vpop.permute.xlu0 %771
  %773 = vrot.lane.b32.xlu0 %v662, 106
  %v774 = vpop.permute.xlu0 %773
  %775 = vrot.lane.b32.xlu0 %v663, 106
  %v776 = vpop.permute.xlu0 %775
  %v777 = vsel %vm400, %v770, %v772
  %v778 = vsel %vm400, %v774, %v776
  %v785 = vunpack.c.l.b16 %v665
  %v786 = vunpack.c.h.b16 %v665
  %v787 = vunpack.c.l.b16 %v666
  %v788 = vpack.c.b16 %v785, %v785
  %v789 = vpack.c.b16 %v786, %v786
  %v790 = vpack.c.b16 %v787, %v787
  %v794 = vsel %vm417, %v790, 0
  %796 = vmatprep.subr.bf16.mxu0 %v661
  %797 = vmatpush1.bf16.msra.mxu0 %v660
  %798 = vmatprep.subr.bf16.mxu0 %v663
  %799 = vmatpush1.bf16.msra.mxu0 %v662
  %800 = vmatprep.subr.bf16.mxu0 %v674
  %801 = vmatpush1.bf16.msra.mxu0 %v679
  %802 = vmatprep.subr.bf16.mxu0 %v678
  %803 = vmatpush1.bf16.msra.mxu0 %v680
  %804 = vmatprep.subr.bf16.mxu0 %v688
  %805 = vmatpush1.bf16.msra.mxu0 %v693
  %806 = vmatprep.subr.bf16.mxu0 %v692
  %807 = vmatpush1.bf16.msra.mxu0 %v694
  %808 = vmatprep.subr.bf16.mxu0 %v702
  %809 = vmatpush1.bf16.msra.mxu0 %v707
  %810 = vmatprep.subr.bf16.mxu0 %v706
  %811 = vmatpush1.bf16.msra.mxu0 %v708
  %812 = vmatprep.subr.bf16.mxu0 %v716
  %813 = vmatpush1.bf16.msra.mxu0 %v721
  %814 = vmatprep.subr.bf16.mxu0 %v720
  %815 = vmatpush1.bf16.msra.mxu0 %v722
  %816 = vmatprep.subr.bf16.mxu0 %v730
  %817 = vmatpush1.bf16.msra.mxu0 %v735
  %818 = vmatprep.subr.bf16.mxu0 %v734
  %819 = vmatpush1.bf16.msra.mxu0 %v736
  %820 = vmatprep.subr.bf16.mxu0 %v744
  %821 = vmatpush1.bf16.msra.mxu0 %v749
  %822 = vmatprep.subr.bf16.mxu0 %v748
  %823 = vmatpush1.bf16.msra.mxu0 %v750
  %824 = vmatprep.subr.bf16.mxu0 %v758
  %825 = vmatpush1.bf16.msra.mxu0 %v763
  %826 = vmatprep.subr.bf16.mxu0 %v762
  %827 = vmatpush1.bf16.msra.mxu0 %v764
  %828 = vmatprep.mubr.bf16.mxu0 %v789
  %829 = vmatmul.mubr.bf16.gmra.mrb[0].mxu0 %v788
  %v830 = vpop.f32.mrb[0].mxu0
  %v831 = vadd.f32 0.0, %v830
  %v832 = vpop.f32.mrb[0].mxu0
  %v833 = vadd.f32 0.0, %v832
  %v834 = vpop.f32.mrb[0].mxu0
  %v835 = vpop.f32.mrb[0].mxu0
  %836 = vdwg.mxu0
  %837 = vmatprep.subr.bf16.mxu0 %v772
  %838 = vmatpush1.bf16.msra.mxu0 %v777
  %839 = vmatprep.subr.bf16.mxu0 %v776
  %840 = vmatpush1.bf16.msra.mxu0 %v778
  %841 = vmatprep.subr.bf16.mxu0 0
  %842 = vmatpush1.bf16.msra.mxu0 0
  %843 = vmatprep.subr.bf16.mxu0 0
  %844 = vmatpush1.bf16.msra.mxu0 0
  %845 = vmatprep.subr.bf16.mxu0 0
  %846 = vmatpush1.bf16.msra.mxu0 0
  %847 = vmatprep.subr.bf16.mxu0 0
  %848 = vmatpush1.bf16.msra.mxu0 0
  %849 = vmatprep.subr.bf16.mxu0 0
  %850 = vmatpush1.bf16.msra.mxu0 0
  %851 = vmatprep.subr.bf16.mxu0 0
  %852 = vmatpush1.bf16.msra.mxu0 0
  %853 = vmatprep.subr.bf16.mxu0 0
  %854 = vmatpush1.bf16.msra.mxu0 0
  %855 = vmatprep.subr.bf16.mxu0 0
  %856 = vmatpush1.bf16.msra.mxu0 0
  %857 = vmatprep.subr.bf16.mxu0 0
  %858 = vmatpush1.bf16.msra.mxu0 0
  %859 = vmatprep.subr.bf16.mxu0 0
  %860 = vmatpush1.bf16.msra.mxu0 0
  %861 = vmatprep.subr.bf16.mxu0 0
  %862 = vmatpush1.bf16.msra.mxu0 0
  %863 = vmatprep.subr.bf16.mxu0 0
  %864 = vmatpush1.bf16.msra.mxu0 0
  %865 = vmatprep.subr.bf16.mxu0 0
  %866 = vmatpush1.bf16.msra.mxu0 0
  %867 = vmatprep.subr.bf16.mxu0 0
  %868 = vmatpush1.bf16.msra.mxu0 0
  %869 = vmatprep.mubr.bf16.mxu0 0
  %870 = vmatmul.mubr.bf16.gmra.mrb[0].mxu0 %v794
  %v871 = vpop.f32.mrb[0].mxu0
  %v872 = vadd.f32 %v831, %v871
  %v873 = vpop.f32.mrb[0].mxu0
  %v874 = vadd.f32 %v833, %v873
  %v875 = vpop.f32.mrb[0].mxu0
  %v876 = vpop.f32.mrb[0].mxu0
  %877 = vdwg.mxu0
  %v878 = vmax.f32 %v872, 0.0
  %v879 = vmax.f32 %v874, 0.0
  %v880 = vpack.c.bf16 %v878, %v878
  %v881 = vpack.c.bf16 %v879, %v879
  %s882 = scalar_lea.vmem %s5, 16
  %v883 = vld [vmem:[%s882] sm:$0xf]
  %v884 = vld [vmem:[%s882 + $0x4] sm:$0xf]
  %v885 = vld [vmem:[%s882 + $0x8] sm:$0xf]
  %v886 = vld [vmem:[%s882 + $0xc] sm:$0xf]
  %v891 = vunpack.c.l.b16 %v883
  %v892 = vunpack.c.l.b16 %v884
  %v893 = vunpack.c.l.b16 %v885
  %v894 = vunpack.c.l.b16 %v886
  %v895 = vpack.c.b16 %v892, %v891
  %v896 = vpack.c.b16 %v894, %v893
  %v898 = vsel %vm521, %v895, 0
  %v901 = vsel %vm521, %v896, 0
  %v904 = vsel %vm154, %v880, 0
  %v907 = vsel %vm154, %v881, 0
  %909 = vmatprep.subr.bf16.mxu0 %v907
  %910 = vmatpush1.bf16.msra.mxu0 %v904
  %911 = vmatprep.subr.bf16.mxu0 0
  %912 = vmatpush1.bf16.msra.mxu0 0
  %913 = vmatprep.subr.bf16.mxu0 0
  %914 = vmatpush1.bf16.msra.mxu0 0
  %915 = vmatprep.subr.bf16.mxu0 0
  %916 = vmatpush1.bf16.msra.mxu0 0
  %917 = vmatprep.subr.bf16.mxu0 0
  %918 = vmatpush1.bf16.msra.mxu0 0
  %919 = vmatprep.subr.bf16.mxu0 0
  %920 = vmatpush1.bf16.msra.mxu0 0
  %921 = vmatprep.subr.bf16.mxu0 0
  %922 = vmatpush1.bf16.msra.mxu0 0
  %923 = vmatprep.subr.bf16.mxu0 0
  %924 = vmatpush1.bf16.msra.mxu0 0
  %925 = vmatprep.subr.bf16.mxu0 0
  %926 = vmatpush1.bf16.msra.mxu0 0
  %927 = vmatprep.subr.bf16.mxu0 0
  %928 = vmatpush1.bf16.msra.mxu0 0
  %929 = vmatprep.subr.bf16.mxu0 0
  %930 = vmatpush1.bf16.msra.mxu0 0
  %931 = vmatprep.subr.bf16.mxu0 0
  %932 = vmatpush1.bf16.msra.mxu0 0
  %933 = vmatprep.subr.bf16.mxu0 0
  %934 = vmatpush1.bf16.msra.mxu0 0
  %935 = vmatprep.subr.bf16.mxu0 0
  %936 = vmatpush1.bf16.msra.mxu0 0
  %937 = vmatprep.subr.bf16.mxu0 0
  %938 = vmatpush1.bf16.msra.mxu0 0
  %939 = vmatprep.subr.bf16.mxu0 0
  %940 = vmatpush1.bf16.msra.mxu0 0
  %941 = vmatprep.mubr.bf16.mxu0 0
  %942 = vmatmul.mubr.bf16.gmra.mrb[0].mxu0 %v898
  %v943 = vpop.f32.mrb[0].mxu0
  %v944 = vadd.f32 0.0, %v943
  %v945 = vpop.f32.mrb[0].mxu0
  %v946 = vadd.f32 0.0, %v945
  %v947 = vpop.f32.mrb[0].mxu0
  %v948 = vadd.f32 0.0, %v947
  %v949 = vpop.f32.mrb[0].mxu0
  %v950 = vadd.f32 0.0, %v949
  %951 = vmatprep.mubr.bf16.mxu0 0
  %952 = vmatmul.mubr.bf16.gmra.mrb[0].mxu0 %v901
  %v953 = vpop.f32.mrb[0].mxu0
  %v954 = vadd.f32 0.0, %v953
  %v955 = vpop.f32.mrb[0].mxu0
  %v956 = vadd.f32 0.0, %v955
  %v957 = vpop.f32.mrb[0].mxu0
  %v958 = vadd.f32 0.0, %v957
  %v959 = vpop.f32.mrb[0].mxu0
  %v960 = vadd.f32 0.0, %v959
  %961 = vdwg.mxu0
  %v962 = vunpack.c.l.bf16 %v656
  %v963 = vunpack.c.l.bf16 %v657
  %v964 = vunpack.c.h.bf16 %v656
  %v965 = vunpack.c.h.bf16 %v657
  %v966 = vunpack.c.l.bf16 %v658
  %v967 = vunpack.c.l.bf16 %v659
  %v968 = vunpack.c.h.bf16 %v658
  %v969 = vunpack.c.h.bf16 %v659
  %978 = vrot.lane.b32.xlu0 %v944, 11
  %v979 = vpop.permute.xlu0 %978
  %980 = vrot.lane.b32.xlu0 %v946, 11
  %v981 = vpop.permute.xlu0 %980
  %982 = vrot.lane.b32.xlu0 %v948, 11
  %v983 = vpop.permute.xlu0 %982
  %984 = vrot.lane.b32.xlu0 %v950, 11
  %v985 = vpop.permute.xlu0 %984
  %986 = vrot.lane.b32.xlu0 %v954, 11
  %v987 = vpop.permute.xlu0 %986
  %988 = vrot.lane.b32.xlu0 %v956, 11
  %v989 = vpop.permute.xlu0 %988
  %990 = vrot.lane.b32.xlu0 %v958, 11
  %v991 = vpop.permute.xlu0 %990
  %992 = vrot.lane.b32.xlu0 %v960, 11
  %v993 = vpop.permute.xlu0 %992
  %v994 = vsel %vm619, %v979, %v981
  %v995 = vsel %vm619, %v983, %v985
  %v996 = vsel %vm619, %v987, %v989
  %v997 = vsel %vm619, %v991, %v993
  %v1006 = vadd.f32 %v962, %v979
  %v1007 = vadd.f32 %v963, %v994
  %v1008 = vadd.f32 %v964, %v983
  %v1009 = vadd.f32 %v965, %v995
  %v1010 = vadd.f32 %v966, %v987
  %v1011 = vadd.f32 %v967, %v996
  %v1012 = vadd.f32 %v968, %v991
  %v1013 = vadd.f32 %v969, %v997
  %v1014 = vmax.f32 %v1006, 0.0
  %v1015 = vmax.f32 %v1007, 0.0
  %v1016 = vmax.f32 %v1008, 0.0
  %v1017 = vmax.f32 %v1009, 0.0
  %v1018 = vmax.f32 %v1010, 0.0
  %v1019 = vmax.f32 %v1011, 0.0
  %v1020 = vmax.f32 %v1012, 0.0
  %v1021 = vmax.f32 %v1013, 0.0
  %v1022 = vmul.f32 %v1014, %v222
  %v1023 = vmul.f32 %v1015, %v226
  %v1024 = vmul.f32 %v1016, %v222
  %v1025 = vmul.f32 %v1017, %v226
  %v1026 = vmul.f32 %v1018, %v222
  %v1027 = vmul.f32 %v1019, %v226
  %v1028 = vmul.f32 %v1020, %v222
  %v1029 = vmul.f32 %v1021, %v226
  %v1030 = vpack.c.bf16 %v1024, %v1022
  %v1031 = vpack.c.bf16 %v1025, %v1023
  %v1032 = vpack.c.bf16 %v1028, %v1026
  %v1033 = vpack.c.bf16 %v1029, %v1027
  %1034 = vst.msk [vmem:[#allocation2] sm:$0xff] %vm267, %v1030
  %1035 = vst.msk [vmem:[#allocation2 + $0x8] sm:$0xff] %vm269, %v1031
  %1036 = vst.msk [vmem:[#allocation2 + $0x10] sm:$0xff] %vm267, %v1032
  %1037 = vst.msk [vmem:[#allocation2 + $0x18] sm:$0xff] %vm269, %v1033
  %v1038 = vld [vmem:[#allocation2] sm:$0xff]
  %v1039 = vld [vmem:[#allocation2 + $0x8] sm:$0xff]
  %v1040 = vld [vmem:[#allocation2 + $0x10] sm:$0xff]
  %v1041 = vld [vmem:[#allocation2 + $0x18] sm:$0xff]
  %v1042 = vld [vmem:[%s6] sm:$0xff]
  %v1043 = vld [vmem:[%s6 + $0x8] sm:$0xf]
  %v1044 = vld [vmem:[%s6 + $0xc] sm:$0xff]
  %v1045 = vld [vmem:[%s6 + $0x14] sm:$0xf]
  %v1046 = vld [vmem:[%s6 + $0x18] sm:$0xff]
  %v1047 = vld [vmem:[%s6 + $0x20] sm:$0xf]
  %v1048 = vld [vmem:[%s6 + $0x24] sm:$0xff]
  %v1049 = vld [vmem:[%s6 + $0x2c] sm:$0xf]
  %v1050 = vld [vmem:[%s6 + $0x30] sm:$0xff]
  %v1051 = vld [vmem:[%s6 + $0x38] sm:$0xf]
  %v1052 = vld [vmem:[%s6 + $0x3c] sm:$0xff]
  %v1053 = vld [vmem:[%s6 + $0x44] sm:$0xf]
  %v1054 = vld [vmem:[%s6 + $0x48] sm:$0xff]
  %v1055 = vld [vmem:[%s6 + $0x50] sm:$0xf]
  %v1056 = vld [vmem:[%s6 + $0x54] sm:$0xff]
  %v1057 = vld [vmem:[%s6 + $0x5c] sm:$0xf]
  %1062 = vrot.lane.b32.xlu0 %v1038, 127
  %v1063 = vpop.permute.xlu0 %1062
  %1064 = vrot.lane.b32.xlu0 %v1039, 127
  %v1065 = vpop.permute.xlu0 %1064
  %1066 = vrot.lane.b32.xlu0 %v1040, 127
  %v1067 = vpop.permute.xlu0 %1066
  %1068 = vrot.lane.b32.xlu0 %v1041, 127
  %v1069 = vpop.permute.xlu0 %1068
  %v1070 = vsel %vm295, %v1063, %v1065
  %v1071 = vsel %vm295, %v1067, %v1069
  %1076 = vrot.lane.b32.xlu0 %v1038, 126
  %v1077 = vpop.permute.xlu0 %1076
  %1078 = vrot.lane.b32.xlu0 %v1039, 126
  %v1079 = vpop.permute.xlu0 %1078
  %1080 = vrot.lane.b32.xlu0 %v1040, 126
  %v1081 = vpop.permute.xlu0 %1080
  %1082 = vrot.lane.b32.xlu0 %v1041, 126
  %v1083 = vpop.permute.xlu0 %1082
  %v1084 = vsel %vm310, %v1077, %v1079
  %v1085 = vsel %vm310, %v1081, %v1083
  %1090 = vrot.lane.b32.xlu0 %v1038, 118
  %v1091 = vpop.permute.xlu0 %1090
  %1092 = vrot.lane.b32.xlu0 %v1039, 118
  %v1093 = vpop.permute.xlu0 %1092
  %1094 = vrot.lane.b32.xlu0 %v1040, 118
  %v1095 = vpop.permute.xlu0 %1094
  %1096 = vrot.lane.b32.xlu0 %v1041, 118
  %v1097 = vpop.permute.xlu0 %1096
  %v1098 = vsel %vm325, %v1091, %v1093
  %v1099 = vsel %vm325, %v1095, %v1097
  %1104 = vrot.lane.b32.xlu0 %v1038, 117
  %v1105 = vpop.permute.xlu0 %1104
  %1106 = vrot.lane.b32.xlu0 %v1039, 117
  %v1107 = vpop.permute.xlu0 %1106
  %1108 = vrot.lane.b32.xlu0 %v1040, 117
  %v1109 = vpop.permute.xlu0 %1108
  %1110 = vrot.lane.b32.xlu0 %v1041, 117
  %v1111 = vpop.permute.xlu0 %1110
  %v1112 = vsel %vm340, %v1105, %v1107
  %v1113 = vsel %vm340, %v1109, %v1111
  %1118 = vrot.lane.b32.xlu0 %v1038, 116
  %v1119 = vpop.permute.xlu0 %1118
  %1120 = vrot.lane.b32.xlu0 %v1039, 116
  %v1121 = vpop.permute.xlu0 %1120
  %1122 = vrot.lane.b32.xlu0 %v1040, 116
  %v1123 = vpop.permute.xlu0 %1122
  %1124 = vrot.lane.b32.xlu0 %v1041, 116
  %v1125 = vpop.permute.xlu0 %1124
  %v1126 = vsel %vm355, %v1119, %v1121
  %v1127 = vsel %vm355, %v1123, %v1125
  %1132 = vrot.lane.b32.xlu0 %v1038, 108
  %v1133 = vpop.permute.xlu0 %1132
  %1134 = vrot.lane.b32.xlu0 %v1039, 108
  %v1135 = vpop.permute.xlu0 %1134
  %1136 = vrot.lane.b32.xlu0 %v1040, 108
  %v1137 = vpop.permute.xlu0 %1136
  %1138 = vrot.lane.b32.xlu0 %v1041, 108
  %v1139 = vpop.permute.xlu0 %1138
  %v1140 = vsel %vm370, %v1133, %v1135
  %v1141 = vsel %vm370, %v1137, %v1139
  %1146 = vrot.lane.b32.xlu0 %v1038, 107
  %v1147 = vpop.permute.xlu0 %1146
  %1148 = vrot.lane.b32.xlu0 %v1039, 107
  %v1149 = vpop.permute.xlu0 %1148
  %1150 = vrot.lane.b32.xlu0 %v1040, 107
  %v1151 = vpop.permute.xlu0 %1150
  %1152 = vrot.lane.b32.xlu0 %v1041, 107
  %v1153 = vpop.permute.xlu0 %1152
  %v1154 = vsel %vm385, %v1147, %v1149
  %v1155 = vsel %vm385, %v1151, %v1153
  %1160 = vrot.lane.b32.xlu0 %v1038, 106
  %v1161 = vpop.permute.xlu0 %1160
  %1162 = vrot.lane.b32.xlu0 %v1039, 106
  %v1163 = vpop.permute.xlu0 %1162
  %1164 = vrot.lane.b32.xlu0 %v1040, 106
  %v1165 = vpop.permute.xlu0 %1164
  %1166 = vrot.lane.b32.xlu0 %v1041, 106
  %v1167 = vpop.permute.xlu0 %1166
  %v1168 = vsel %vm400, %v1161, %v1163
  %v1169 = vsel %vm400, %v1165, %v1167
  %v1174 = vld [vmem:[%s7] sm:$0xff]
  %v1175 = vld [vmem:[%s7 + $0x8] sm:$0xff]
  %v1176 = vld [vmem:[%s7 + $0x10] sm:$0xff]
  %v1177 = vld [vmem:[%s7 + $0x18] sm:$0xff]
  %v1178 = vld [vmem:[%s7 + $0x20] sm:$0xff]
  %v1179 = vld [vmem:[%s7 + $0x28] sm:$0xff]
  %v1180 = vld [vmem:[%s7 + $0x30] sm:$0xff]
  %v1181 = vld [vmem:[%s7 + $0x38] sm:$0xff]
  %1183 = vset.pattern.permute.xlu0 0
  %1184 = vperm.xlu0 %1183, %v1174
  %v1185 = vpop.permute.xlu0 %1184
  %1188 = vset.pattern.permute.xlu0 0
  %1189 = vperm.xlu0 %1188, %v1175
  %v1190 = vpop.permute.xlu0 %1189
  %1193 = vset.pattern.permute.xlu0 0
  %1194 = vperm.xlu0 %1193, %v1176
  %v1195 = vpop.permute.xlu0 %1194
  %1198 = vset.pattern.permute.xlu0 0
  %1199 = vperm.xlu0 %1198, %v1177
  %v1200 = vpop.permute.xlu0 %1199
  %1203 = vset.pattern.permute.xlu0 0
  %1204 = vperm.xlu0 %1203, %v1178
  %v1205 = vpop.permute.xlu0 %1204
  %1208 = vset.pattern.permute.xlu0 0
  %1209 = vperm.xlu0 %1208, %v1179
  %v1210 = vpop.permute.xlu0 %1209
  %1213 = vset.pattern.permute.xlu0 0
  %1214 = vperm.xlu0 %1213, %v1180
  %v1215 = vpop.permute.xlu0 %1214
  %1218 = vset.pattern.permute.xlu0 0
  %1219 = vperm.xlu0 %1218, %v1181
  %v1220 = vpop.permute.xlu0 %1219
  %v1238 = vunpack.c.l.b16 %v1042
  %v1239 = vunpack.c.h.b16 %v1042
  %v1240 = vunpack.c.l.b16 %v1043
  %v1241 = vunpack.c.l.b16 %v1044
  %v1242 = vunpack.c.h.b16 %v1044
  %v1243 = vunpack.c.l.b16 %v1045
  %v1244 = vunpack.c.l.b16 %v1046
  %v1245 = vunpack.c.h.b16 %v1046
  %v1246 = vunpack.c.l.b16 %v1047
  %v1247 = vunpack.c.l.b16 %v1048
  %v1248 = vunpack.c.h.b16 %v1048
  %v1249 = vunpack.c.l.b16 %v1049
  %v1250 = vunpack.c.l.b16 %v1050
  %v1251 = vunpack.c.h.b16 %v1050
  %v1252 = vunpack.c.l.b16 %v1051
  %v1253 = vunpack.c.l.b16 %v1052
  %v1254 = vunpack.c.h.b16 %v1052
  %v1255 = vunpack.c.l.b16 %v1053
  %v1256 = vunpack.c.l.b16 %v1054
  %v1257 = vunpack.c.h.b16 %v1054
  %v1258 = vunpack.c.l.b16 %v1055
  %v1259 = vunpack.c.l.b16 %v1056
  %v1260 = vunpack.c.h.b16 %v1056
  %v1261 = vunpack.c.l.b16 %v1057
  %v1262 = vpack.c.b16 %v1241, %v1238
  %v1263 = vpack.c.b16 %v1242, %v1239
  %v1264 = vpack.c.b16 %v1243, %v1240
  %v1265 = vpack.c.b16 %v1247, %v1244
  %v1266 = vpack.c.b16 %v1248, %v1245
  %v1267 = vpack.c.b16 %v1249, %v1246
  %v1268 = vpack.c.b16 %v1253, %v1250
  %v1269 = vpack.c.b16 %v1254, %v1251
  %v1270 = vpack.c.b16 %v1255, %v1252
  %v1271 = vpack.c.b16 %v1259, %v1256
  %v1272 = vpack.c.b16 %v1260, %v1257
  %v1273 = vpack.c.b16 %v1261, %v1258
  %v1283 = vsel %vm417, %v1264, 0
  %v1286 = vsel %vm417, %v1267, 0
  %v1289 = vsel %vm417, %v1270, 0
  %v1292 = vsel %vm417, %v1273, 0
  %1294 = vmatprep.subr.bf16.mxu0 %v1039
  %1295 = vmatpush1.bf16.msra.mxu0 %v1038
  %1296 = vmatprep.subr.bf16.mxu0 %v1041
  %1297 = vmatpush1.bf16.msra.mxu0 %v1040
  %1298 = vmatprep.subr.bf16.mxu0 %v1065
  %1299 = vmatpush1.bf16.msra.mxu0 %v1070
  %1300 = vmatprep.subr.bf16.mxu0 %v1069
  %1301 = vmatpush1.bf16.msra.mxu0 %v1071
  %1302 = vmatprep.subr.bf16.mxu0 %v1079
  %1303 = vmatpush1.bf16.msra.mxu0 %v1084
  %1304 = vmatprep.subr.bf16.mxu0 %v1083
  %1305 = vmatpush1.bf16.msra.mxu0 %v1085
  %1306 = vmatprep.subr.bf16.mxu0 %v1093
  %1307 = vmatpush1.bf16.msra.mxu0 %v1098
  %1308 = vmatprep.subr.bf16.mxu0 %v1097
  %1309 = vmatpush1.bf16.msra.mxu0 %v1099
  %1310 = vmatprep.subr.bf16.mxu0 %v1107
  %1311 = vmatpush1.bf16.msra.mxu0 %v1112
  %1312 = vmatprep.subr.bf16.mxu0 %v1111
  %1313 = vmatpush1.bf16.msra.mxu0 %v1113
  %1314 = vmatprep.subr.bf16.mxu0 %v1121
  %1315 = vmatpush1.bf16.msra.mxu0 %v1126
  %1316 = vmatprep.subr.bf16.mxu0 %v1125
  %1317 = vmatpush1.bf16.msra.mxu0 %v1127
  %1318 = vmatprep.subr.bf16.mxu0 %v1135
  %1319 = vmatpush1.bf16.msra.mxu0 %v1140
  %1320 = vmatprep.subr.bf16.mxu0 %v1139
  %1321 = vmatpush1.bf16.msra.mxu0 %v1141
  %1322 = vmatprep.subr.bf16.mxu0 %v1149
  %1323 = vmatpush1.bf16.msra.mxu0 %v1154
  %1324 = vmatprep.subr.bf16.mxu0 %v1153
  %1325 = vmatpush1.bf16.msra.mxu0 %v1155
  %1326 = vmatprep.mubr.bf16.mxu0 %v1263
  %1327 = vmatmul.mubr.bf16.gmra.mrb[0].mxu0 %v1262
  %v1328 = vpop.f32.mrb[0].mxu0
  %v1329 = vadd.f32 %v1185, %v1328
  %v1330 = vpop.f32.mrb[0].mxu0
  %v1331 = vadd.f32 %v1185, %v1330
  %v1332 = vpop.f32.mrb[0].mxu0
  %v1333 = vadd.f32 %v1190, %v1332
  %v1334 = vpop.f32.mrb[0].mxu0
  %v1335 = vadd.f32 %v1190, %v1334
  %1336 = vmatprep.mubr.bf16.mxu0 %v1266
  %1337 = vmatmul.mubr.bf16.gmra.mrb[0].mxu0 %v1265
  %v1338 = vpop.f32.mrb[0].mxu0
  %v1339 = vadd.f32 %v1195, %v1338
  %v1340 = vpop.f32.mrb[0].mxu0
  %v1341 = vadd.f32 %v1195, %v1340
  %v1342 = vpop.f32.mrb[0].mxu0
  %v1343 = vadd.f32 %v1200, %v1342
  %v1344 = vpop.f32.mrb[0].mxu0
  %v1345 = vadd.f32 %v1200, %v1344
  %1346 = vmatprep.mubr.bf16.mxu0 %v1269
  %1347 = vmatmul.mubr.bf16.gmra.mrb[0].mxu0 %v1268
  %v1348 = vpop.f32.mrb[0].mxu0
  %v1349 = vadd.f32 %v1205, %v1348
  %v1350 = vpop.f32.mrb[0].mxu0
  %v1351 = vadd.f32 %v1205, %v1350
  %v1352 = vpop.f32.mrb[0].mxu0
  %v1353 = vadd.f32 %v1210, %v1352
  %v1354 = vpop.f32.mrb[0].mxu0
  %v1355 = vadd.f32 %v1210, %v1354
  %1356 = vmatprep.mubr.bf16.mxu0 %v1272
  %1357 = vmatmul.mubr.bf16.gmra.mrb[0].mxu0 %v1271
  %v1358 = vpop.f32.mrb[0].mxu0
  %v1359 = vadd.f32 %v1215, %v1358
  %v1360 = vpop.f32.mrb[0].mxu0
  %v1361 = vadd.f32 %v1215, %v1360
  %v1362 = vpop.f32.mrb[0].mxu0
  %v1363 = vadd.f32 %v1220, %v1362
  %v1364 = vpop.f32.mrb[0].mxu0
  %v1365 = vadd.f32 %v1220, %v1364
  %1366 = vdwg.mxu0
  %1367 = vmatprep.subr.bf16.mxu0 %v1163
  %1368 = vmatpush1.bf16.msra.mxu0 %v1168
  %1369 = vmatprep.subr.bf16.mxu0 %v1167
  %1370 = vmatpush1.bf16.msra.mxu0 %v1169
  %1371 = vmatprep.subr.bf16.mxu0 0
  %1372 = vmatpush1.bf16.msra.mxu0 0
  %1373 = vmatprep.subr.bf16.mxu0 0
  %1374 = vmatpush1.bf16.msra.mxu0 0
  %1375 = vmatprep.subr.bf16.mxu0 0
  %1376 = vmatpush1.bf16.msra.mxu0 0
  %1377 = vmatprep.subr.bf16.mxu0 0
  %1378 = vmatpush1.bf16.msra.mxu0 0
  %1379 = vmatprep.subr.bf16.mxu0 0
  %1380 = vmatpush1.bf16.msra.mxu0 0
  %1381 = vmatprep.subr.bf16.mxu0 0
  %1382 = vmatpush1.bf16.msra.mxu0 0
  %1383 = vmatprep.subr.bf16.mxu0 0
  %1384 = vmatpush1.bf16.msra.mxu0 0
  %1385 = vmatprep.subr.bf16.mxu0 0
  %1386 = vmatpush1.bf16.msra.mxu0 0
  %1387 = vmatprep.subr.bf16.mxu0 0
  %1388 = vmatpush1.bf16.msra.mxu0 0
  %1389 = vmatprep.subr.bf16.mxu0 0
  %1390 = vmatpush1.bf16.msra.mxu0 0
  %1391 = vmatprep.subr.bf16.mxu0 0
  %1392 = vmatpush1.bf16.msra.mxu0 0
  %1393 = vmatprep.subr.bf16.mxu0 0
  %1394 = vmatpush1.bf16.msra.mxu0 0
  %1395 = vmatprep.subr.bf16.mxu0 0
  %1396 = vmatpush1.bf16.msra.mxu0 0
  %1397 = vmatprep.subr.bf16.mxu0 0
  %1398 = vmatpush1.bf16.msra.mxu0 0
  %1399 = vmatprep.mubr.bf16.mxu0 0
  %1400 = vmatmul.mubr.bf16.gmra.mrb[0].mxu0 %v1283
  %v1401 = vpop.f32.mrb[0].mxu0
  %v1402 = vadd.f32 %v1329, %v1401
  %v1403 = vpop.f32.mrb[0].mxu0
  %v1404 = vadd.f32 %v1331, %v1403
  %v1405 = vpop.f32.mrb[0].mxu0
  %v1406 = vadd.f32 %v1333, %v1405
  %v1407 = vpop.f32.mrb[0].mxu0
  %v1408 = vadd.f32 %v1335, %v1407
  %1409 = vmatprep.mubr.bf16.mxu0 0
  %1410 = vmatmul.mubr.bf16.gmra.mrb[0].mxu0 %v1286
  %v1411 = vpop.f32.mrb[0].mxu0
  %v1412 = vadd.f32 %v1339, %v1411
  %v1413 = vpop.f32.mrb[0].mxu0
  %v1414 = vadd.f32 %v1341, %v1413
  %v1415 = vpop.f32.mrb[0].mxu0
  %v1416 = vadd.f32 %v1343, %v1415
  %v1417 = vpop.f32.mrb[0].mxu0
  %v1418 = vadd.f32 %v1345, %v1417
  %1419 = vmatprep.mubr.bf16.mxu0 0
  %1420 = vmatmul.mubr.bf16.gmra.mrb[0].mxu0 %v1289
  %v1421 = vpop.f32.mrb[0].mxu0
  %v1422 = vadd.f32 %v1349, %v1421
  %v1423 = vpop.f32.mrb[0].mxu0
  %v1424 = vadd.f32 %v1351, %v1423
  %v1425 = vpop.f32.mrb[0].mxu0
  %v1426 = vadd.f32 %v1353, %v1425
  %v1427 = vpop.f32.mrb[0].mxu0
  %v1428 = vadd.f32 %v1355, %v1427
  %1429 = vmatprep.mubr.bf16.mxu0 0
  %1430 = vmatmul.mubr.bf16.gmra.mrb[0].mxu0 %v1292
  %v1431 = vpop.f32.mrb[0].mxu0
  %v1432 = vadd.f32 %v1359, %v1431
  %v1433 = vpop.f32.mrb[0].mxu0
  %v1434 = vadd.f32 %v1361, %v1433
  %v1435 = vpop.f32.mrb[0].mxu0
  %v1436 = vadd.f32 %v1363, %v1435
  %v1437 = vpop.f32.mrb[0].mxu0
  %v1438 = vadd.f32 %v1365, %v1437
  %1439 = vdwg.mxu0
  %v1440 = vmax.f32 %v1402, 0.0
  %v1441 = vmax.f32 %v1404, 0.0
  %v1442 = vmax.f32 %v1406, 0.0
  %v1443 = vmax.f32 %v1408, 0.0
  %v1444 = vmax.f32 %v1412, 0.0
  %v1445 = vmax.f32 %v1414, 0.0
  %v1446 = vmax.f32 %v1416, 0.0
  %v1447 = vmax.f32 %v1418, 0.0
  %v1448 = vmax.f32 %v1422, 0.0
  %v1449 = vmax.f32 %v1424, 0.0
  %v1450 = vmax.f32 %v1426, 0.0
  %v1451 = vmax.f32 %v1428, 0.0
  %v1452 = vmax.f32 %v1432, 0.0
  %v1453 = vmax.f32 %v1434, 0.0
  %v1454 = vmax.f32 %v1436, 0.0
  %v1455 = vmax.f32 %v1438, 0.0
  %v1456 = vpack.c.bf16 %v1442, %v1440
  %v1457 = vpack.c.bf16 %v1443, %v1441
  %v1458 = vpack.c.bf16 %v1446, %v1444
  %v1459 = vpack.c.bf16 %v1447, %v1445
  %v1460 = vpack.c.bf16 %v1450, %v1448
  %v1461 = vpack.c.bf16 %v1451, %v1449
  %v1462 = vpack.c.bf16 %v1454, %v1452
  %v1463 = vpack.c.bf16 %v1455, %v1453
  %v1472 = vunpack.c.l.b16 %v1456
  %v1473 = vunpack.c.l.b16 %v1457
  %v1474 = vunpack.c.h.b16 %v1456
  %v1475 = vunpack.c.h.b16 %v1457
  %v1476 = vunpack.c.l.b16 %v1458
  %v1477 = vunpack.c.l.b16 %v1459
  %v1478 = vunpack.c.h.b16 %v1458
  %v1479 = vunpack.c.h.b16 %v1459
  %v1480 = vunpack.c.l.b16 %v1460
  %v1481 = vunpack.c.l.b16 %v1461
  %v1482 = vunpack.c.h.b16 %v1460
  %v1483 = vunpack.c.h.b16 %v1461
  %v1484 = vunpack.c.l.b16 %v1462
  %v1485 = vunpack.c.l.b16 %v1463
  %v1486 = vunpack.c.h.b16 %v1462
  %v1487 = vunpack.c.h.b16 %v1463
  %v1488 = vpack.c.b16 %v1473, %v1472
  %v1489 = vpack.c.b16 %v1475, %v1474
  %v1490 = vpack.c.b16 %v1477, %v1476
  %v1491 = vpack.c.b16 %v1479, %v1478
  %v1492 = vpack.c.b16 %v1481, %v1480
  %v1493 = vpack.c.b16 %v1483, %v1482
  %v1494 = vpack.c.b16 %v1485, %v1484
  %v1495 = vpack.c.b16 %v1487, %v1486
  %vm1504 = vcmask 408580
  %vm1505 = vmor %vm1504, %vm154
  %1506 = vst.msk [vmem:[%s8] sm:$0xff] %vm1505, %v1488
  %1507 = vst.msk [vmem:[%s8 + $0x8] sm:$0xff] %vm1505, %v1489
  %1508 = vst.msk [vmem:[%s8 + $0x10] sm:$0xff] %vm1505, %v1490
  %1509 = vst.msk [vmem:[%s8 + $0x18] sm:$0xff] %vm1505, %v1491
  %1510 = vst.msk [vmem:[%s8 + $0x20] sm:$0xff] %vm1505, %v1492
  %1511 = vst.msk [vmem:[%s8 + $0x28] sm:$0xff] %vm1505, %v1493
  %1512 = vst.msk [vmem:[%s8 + $0x30] sm:$0xff] %vm1505, %v1494
  %1513 = vst.msk [vmem:[%s8 + $0x38] sm:$0xff] %vm1505, %v1495
  %vm1514 = vcmask 1043856
  %1515 = vst.msk [vmem:[%s8 + $0x4] sm:$0xf] %vm1514, 0
  %1516 = vst.msk [vmem:[%s8 + $0xc] sm:$0xf] %vm1514, 0
  %1517 = vst.msk [vmem:[%s8 + $0x14] sm:$0xf] %vm1514, 0
  %1518 = vst.msk [vmem:[%s8 + $0x1c] sm:$0xf] %vm1514, 0
  %1519 = vst.msk [vmem:[%s8 + $0x24] sm:$0xf] %vm1514, 0
  %1520 = vst.msk [vmem:[%s8 + $0x2c] sm:$0xf] %vm1514, 0
  %1521 = vst.msk [vmem:[%s8 + $0x34] sm:$0xf] %vm1514, 0
  %1522 = vst.msk [vmem:[%s8 + $0x3c] sm:$0xf] %vm1514, 0
  // Predicated region
  $region34: #{vqvae_forward.8} parent=0 // pred_check
    _
  $region35: #{vqvae_forward.8} parent=0 // pred_check_branch
    %1524 = sbr.rel (0) target = $region37
  $region36: #{vqvae_forward.8} parent=0 // pred_region
    _
  $region37: #{vqvae_forward.8} parent=0 // pred_fallthru
    _
  // Predicated region
  $region38: #{vqvae_forward.8} parent=0 // pred_check
    _
  $region39: #{vqvae_forward.8} parent=0 // pred_check_branch
    %1526 = sbr.rel (0) target = $region41
  $region40: #{vqvae_forward.8} parent=0 // pred_region
    _
  $region41: #{vqvae_forward.8} parent=0 // pred_fallthru
    _

// kernel: vqvae_forward.9
$region0: #{vqvae_forward.9}
  #allocation0 [shape = 'u32[]', space=smem, size = 0x4, offset = 0x4, fixed_abs, tag = 'smem constant byte address 0x4 - core index']
  #allocation1 [shape = 'u32[144,128]{1,0:T(1,128)}', space=vmem, size = 0x12000, scoped, tag = 'internal scratch']
  %s0 = inlined_call_operand.vmem [shape: bf16[16,768], index: 0, kind: input, shape index: {}]
  %s1 = inlined_call_operand.vmem [shape: bf16[12,144], index: 1, kind: input, shape index: {}]
  %s2 = inlined_call_operand.vmem [shape: f32[12,1], index: 2, kind: input, shape index: {}]
  %s3 = inlined_call_operand.vmem [shape: bf16[12,768], index: 3, kind: output, shape index: {}]
  %s4 = sld [smem:[#allocation0]]
  $region22: #{vqvae_forward.9} parent=0
    _
  %s6 = ssub.s32 1, %s4
  %s7 = scalar_select 0, %s6, %s4
  // Predicated region
  $region2: #{vqvae_forward.9} parent=0 // pred_check
    _
  $region3: #{vqvae_forward.9} parent=0 // pred_check_branch
    %9 = sbr.rel (0) target = $region5
  $region4: #{vqvae_forward.9} parent=0 // pred_region
    _
  $region5: #{vqvae_forward.9} parent=0 // pred_fallthru
    _
  // Predicated region
  $region6: #{vqvae_forward.9} parent=0 // pred_check
    _
  $region7: #{vqvae_forward.9} parent=0 // pred_check_branch
    %11 = sbr.rel (0) target = $region9
  $region8: #{vqvae_forward.9} parent=0 // pred_region
    _
  $region9: #{vqvae_forward.9} parent=0 // pred_fallthru
    _
  // Predicated region
  $region10: #{vqvae_forward.9} parent=0 // pred_check
    _
  $region11: #{vqvae_forward.9} parent=0 // pred_check_branch
    %13 = sbr.rel (0) target = $region13
  $region12: #{vqvae_forward.9} parent=0 // pred_region
    _
  $region13: #{vqvae_forward.9} parent=0 // pred_fallthru
    _
  %v15 = vld [vmem:[%s0] sm:$0xff]
  %v16 = vld [vmem:[%s0 + $0x8] sm:$0xff]
  %v17 = vld [vmem:[%s0 + $0x10] sm:$0xff]
  %v18 = vld [vmem:[%s0 + $0x18] sm:$0xff]
  %v19 = vld [vmem:[%s0 + $0x20] sm:$0xff]
  %v20 = vld [vmem:[%s0 + $0x28] sm:$0xff]
  %v21 = vld [vmem:[%s1] sm:$0xff]
  %v22 = vld [vmem:[%s1 + $0x8] sm:$0x33]
  %v29 = vunpack.c.l.b16 %v15
  %v30 = vunpack.c.h.b16 %v15
  %v31 = vunpack.c.l.b16 %v16
  %v32 = vunpack.c.h.b16 %v16
  %v33 = vunpack.c.l.b16 %v17
  %v34 = vunpack.c.l.b16 %v18
  %v35 = vunpack.c.h.b16 %v18
  %v36 = vunpack.c.l.b16 %v19
  %v37 = vunpack.c.h.b16 %v19
  %v38 = vunpack.c.l.b16 %v20
  %v39 = vpack.c.b16 %v34, %v29
  %v40 = vpack.c.b16 %v35, %v30
  %v41 = vpack.c.b16 %v36, %v31
  %v42 = vpack.c.b16 %v37, %v32
  %v43 = vpack.c.b16 %v38, %v33
  %49 = vrot.lane.b32.xlu0 %v39, 127
  %v50 = vpop.permute.xlu0 %49
  %51 = vrot.lane.b32.xlu0 %v40, 127
  %v52 = vpop.permute.xlu0 %51
  %53 = vrot.lane.b32.xlu0 %v41, 127
  %v54 = vpop.permute.xlu0 %53
  %55 = vrot.lane.b32.xlu0 %v42, 127
  %v56 = vpop.permute.xlu0 %55
  %57 = vrot.lane.b32.xlu0 %v43, 127
  %v58 = vpop.permute.xlu0 %57
  %vm59 = vcmask 1039360
  %v60 = vsel %vm59, %v50, %v52
  %v61 = vsel %vm59, %v52, %v54
  %v62 = vsel %vm59, %v54, %v56
  %v63 = vsel %vm59, %v56, %v58
  %69 = vrot.lane.b32.xlu0 %v39, 126
  %v70 = vpop.permute.xlu0 %69
  %71 = vrot.lane.b32.xlu0 %v40, 126
  %v72 = vpop.permute.xlu0 %71
  %73 = vrot.lane.b32.xlu0 %v41, 126
  %v74 = vpop.permute.xlu0 %73
  %75 = vrot.lane.b32.xlu0 %v42, 126
  %v76 = vpop.permute.xlu0 %75
  %77 = vrot.lane.b32.xlu0 %v43, 126
  %v78 = vpop.permute.xlu0 %77
  %vm79 = vcmask 1031168
  %v80 = vsel %vm79, %v70, %v72
  %v81 = vsel %vm79, %v72, %v74
  %v82 = vsel %vm79, %v74, %v76
  %v83 = vsel %vm79, %v76, %v78
  %89 = vrot.lane.b32.xlu0 %v39, 110
  %v90 = vpop.permute.xlu0 %89
  %91 = vrot.lane.b32.xlu0 %v40, 110
  %v92 = vpop.permute.xlu0 %91
  %93 = vrot.lane.b32.xlu0 %v41, 110
  %v94 = vpop.permute.xlu0 %93
  %95 = vrot.lane.b32.xlu0 %v42, 110
  %v96 = vpop.permute.xlu0 %95
  %97 = vrot.lane.b32.xlu0 %v43, 110
  %v98 = vpop.permute.xlu0 %97
  %vm99 = vcmask 900096
  %v100 = vsel %vm99, %v90, %v92
  %v101 = vsel %vm99, %v92, %v94
  %v102 = vsel %vm99, %v94, %v96
  %v103 = vsel %vm99, %v96, %v98
  %109 = vrot.lane.b32.xlu0 %v39, 109
  %v110 = vpop.permute.xlu0 %109
  %111 = vrot.lane.b32.xlu0 %v40, 109
  %v112 = vpop.permute.xlu0 %111
  %113 = vrot.lane.b32.xlu0 %v41, 109
  %v114 = vpop.permute.xlu0 %113
  %115 = vrot.lane.b32.xlu0 %v42, 109
  %v116 = vpop.permute.xlu0 %115
  %117 = vrot.lane.b32.xlu0 %v43, 109
  %v118 = vpop.permute.xlu0 %117
  %vm119 = vcmask 891904
  %v120 = vsel %vm119, %v110, %v112
  %v121 = vsel %vm119, %v112, %v114
  %v122 = vsel %vm119, %v114, %v116
  %v123 = vsel %vm119, %v116, %v118
  %129 = vrot.lane.b32.xlu0 %v39, 108
  %v130 = vpop.permute.xlu0 %129
  %131 = vrot.lane.b32.xlu0 %v40, 108
  %v132 = vpop.permute.xlu0 %131
  %133 = vrot.lane.b32.xlu0 %v41, 108
  %v134 = vpop.permute.xlu0 %133
  %135 = vrot.lane.b32.xlu0 %v42, 108
  %v136 = vpop.permute.xlu0 %135
  %137 = vrot.lane.b32.xlu0 %v43, 108
  %v138 = vpop.permute.xlu0 %137
  %vm139 = vcmask 883712
  %v140 = vsel %vm139, %v130, %v132
  %v141 = vsel %vm139, %v132, %v134
  %v142 = vsel %vm139, %v134, %v136
  %v143 = vsel %vm139, %v136, %v138
  %v149 = vunpack.c.h.b16 %v17
  %v150 = vunpack.c.h.b16 %v20
  %v151 = vpack.c.b16 %v150, %v149
  %152 = vrot.lane.b32.xlu0 %v39, 92
  %v153 = vpop.permute.xlu0 %152
  %154 = vrot.lane.b32.xlu0 %v40, 92
  %v155 = vpop.permute.xlu0 %154
  %156 = vrot.lane.b32.xlu0 %v41, 92
  %v157 = vpop.permute.xlu0 %156
  %158 = vrot.lane.b32.xlu0 %v42, 92
  %v159 = vpop.permute.xlu0 %158
  %160 = vrot.lane.b32.xlu0 %v43, 92
  %v161 = vpop.permute.xlu0 %160
  %162 = vrot.lane.b32.xlu0 %v151, 92
  %v163 = vpop.permute.xlu0 %162
  %vm164 = vcmask 752640
  %v165 = vsel %vm164, %v153, %v155
  %v166 = vsel %vm164, %v155, %v157
  %v167 = vsel %vm164, %v157, %v159
  %v168 = vsel %vm164, %v159, %v161
  %v169 = vsel %vm164, %v161, %v163
  %175 = vrot.lane.b32.xlu0 %v39, 91
  %v176 = vpop.permute.xlu0 %175
  %177 = vrot.lane.b32.xlu0 %v40, 91
  %v178 = vpop.permute.xlu0 %177
  %179 = vrot.lane.b32.xlu0 %v41, 91
  %v180 = vpop.permute.xlu0 %179
  %181 = vrot.lane.b32.xlu0 %v42, 91
  %v182 = vpop.permute.xlu0 %181
  %183 = vrot.lane.b32.xlu0 %v43, 91
  %v184 = vpop.permute.xlu0 %183
  %185 = vrot.lane.b32.xlu0 %v151, 91
  %v186 = vpop.permute.xlu0 %185
  %vm187 = vcmask 744448
  %v188 = vsel %vm187, %v176, %v178
  %v189 = vsel %vm187, %v178, %v180
  %v190 = vsel %vm187, %v180, %v182
  %v191 = vsel %vm187, %v182, %v184
  %v192 = vsel %vm187, %v184, %v186
  %198 = vrot.lane.b32.xlu0 %v39, 90
  %v199 = vpop.permute.xlu0 %198
  %200 = vrot.lane.b32.xlu0 %v40, 90
  %v201 = vpop.permute.xlu0 %200
  %202 = vrot.lane.b32.xlu0 %v41, 90
  %v203 = vpop.permute.xlu0 %202
  %204 = vrot.lane.b32.xlu0 %v42, 90
  %v205 = vpop.permute.xlu0 %204
  %206 = vrot.lane.b32.xlu0 %v43, 90
  %v207 = vpop.permute.xlu0 %206
  %208 = vrot.lane.b32.xlu0 %v151, 90
  %v209 = vpop.permute.xlu0 %208
  %vm210 = vcmask 736256
  %v211 = vsel %vm210, %v199, %v201
  %v212 = vsel %vm210, %v201, %v203
  %v213 = vsel %vm210, %v203, %v205
  %v214 = vsel %vm210, %v205, %v207
  %v215 = vsel %vm210, %v207, %v209
  %v221 = vld [vmem:[%s2] sm:$0xff]
  %v222 = vld [vmem:[%s2 + $0x8] sm:$0xf]
  %224 = vset.pattern.permute.xlu0 0
  %225 = vperm.xlu0 %224, %v221
  %v226 = vpop.permute.xlu0 %225
  %229 = vset.pattern.permute.xlu0 0
  %230 = vperm.xlu0 %229, %v222
  %v231 = vpop.permute.xlu0 %230
  %v235 = vunpack.c.l.b16 %v21
  %v236 = vunpack.c.h.b16 %v21
  %v237 = vunpack.c.l.b16 %v22
  %v238 = vunpack.c.h.b16 %v22
  %v239 = vpack.c.b16 %v237, %v235
  %v240 = vpack.c.b16 %v238, %v236
  %vm242 = vcmask 130048
  %v244 = vsel %vm242, %v240, 0
  %246 = vmatprep.subr.bf16.mxu0 %v40
  %247 = vmatpush1.bf16.msra.mxu0 %v39
  %248 = vmatprep.subr.bf16.mxu0 %v61
  %249 = vmatpush1.bf16.msra.mxu0 %v60
  %250 = vmatprep.subr.bf16.mxu0 %v81
  %251 = vmatpush1.bf16.msra.mxu0 %v80
  %252 = vmatprep.subr.bf16.mxu0 %v101
  %253 = vmatpush1.bf16.msra.mxu0 %v100
  %254 = vmatprep.subr.bf16.mxu0 %v121
  %255 = vmatpush1.bf16.msra.mxu0 %v120
  %256 = vmatprep.subr.bf16.mxu0 %v141
  %257 = vmatpush1.bf16.msra.mxu0 %v140
  %258 = vmatprep.subr.bf16.mxu0 %v166
  %259 = vmatpush1.bf16.msra.mxu0 %v165
  %260 = vmatprep.subr.bf16.mxu0 %v189
  %261 = vmatpush1.bf16.msra.mxu0 %v188
  %262 = vmatprep.subr.bf16.mxu0 %v212
  %263 = vmatpush1.bf16.msra.mxu0 %v211
  %264 = vmatprep.subr.bf16.mxu0 0
  %265 = vmatpush1.bf16.msra.mxu0 0
  %266 = vmatprep.subr.bf16.mxu0 0
  %267 = vmatpush1.bf16.msra.mxu0 0
  %268 = vmatprep.subr.bf16.mxu0 0
  %269 = vmatpush1.bf16.msra.mxu0 0
  %270 = vmatprep.subr.bf16.mxu0 0
  %271 = vmatpush1.bf16.msra.mxu0 0
  %272 = vmatprep.subr.bf16.mxu0 0
  %273 = vmatpush1.bf16.msra.mxu0 0
  %274 = vmatprep.subr.bf16.mxu0 0
  %275 = vmatpush1.bf16.msra.mxu0 0
  %276 = vmatprep.subr.bf16.mxu0 0
  %277 = vmatpush1.bf16.msra.mxu0 0
  %278 = vmatprep.mubr.bf16.mxu0 %v244
  %279 = vmatmul.mubr.bf16.gmra.mrb[0].mxu0 %v239
  %v280 = vpop.f32.mrb[0].mxu0
  %v281 = vadd.f32 %v226, %v280
  %v282 = vpop.f32.mrb[0].mxu0
  %v283 = vadd.f32 %v226, %v282
  %v284 = vpop.f32.mrb[0].mxu0
  %v285 = vadd.f32 %v231, %v284
  %v286 = vpop.f32.mrb[0].mxu0
  %v287 = vadd.f32 %v231, %v286
  %288 = vdwg.mxu0
  %289 = vmatprep.subr.bf16.mxu0 %v42
  %290 = vmatpush1.bf16.msra.mxu0 %v41
  %291 = vmatprep.subr.bf16.mxu0 %v63
  %292 = vmatpush1.bf16.msra.mxu0 %v62
  %293 = vmatprep.subr.bf16.mxu0 %v83
  %294 = vmatpush1.bf16.msra.mxu0 %v82
  %295 = vmatprep.subr.bf16.mxu0 %v103
  %296 = vmatpush1.bf16.msra.mxu0 %v102
  %297 = vmatprep.subr.bf16.mxu0 %v123
  %298 = vmatpush1.bf16.msra.mxu0 %v122
  %299 = vmatprep.subr.bf16.mxu0 %v143
  %300 = vmatpush1.bf16.msra.mxu0 %v142
  %301 = vmatprep.subr.bf16.mxu0 %v168
  %302 = vmatpush1.bf16.msra.mxu0 %v167
  %303 = vmatprep.subr.bf16.mxu0 %v191
  %304 = vmatpush1.bf16.msra.mxu0 %v190
  %305 = vmatprep.subr.bf16.mxu0 %v214
  %306 = vmatpush1.bf16.msra.mxu0 %v213
  %307 = vmatprep.subr.bf16.mxu0 0
  %308 = vmatpush1.bf16.msra.mxu0 0
  %309 = vmatprep.subr.bf16.mxu0 0
  %310 = vmatpush1.bf16.msra.mxu0 0
  %311 = vmatprep.subr.bf16.mxu0 0
  %312 = vmatpush1.bf16.msra.mxu0 0
  %313 = vmatprep.subr.bf16.mxu0 0
  %314 = vmatpush1.bf16.msra.mxu0 0
  %315 = vmatprep.subr.bf16.mxu0 0
  %316 = vmatpush1.bf16.msra.mxu0 0
  %317 = vmatprep.subr.bf16.mxu0 0
  %318 = vmatpush1.bf16.msra.mxu0 0
  %319 = vmatprep.subr.bf16.mxu0 0
  %320 = vmatpush1.bf16.msra.mxu0 0
  %321 = vmatprep.mubr.bf16.mxu0 %v244
  %322 = vmatmul.mubr.bf16.gmra.mrb[0].mxu0 %v239
  %v323 = vpop.f32.mrb[0].mxu0
  %v324 = vadd.f32 %v226, %v323
  %v325 = vpop.f32.mrb[0].mxu0
  %v326 = vadd.f32 %v226, %v325
  %v327 = vpop.f32.mrb[0].mxu0
  %v328 = vadd.f32 %v231, %v327
  %v329 = vpop.f32.mrb[0].mxu0
  %v330 = vadd.f32 %v231, %v329
  %331 = vdwg.mxu0
  %332 = vmatprep.subr.bf16.mxu0 0
  %333 = vmatpush1.bf16.msra.mxu0 %v43
  %334 = vmatprep.subr.bf16.mxu0 0
  %335 = vmatpush1.bf16.msra.mxu0 %v58
  %336 = vmatprep.subr.bf16.mxu0 0
  %337 = vmatpush1.bf16.msra.mxu0 %v78
  %338 = vmatprep.subr.bf16.mxu0 0
  %339 = vmatpush1.bf16.msra.mxu0 %v98
  %340 = vmatprep.subr.bf16.mxu0 0
  %341 = vmatpush1.bf16.msra.mxu0 %v118
  %342 = vmatprep.subr.bf16.mxu0 0
  %343 = vmatpush1.bf16.msra.mxu0 %v138
  %344 = vmatprep.subr.bf16.mxu0 0
  %345 = vmatpush1.bf16.msra.mxu0 %v169
  %346 = vmatprep.subr.bf16.mxu0 0
  %347 = vmatpush1.bf16.msra.mxu0 %v192
  %348 = vmatprep.subr.bf16.mxu0 0
  %349 = vmatpush1.bf16.msra.mxu0 %v215
  %350 = vmatprep.subr.bf16.mxu0 0
  %351 = vmatpush1.bf16.msra.mxu0 0
  %352 = vmatprep.subr.bf16.mxu0 0
  %353 = vmatpush1.bf16.msra.mxu0 0
  %354 = vmatprep.subr.bf16.mxu0 0
  %355 = vmatpush1.bf16.msra.mxu0 0
  %356 = vmatprep.subr.bf16.mxu0 0
  %357 = vmatpush1.bf16.msra.mxu0 0
  %358 = vmatprep.subr.bf16.mxu0 0
  %359 = vmatpush1.bf16.msra.mxu0 0
  %360 = vmatprep.subr.bf16.mxu0 0
  %361 = vmatpush1.bf16.msra.mxu0 0
  %362 = vmatprep.subr.bf16.mxu0 0
  %363 = vmatpush1.bf16.msra.mxu0 0
  %364 = vmatprep.mubr.bf16.mxu0 %v244
  %365 = vmatmul.mubr.bf16.gmra.mrb[0].mxu0 %v239
  %v366 = vpop.f32.mrb[0].mxu0
  %v367 = vadd.f32 %v226, %v366
  %v368 = vpop.f32.mrb[0].mxu0
  %v369 = vpop.f32.mrb[0].mxu0
  %v370 = vadd.f32 %v231, %v369
  %v371 = vpop.f32.mrb[0].mxu0
  %372 = vdwg.mxu0
  %v373 = vpack.c.bf16 %v285, %v281
  %v374 = vpack.c.bf16 %v287, %v283
  %v375 = vpack.c.bf16 %v328, %v324
  %v376 = vpack.c.bf16 %v330, %v326
  %v377 = vpack.c.bf16 %v370, %v367
  %v383 = vunpack.c.l.b16 %v373
  %v384 = vunpack.c.l.b16 %v374
  %v385 = vunpack.c.l.b16 %v375
  %v386 = vunpack.c.l.b16 %v376
  %v387 = vunpack.c.l.b16 %v377
  %v388 = vunpack.c.h.b16 %v373
  %v389 = vunpack.c.h.b16 %v374
  %v390 = vunpack.c.h.b16 %v375
  %v391 = vunpack.c.h.b16 %v376
  %v392 = vunpack.c.h.b16 %v377
  %v393 = vpack.c.b16 %v384, %v383
  %v394 = vpack.c.b16 %v386, %v385
  %v395 = vpack.c.b16 %v387, %v387
  %v396 = vpack.c.b16 %v389, %v388
  %v397 = vpack.c.b16 %v391, %v390
  %v398 = vpack.c.b16 %v392, %v392
  %405 = vst [vmem:[%s3] sm:$0xff] %v393
  %406 = vst [vmem:[%s3 + $0x8] sm:$0xff] %v394
  %vm407 = vcmask 797696
  %408 = vst.msk [vmem:[%s3 + $0x10] sm:$0xf] %vm407, %v395
  %409 = vst [vmem:[%s3 + $0x18] sm:$0x33] %v396
  %410 = vst [vmem:[%s3 + $0x20] sm:$0x33] %v397
  %vm411 = vcmask 795648
  %412 = vst.msk [vmem:[%s3 + $0x28] sm:$0x3] %vm411, %v398
  %vm413 = vcmask 1044240
  %vm414 = vcmask 1047556
  %vm415 = vmor %vm414, %vm413
  %416 = vst.msk [vmem:[%s3 + $0x10] sm:$0xff] %vm415, 0
  %vm417 = vcmask 1042192
  %vm418 = vcmask 1045508
  %vm419 = vmor %vm418, %vm417
  %420 = vst.msk [vmem:[%s3 + $0x28] sm:$0x33] %vm419, 0
  // Predicated region
  $region14: #{vqvae_forward.9} parent=0 // pred_check
    _
  $region15: #{vqvae_forward.9} parent=0 // pred_check_branch
    %422 = sbr.rel (0) target = $region17
  $region16: #{vqvae_forward.9} parent=0 // pred_region
    _
  $region17: #{vqvae_forward.9} parent=0 // pred_fallthru
    _
  // Predicated region
  $region18: #{vqvae_forward.9} parent=0 // pred_check
    _
  $region19: #{vqvae_forward.9} parent=0 // pred_check_branch
    %424 = sbr.rel (0) target = $region21
  $region20: #{vqvae_forward.9} parent=0 // pred_region
    _
  $region21: #{vqvae_forward.9} parent=0 // pred_fallthru
    _

</llo_original>
